<compile_context>
chip_gen: v5e
topology: v5e:2x2
jax: 0.10.0
libtpu: 0.0.40
codegen_flags: <defaults>
</compile_context>

<pallas_src>
import functools

import jax
import jax.numpy as jnp
from jax.experimental import pallas as pl
from jax.experimental.pallas import tpu as pltpu


_HALO = 128  # lane-aligned flat halo; must cover the max tap shift (7*W + 7)


# ---------------------------------------------------------------------------
# The single fused RFB kernel (one image per grid step, channel-major).
# ---------------------------------------------------------------------------
def _rfb_kernel(H, W, Cin, Co, *refs):
    (x_ref, ws_ref, bs_ref,
     w11, b11, w12, b12, w13, b13,
     w21, b21, w22, b22, w23, b23,
     w31, b31, w32, b32, w33, b33,
     wc, bc,
     o_ref, pad_ref, col_ref, cat_ref) = refs

    HW = H * W
    Cc = 4 * Co

    # Lane index -> column within an image row (row-crossing masks for W shifts).
    lane = jax.lax.broadcasted_iota(jnp.int32, (1, HW), 1)
    wcol = lane % W

    # Zero ONLY the halo strips (interior is fully overwritten by every conv).
    pad_ref[:, 0:_HALO] = jnp.zeros((Cc, _HALO), jnp.float32)
    pad_ref[:, _HALO + HW:2 * _HALO + HW] = jnp.zeros((Cc, _HALO), jnp.float32)

    def conv(src, w_ref, b_ref, taps, C):
        """One conv = im2col gather into VMEM + a single MXU matmul.

        src: (C, HW) channel-major value.  taps: list of (dy, dx) offsets.
        w_ref: (Co, len(taps)*C) with K ordered tap-major / channel-minor.
        """
        pad_ref[0:C, _HALO:_HALO + HW] = src
        for t, (dy, dx) in enumerate(taps):
            if dy == 0 and dx == 0:
                tap = src
            else:
                s = dy * W + dx          # flat lane shift; halos absorb dy OOB
                tap = pad_ref[0:C, _HALO + s:_HALO + s + HW]
            if dx != 0:                  # mask reads that crossed an image row
                ok = (wcol + dx >= 0) & (wcol + dx < W)
                tap = jnp.where(ok, tap, 0.0)
            col_ref[t * C:(t + 1) * C, :] = tap
        K = len(taps) * C
        return (jnp.dot(w_ref[...], col_ref[0:K, :],
                        preferred_element_type=jnp.float32) + b_ref[...])

    def row_taps(k):   # (1, k) conv, padding (0, k//2)
        return [(0, j - k // 2) for j in range(k)]

    def col_taps(k):   # (k, 1) conv, padding (k//2, 0)
        return [(i - k // 2, 0) for i in range(k)]

    def dil_taps(d):   # 3x3 conv, padding d, dilation d
        return [((i - 1) * d, (j - 1) * d) for i in range(3) for j in range(3)]

    # ---- fused stem: b0_0 / b1_0 / b2_0 / b3_0 / conv_res in ONE matmul ----
    x = x_ref[0]                                                   # (Cin, HW)
    stem = (jnp.dot(ws_ref[...], x, preferred_element_type=jnp.float32)
            + bs_ref[...])                                         # (5*Co, HW)

    # ---- branch chains: (1,k) -> (k,1) -> 3x3 dilated, all VMEM-resident ---
    def branch(s_in, k, d, w1, b1, w2, b2, w3, b3):
        t = conv(s_in, w1, b1, row_taps(k), Co)
        t = conv(t, w2, b2, col_taps(k), Co)
        return conv(t, w3, b3, dil_taps(d), Co)

    cat_ref[0 * Co:1 * Co, :] = stem[0 * Co:1 * Co]                # branch0
    cat_ref[1 * Co:2 * Co, :] = branch(stem[1 * Co:2 * Co], 3, 3,
                                       w11, b11, w12, b12, w13, b13)
    cat_ref[2 * Co:3 * Co, :] = branch(stem[2 * Co:3 * Co], 5, 5,
                                       w21, b21, w22, b22, w23, b23)
    cat_ref[3 * Co:4 * Co, :] = branch(stem[3 * Co:4 * Co], 7, 7,
                                       w31, b31, w32, b32, w33, b33)

    # ---- conv_cat (3x3, pad 1) + conv_res + ReLU, fused ---------------------
    res = stem[4 * Co:5 * Co]
    cat_out = conv(cat_ref[...], wc, bc, dil_taps(1), Cc)
    o_ref[0] = jnp.maximum(cat_out + res, 0.0)


# ---------------------------------------------------------------------------
# Wrapper: weight repacking (HWIO -> channel-major matmul weights) + call.
# ---------------------------------------------------------------------------
def _cm_weight(w):
    """HWIO (kh, kw, ci, co) -> (co, kh*kw*ci), K ordered (kh, kw, ci)."""
    kh, kw, ci, co = w.shape
    return jnp.transpose(w.reshape(kh * kw * ci, co))


def rfb_forward(x_nchw, params):
    N, Cin, H, W = x_nchw.shape
    Co = params["b0_0"][0].shape[-1]
    HW = H * W
    assert 7 * W + 7 <= _HALO, "halo must cover the largest (dil=7) tap shift"

    xf = x_nchw.reshape(N, Cin, HW)          # NCHW is already channel-major

    # Fused stem: the five 1x1 convs that all read x -> one (5*Co, Cin) matmul.
    stem_names = ("b0_0", "b1_0", "b2_0", "b3_0", "conv_res")
    w_stem = jnp.concatenate([_cm_weight(params[n][0]) for n in stem_names], 0)
    b_stem = jnp.concatenate([params[n][1] for n in stem_names], 0).reshape(5 * Co, 1)

    chain_names = ("b1_1", "b1_2", "b1_3", "b2_1", "b2_2", "b2_3",
                   "b3_1", "b3_2", "b3_3", "conv_cat")
    chain_ops = []
    for n in chain_names:
        w, b = params[n]
        chain_ops += [_cm_weight(w), b.reshape(-1, 1)]

    operands = [xf, w_stem, b_stem] + chain_ops
    in_specs = [pl.BlockSpec((1, Cin, HW), lambda n: (n, 0, 0))]
    in_specs += [pl.BlockSpec(op.shape, lambda n: (0, 0)) for op in operands[1:]]

    kern = functools.partial(_rfb_kernel, H, W, Cin, Co)
    out = pl.pallas_call(
        kern,
        out_shape=jax.ShapeDtypeStruct((N, Co, HW), jnp.float32),
        grid=(N,),
        in_specs=in_specs,
        out_specs=pl.BlockSpec((1, Co, HW), lambda n: (n, 0, 0)),
        scratch_shapes=[
            pltpu.VMEM((4 * Co, 2 * _HALO + HW), jnp.float32),  # flat halo pad
            pltpu.VMEM((9 * 4 * Co, HW), jnp.float32),          # im2col columns
            pltpu.VMEM((4 * Co, HW), jnp.float32),              # channel concat
        ],
        compiler_params=pltpu.CompilerParams(dimension_semantics=("parallel",)),
    )(*operands)
    return out.reshape(N, Co, H, W)


# ---------------------------------------------------------------------------
# Deterministic parameter init (mirrors module __init__: normal std=0.01, bias 0)
# Weights stored HWIO: (kh, kw, cin, cout).
# ---------------------------------------------------------------------------
def init_params(key, cin, co):
    specs = {
        "b0_0": (1, 1, cin, co),
        "b1_0": (1, 1, cin, co), "b1_1": (1, 3, co, co),
        "b1_2": (3, 1, co, co), "b1_3": (3, 3, co, co),
        "b2_0": (1, 1, cin, co), "b2_1": (1, 5, co, co),
        "b2_2": (5, 1, co, co), "b2_3": (3, 3, co, co),
        "b3_0": (1, 1, cin, co), "b3_1": (1, 7, co, co),
        "b3_2": (7, 1, co, co), "b3_3": (3, 3, co, co),
        "conv_cat": (3, 3, 4 * co, co),
        "conv_res": (1, 1, cin, co),
    }
    params = {}
    names = sorted(specs.keys())
    keys = jax.random.split(key, len(names))
    for k, name in zip(keys, names):
        shp = specs[name]
        w = 0.01 * jax.random.normal(k, shp, dtype=jnp.float32)
        b = jnp.zeros((shp[-1],), jnp.float32)
        params[name] = (w, b)
    return params


# ---------------------------------------------------------------------------
# Pure-JAX reference (for correctness check)
# ---------------------------------------------------------------------------
def _ref_conv(x, params, padding=(0, 0), dilation=(1, 1)):
    w, b = params
    return jax.lax.conv_general_dilated(
        x, w, (1, 1),
        ((padding[0], padding[0]), (padding[1], padding[1])),
        rhs_dilation=dilation,
        dimension_numbers=("NHWC", "HWIO", "NHWC"),
        precision=jax.lax.Precision.HIGHEST,
    ) + b


def rfb_ref(x_nchw, params):
    x = jnp.transpose(x_nchw, (0, 2, 3, 1))
    x0 = _ref_conv(x, params["b0_0"])
    t = _ref_conv(x, params["b1_0"])
    t = _ref_conv(t, params["b1_1"], padding=(0, 1))
    t = _ref_conv(t, params["b1_2"], padding=(1, 0))
    x1 = _ref_conv(t, params["b1_3"], padding=(3, 3), dilation=(3, 3))
    t = _ref_conv(x, params["b2_0"])
    t = _ref_conv(t, params["b2_1"], padding=(0, 2))
    t = _ref_conv(t, params["b2_2"], padding=(2, 0))
    x2 = _ref_conv(t, params["b2_3"], padding=(5, 5), dilation=(5, 5))
    t = _ref_conv(x, params["b3_0"])
    t = _ref_conv(t, params["b3_1"], padding=(0, 3))
    t = _ref_conv(t, params["b3_2"], padding=(3, 0))
    x3 = _ref_conv(t, params["b3_3"], padding=(7, 7), dilation=(7, 7))
    x_cat = jnp.concatenate([x0, x1, x2, x3], axis=-1)
    cat = _ref_conv(x_cat, params["conv_cat"], padding=(1, 1))
    res = _ref_conv(x, params["conv_res"])
    out = jnp.maximum(cat + res, 0.0)
    return jnp.transpose(out, (0, 3, 1, 2))


if __name__ == "__main__":
    key = jax.random.PRNGKey(0)
    kx, kp = jax.random.split(key)

    # small shapes: batch=2, in_channel=4, 16x16 spatial, out_channel=8
    N, Cin, H, W = 2, 4, 16, 16
    Co = 8

    x = jax.random.normal(kx, (N, Cin, H, W), dtype=jnp.float32)
    params = init_params(kp, Cin, Co)

    fwd = jax.jit(rfb_forward)
    out = jax.block_until_ready(fwd(x, params))

    assert out.shape == (N, Co, H, W), out.shape
    ref = rfb_ref(x, params)
    err = float(jnp.max(jnp.abs(out - ref)))
    assert jnp.allclose(out, ref, atol=1e-5, rtol=1e-2), f"max abs err {err}"

    print("KERNEL_OK")
</pallas_src>

<mosaic_0001>
module attributes {stable_mosaic.version = 11 : i64} {
  func.func @_rfb_kernel(%arg0: i32, %arg1: memref<1x4x256xf32, #tpu.memory_space<vmem>>, %arg2: memref<40x4xf32, #tpu.memory_space<vmem>>, %arg3: memref<40x1xf32, #tpu.memory_space<vmem>>, %arg4: memref<8x24xf32, #tpu.memory_space<vmem>>, %arg5: memref<8x1xf32, #tpu.memory_space<vmem>>, %arg6: memref<8x24xf32, #tpu.memory_space<vmem>>, %arg7: memref<8x1xf32, #tpu.memory_space<vmem>>, %arg8: memref<8x72xf32, #tpu.memory_space<vmem>>, %arg9: memref<8x1xf32, #tpu.memory_space<vmem>>, %arg10: memref<8x40xf32, #tpu.memory_space<vmem>>, %arg11: memref<8x1xf32, #tpu.memory_space<vmem>>, %arg12: memref<8x40xf32, #tpu.memory_space<vmem>>, %arg13: memref<8x1xf32, #tpu.memory_space<vmem>>, %arg14: memref<8x72xf32, #tpu.memory_space<vmem>>, %arg15: memref<8x1xf32, #tpu.memory_space<vmem>>, %arg16: memref<8x56xf32, #tpu.memory_space<vmem>>, %arg17: memref<8x1xf32, #tpu.memory_space<vmem>>, %arg18: memref<8x56xf32, #tpu.memory_space<vmem>>, %arg19: memref<8x1xf32, #tpu.memory_space<vmem>>, %arg20: memref<8x72xf32, #tpu.memory_space<vmem>>, %arg21: memref<8x1xf32, #tpu.memory_space<vmem>>, %arg22: memref<8x288xf32, #tpu.memory_space<vmem>>, %arg23: memref<8x1xf32, #tpu.memory_space<vmem>>, %arg24: memref<1x8x256xf32, #tpu.memory_space<vmem>>, %arg25: memref<32x512xf32, #tpu.memory_space<vmem>>, %arg26: memref<288x256xf32, #tpu.memory_space<vmem>>, %arg27: memref<32x256xf32, #tpu.memory_space<vmem>>) attributes {dimension_semantics = [#tpu.dimension_semantics<parallel>], iteration_bounds = array<i64: 2>, scalar_prefetch = 0 : i64, scratch_operands = 3 : i64, tpu.core_type = #tpu.core_type<tc>, window_params = [{transform_indices = @transform_0, window_bounds = array<i64: 1, 4, 256>}, {pipeline_mode = #tpu.pipeline_mode<synchronous>, transform_indices = @transform_1, window_bounds = array<i64: 40, 4>}, {pipeline_mode = #tpu.pipeline_mode<synchronous>, transform_indices = @transform_2, window_bounds = array<i64: 40, 1>}, {pipeline_mode = #tpu.pipeline_mode<synchronous>, transform_indices = @transform_3, window_bounds = array<i64: 8, 24>}, {pipeline_mode = #tpu.pipeline_mode<synchronous>, transform_indices = @transform_4, window_bounds = array<i64: 8, 1>}, {pipeline_mode = #tpu.pipeline_mode<synchronous>, transform_indices = @transform_5, window_bounds = array<i64: 8, 24>}, {pipeline_mode = #tpu.pipeline_mode<synchronous>, transform_indices = @transform_6, window_bounds = array<i64: 8, 1>}, {pipeline_mode = #tpu.pipeline_mode<synchronous>, transform_indices = @transform_7, window_bounds = array<i64: 8, 72>}, {pipeline_mode = #tpu.pipeline_mode<synchronous>, transform_indices = @transform_8, window_bounds = array<i64: 8, 1>}, {pipeline_mode = #tpu.pipeline_mode<synchronous>, transform_indices = @transform_9, window_bounds = array<i64: 8, 40>}, {pipeline_mode = #tpu.pipeline_mode<synchronous>, transform_indices = @transform_10, window_bounds = array<i64: 8, 1>}, {pipeline_mode = #tpu.pipeline_mode<synchronous>, transform_indices = @transform_11, window_bounds = array<i64: 8, 40>}, {pipeline_mode = #tpu.pipeline_mode<synchronous>, transform_indices = @transform_12, window_bounds = array<i64: 8, 1>}, {pipeline_mode = #tpu.pipeline_mode<synchronous>, transform_indices = @transform_13, window_bounds = array<i64: 8, 72>}, {pipeline_mode = #tpu.pipeline_mode<synchronous>, transform_indices = @transform_14, window_bounds = array<i64: 8, 1>}, {pipeline_mode = #tpu.pipeline_mode<synchronous>, transform_indices = @transform_15, window_bounds = array<i64: 8, 56>}, {pipeline_mode = #tpu.pipeline_mode<synchronous>, transform_indices = @transform_16, window_bounds = array<i64: 8, 1>}, {pipeline_mode = #tpu.pipeline_mode<synchronous>, transform_indices = @transform_17, window_bounds = array<i64: 8, 56>}, {pipeline_mode = #tpu.pipeline_mode<synchronous>, transform_indices = @transform_18, window_bounds = array<i64: 8, 1>}, {pipeline_mode = #tpu.pipeline_mode<synchronous>, transform_indices = @transform_19, window_bounds = array<i64: 8, 72>}, {pipeline_mode = #tpu.pipeline_mode<synchronous>, transform_indices = @transform_20, window_bounds = array<i64: 8, 1>}, {pipeline_mode = #tpu.pipeline_mode<synchronous>, transform_indices = @transform_21, window_bounds = array<i64: 8, 288>}, {pipeline_mode = #tpu.pipeline_mode<synchronous>, transform_indices = @transform_22, window_bounds = array<i64: 8, 1>}, {transform_indices = @transform_23, window_bounds = array<i64: 1, 8, 256>}]} {
    %0 = tpu.iota {dimensions = array<i32: 1>} : vector<1x256xi32>
    %c16_i32 = arith.constant 16 : i32
    %c0_i32 = arith.constant 0 : i32
    %1 = arith.cmpi eq, %c16_i32, %c0_i32 : i32
    %c1_i32 = arith.constant 1 : i32
    %2 = arith.select %1, %c1_i32, %c16_i32 : i32
    %3 = vector.broadcast %2 : i32 to vector<1x256xi32>
    %4 = arith.remsi %0, %3 : vector<1x256xi32>
    %c0_i32_0 = arith.constant 0 : i32
    %5 = vector.broadcast %c0_i32_0 : i32 to vector<1x256xi32>
    %6 = arith.cmpi ne, %4, %5 : vector<1x256xi32>
    %c0_i32_1 = arith.constant 0 : i32
    %7 = vector.broadcast %c0_i32_1 : i32 to vector<1x256xi32>
    %8 = arith.cmpi slt, %4, %7 : vector<1x256xi32>
    %c0_i32_2 = arith.constant 0 : i32
    %9 = arith.cmpi slt, %2, %c0_i32_2 : i32
    %10 = vector.broadcast %9 : i1 to vector<1x256xi1>
    %11 = vector.broadcast %10 : vector<1x256xi1> to vector<1x256xi1>
    %12 = arith.xori %8, %11 : vector<1x256xi1>
    %13 = arith.andi %12, %6 : vector<1x256xi1>
    %14 = vector.broadcast %2 : i32 to vector<1x256xi32>
    %15 = arith.addi %4, %14 : vector<1x256xi32>
    %16 = arith.select %13, %15, %4 : vector<1x256xi1>, vector<1x256xi32>
    %cst = arith.constant 0.000000e+00 : f32
    %17 = vector.broadcast %cst : f32 to vector<32x128xf32>
    %c0 = arith.constant 0 : index
    %c0_3 = arith.constant 0 : index
    %18 = vector.load %arg25[%c0, %c0_3] : memref<32x512xf32, #tpu.memory_space<vmem>>, vector<32x128xf32>
    tpu.vector_store %arg25[%c0, %c0_3], %17 {strides = array<i32>} : memref<32x512xf32, #tpu.memory_space<vmem>>, vector<32x128xf32>,
    %cst_4 = arith.constant 0.000000e+00 : f32
    %19 = vector.broadcast %cst_4 : f32 to vector<32x128xf32>
    %c0_5 = arith.constant 0 : index
    %c384 = arith.constant 384 : index
    %20 = vector.load %arg25[%c0_5, %c384] : memref<32x512xf32, #tpu.memory_space<vmem>>, vector<32x128xf32>
    tpu.vector_store %arg25[%c0_5, %c384], %19 {strides = array<i32>} : memref<32x512xf32, #tpu.memory_space<vmem>>, vector<32x128xf32>,
    %c0_6 = arith.constant 0 : index
    %c0_7 = arith.constant 0 : index
    %c0_8 = arith.constant 0 : index
    %21 = vector.load %arg1[%c0_6, %c0_7, %c0_8] : memref<1x4x256xf32, #tpu.memory_space<vmem>>, vector<1x4x256xf32>
    %22 = vector.shape_cast %21 : vector<1x4x256xf32> to vector<4x256xf32>
    %c0_9 = arith.constant 0 : index
    %c0_10 = arith.constant 0 : index
    %23 = vector.load %arg2[%c0_9, %c0_10] : memref<40x4xf32, #tpu.memory_space<vmem>>, vector<40x4xf32>
    %cst_11 = arith.constant dense<0.000000e+00> : vector<40x256xf32>
    %24 = tpu.matmul %23, %22, %cst_11 {dimension_numbers = #tpu.dot_dimension_numbers<[1], [0], [0], [1], [0, 0, 1, 1], [], []>} : vector<40x4xf32>, vector<4x256xf32>, vector<40x256xf32> -> vector<40x256xf32>
    %c0_12 = arith.constant 0 : index
    %c0_13 = arith.constant 0 : index
    %25 = vector.load %arg3[%c0_12, %c0_13] : memref<40x1xf32, #tpu.memory_space<vmem>>, vector<40x1xf32>
    %26 = vector.broadcast %25 : vector<40x1xf32> to vector<40x256xf32>
    %27 = arith.addf %24, %26 : vector<40x256xf32>
    %28 = vector.extract_strided_slice %27 {offsets = [0, 0], sizes = [8, 256], strides = [1, 1]} : vector<40x256xf32> to vector<8x256xf32>
    %c0_14 = arith.constant 0 : index
    %c0_15 = arith.constant 0 : index
    %29 = vector.load %arg27[%c0_14, %c0_15] : memref<32x256xf32, #tpu.memory_space<vmem>>, vector<8x256xf32>
    tpu.vector_store %arg27[%c0_14, %c0_15], %28 {strides = array<i32>} : memref<32x256xf32, #tpu.memory_space<vmem>>, vector<8x256xf32>,
    %30 = vector.extract_strided_slice %27 {offsets = [8, 0], sizes = [8, 256], strides = [1, 1]} : vector<40x256xf32> to vector<8x256xf32>
    %c0_16 = arith.constant 0 : index
    %c128 = arith.constant 128 : index
    %31 = vector.load %arg25[%c0_16, %c128] : memref<32x512xf32, #tpu.memory_space<vmem>>, vector<8x256xf32>
    tpu.vector_store %arg25[%c0_16, %c128], %30 {strides = array<i32>} : memref<32x512xf32, #tpu.memory_space<vmem>>, vector<8x256xf32>,
    %c0_17 = arith.constant 0 : index
    %c127 = arith.constant 127 : index
    %32 = vector.load %arg25[%c0_17, %c127] : memref<32x512xf32, #tpu.memory_space<vmem>>, vector<8x256xf32>
    %c-1_i32 = arith.constant -1 : i32
    %33 = vector.broadcast %c-1_i32 : i32 to vector<1x256xi32>
    %34 = arith.addi %16, %33 : vector<1x256xi32>
    %c0_i32_18 = arith.constant 0 : i32
    %35 = vector.broadcast %c0_i32_18 : i32 to vector<1x256xi32>
    %36 = arith.cmpi sge, %34, %35 : vector<1x256xi32>
    %c-1_i32_19 = arith.constant -1 : i32
    %37 = vector.broadcast %c-1_i32_19 : i32 to vector<1x256xi32>
    %38 = arith.addi %16, %37 : vector<1x256xi32>
    %c16_i32_20 = arith.constant 16 : i32
    %39 = vector.broadcast %c16_i32_20 : i32 to vector<1x256xi32>
    %40 = arith.cmpi slt, %38, %39 : vector<1x256xi32>
    %41 = arith.andi %36, %40 : vector<1x256xi1>
    %cst_21 = arith.constant 0.000000e+00 : f32
    %42 = vector.shape_cast %41 : vector<1x256xi1> to vector<1x256xi1>
    %43 = vector.broadcast %42 : vector<1x256xi1> to vector<8x256xi1>
    %44 = vector.broadcast %cst_21 : f32 to vector<8x256xf32>
    %45 = arith.select %43, %32, %44 : vector<8x256xi1>, vector<8x256xf32>
    %c0_22 = arith.constant 0 : index
    %c0_23 = arith.constant 0 : index
    %46 = vector.load %arg26[%c0_22, %c0_23] : memref<288x256xf32, #tpu.memory_space<vmem>>, vector<8x256xf32>
    tpu.vector_store %arg26[%c0_22, %c0_23], %45 {strides = array<i32>} : memref<288x256xf32, #tpu.memory_space<vmem>>, vector<8x256xf32>,
    %c8 = arith.constant 8 : index
    %c0_24 = arith.constant 0 : index
    %47 = vector.load %arg26[%c8, %c0_24] : memref<288x256xf32, #tpu.memory_space<vmem>>, vector<8x256xf32>
    tpu.vector_store %arg26[%c8, %c0_24], %30 {strides = array<i32>} : memref<288x256xf32, #tpu.memory_space<vmem>>, vector<8x256xf32>,
    %c0_25 = arith.constant 0 : index
    %c129 = arith.constant 129 : index
    %48 = vector.load %arg25[%c0_25, %c129] : memref<32x512xf32, #tpu.memory_space<vmem>>, vector<8x256xf32>
    %c1_i32_26 = arith.constant 1 : i32
    %49 = vector.broadcast %c1_i32_26 : i32 to vector<1x256xi32>
    %50 = arith.addi %16, %49 : vector<1x256xi32>
    %c0_i32_27 = arith.constant 0 : i32
    %51 = vector.broadcast %c0_i32_27 : i32 to vector<1x256xi32>
    %52 = arith.cmpi sge, %50, %51 : vector<1x256xi32>
    %c1_i32_28 = arith.constant 1 : i32
    %53 = vector.broadcast %c1_i32_28 : i32 to vector<1x256xi32>
    %54 = arith.addi %16, %53 : vector<1x256xi32>
    %c16_i32_29 = arith.constant 16 : i32
    %55 = vector.broadcast %c16_i32_29 : i32 to vector<1x256xi32>
    %56 = arith.cmpi slt, %54, %55 : vector<1x256xi32>
    %57 = arith.andi %52, %56 : vector<1x256xi1>
    %cst_30 = arith.constant 0.000000e+00 : f32
    %58 = vector.shape_cast %57 : vector<1x256xi1> to vector<1x256xi1>
    %59 = vector.broadcast %58 : vector<1x256xi1> to vector<8x256xi1>
    %60 = vector.broadcast %cst_30 : f32 to vector<8x256xf32>
    %61 = arith.select %59, %48, %60 : vector<8x256xi1>, vector<8x256xf32>
    %c16 = arith.constant 16 : index
    %c0_31 = arith.constant 0 : index
    %62 = vector.load %arg26[%c16, %c0_31] : memref<288x256xf32, #tpu.memory_space<vmem>>, vector<8x256xf32>
    tpu.vector_store %arg26[%c16, %c0_31], %61 {strides = array<i32>} : memref<288x256xf32, #tpu.memory_space<vmem>>, vector<8x256xf32>,
    %c0_32 = arith.constant 0 : index
    %c0_33 = arith.constant 0 : index
    %63 = vector.load %arg4[%c0_32, %c0_33] : memref<8x24xf32, #tpu.memory_space<vmem>>, vector<8x24xf32>
    %c0_34 = arith.constant 0 : index
    %c0_35 = arith.constant 0 : index
    %64 = vector.load %arg26[%c0_34, %c0_35] : memref<288x256xf32, #tpu.memory_space<vmem>>, vector<24x256xf32>
    %cst_36 = arith.constant dense<0.000000e+00> : vector<8x256xf32>
    %65 = tpu.matmul %63, %64, %cst_36 {dimension_numbers = #tpu.dot_dimension_numbers<[1], [0], [0], [1], [0, 0, 1, 1], [], []>} : vector<8x24xf32>, vector<24x256xf32>, vector<8x256xf32> -> vector<8x256xf32>
    %c0_37 = arith.constant 0 : index
    %c0_38 = arith.constant 0 : index
    %66 = vector.load %arg5[%c0_37, %c0_38] : memref<8x1xf32, #tpu.memory_space<vmem>>, vector<8x1xf32>
    %67 = vector.broadcast %66 : vector<8x1xf32> to vector<8x256xf32>
    %68 = arith.addf %65, %67 : vector<8x256xf32>
    %c0_39 = arith.constant 0 : index
    %c128_40 = arith.constant 128 : index
    %69 = vector.load %arg25[%c0_39, %c128_40] : memref<32x512xf32, #tpu.memory_space<vmem>>, vector<8x256xf32>
    tpu.vector_store %arg25[%c0_39, %c128_40], %68 {strides = array<i32>} : memref<32x512xf32, #tpu.memory_space<vmem>>, vector<8x256xf32>,
    %c0_41 = arith.constant 0 : index
    %c112 = arith.constant 112 : index
    %70 = vector.load %arg25[%c0_41, %c112] : memref<32x512xf32, #tpu.memory_space<vmem>>, vector<8x256xf32>
    %c0_42 = arith.constant 0 : index
    %c0_43 = arith.constant 0 : index
    %71 = vector.load %arg26[%c0_42, %c0_43] : memref<288x256xf32, #tpu.memory_space<vmem>>, vector<8x256xf32>
    tpu.vector_store %arg26[%c0_42, %c0_43], %70 {strides = array<i32>} : memref<288x256xf32, #tpu.memory_space<vmem>>, vector<8x256xf32>,
    %c8_44 = arith.constant 8 : index
    %c0_45 = arith.constant 0 : index
    %72 = vector.load %arg26[%c8_44, %c0_45] : memref<288x256xf32, #tpu.memory_space<vmem>>, vector<8x256xf32>
    tpu.vector_store %arg26[%c8_44, %c0_45], %68 {strides = array<i32>} : memref<288x256xf32, #tpu.memory_space<vmem>>, vector<8x256xf32>,
    %c0_46 = arith.constant 0 : index
    %c144 = arith.constant 144 : index
    %73 = vector.load %arg25[%c0_46, %c144] : memref<32x512xf32, #tpu.memory_space<vmem>>, vector<8x256xf32>
    %c16_47 = arith.constant 16 : index
    %c0_48 = arith.constant 0 : index
    %74 = vector.load %arg26[%c16_47, %c0_48] : memref<288x256xf32, #tpu.memory_space<vmem>>, vector<8x256xf32>
    tpu.vector_store %arg26[%c16_47, %c0_48], %73 {strides = array<i32>} : memref<288x256xf32, #tpu.memory_space<vmem>>, vector<8x256xf32>,
    %c0_49 = arith.constant 0 : index
    %c0_50 = arith.constant 0 : index
    %75 = vector.load %arg6[%c0_49, %c0_50] : memref<8x24xf32, #tpu.memory_space<vmem>>, vector<8x24xf32>
    %c0_51 = arith.constant 0 : index
    %c0_52 = arith.constant 0 : index
    %76 = vector.load %arg26[%c0_51, %c0_52] : memref<288x256xf32, #tpu.memory_space<vmem>>, vector<24x256xf32>
    %cst_53 = arith.constant dense<0.000000e+00> : vector<8x256xf32>
    %77 = tpu.matmul %75, %76, %cst_53 {dimension_numbers = #tpu.dot_dimension_numbers<[1], [0], [0], [1], [0, 0, 1, 1], [], []>} : vector<8x24xf32>, vector<24x256xf32>, vector<8x256xf32> -> vector<8x256xf32>
    %c0_54 = arith.constant 0 : index
    %c0_55 = arith.constant 0 : index
    %78 = vector.load %arg7[%c0_54, %c0_55] : memref<8x1xf32, #tpu.memory_space<vmem>>, vector<8x1xf32>
    %79 = vector.broadcast %78 : vector<8x1xf32> to vector<8x256xf32>
    %80 = arith.addf %77, %79 : vector<8x256xf32>
    %c0_56 = arith.constant 0 : index
    %c128_57 = arith.constant 128 : index
    %81 = vector.load %arg25[%c0_56, %c128_57] : memref<32x512xf32, #tpu.memory_space<vmem>>, vector<8x256xf32>
    tpu.vector_store %arg25[%c0_56, %c128_57], %80 {strides = array<i32>} : memref<32x512xf32, #tpu.memory_space<vmem>>, vector<8x256xf32>,
    %c0_58 = arith.constant 0 : index
    %c77 = arith.constant 77 : index
    %82 = vector.load %arg25[%c0_58, %c77] : memref<32x512xf32, #tpu.memory_space<vmem>>, vector<8x256xf32>
    %c-3_i32 = arith.constant -3 : i32
    %83 = vector.broadcast %c-3_i32 : i32 to vector<1x256xi32>
    %84 = arith.addi %16, %83 : vector<1x256xi32>
    %c0_i32_59 = arith.constant 0 : i32
    %85 = vector.broadcast %c0_i32_59 : i32 to vector<1x256xi32>
    %86 = arith.cmpi sge, %84, %85 : vector<1x256xi32>
    %c-3_i32_60 = arith.constant -3 : i32
    %87 = vector.broadcast %c-3_i32_60 : i32 to vector<1x256xi32>
    %88 = arith.addi %16, %87 : vector<1x256xi32>
    %c16_i32_61 = arith.constant 16 : i32
    %89 = vector.broadcast %c16_i32_61 : i32 to vector<1x256xi32>
    %90 = arith.cmpi slt, %88, %89 : vector<1x256xi32>
    %91 = arith.andi %86, %90 : vector<1x256xi1>
    %cst_62 = arith.constant 0.000000e+00 : f32
    %92 = vector.shape_cast %91 : vector<1x256xi1> to vector<1x256xi1>
    %93 = vector.broadcast %92 : vector<1x256xi1> to vector<8x256xi1>
    %94 = vector.broadcast %cst_62 : f32 to vector<8x256xf32>
    %95 = arith.select %93, %82, %94 : vector<8x256xi1>, vector<8x256xf32>
    %c0_63 = arith.constant 0 : index
    %c0_64 = arith.constant 0 : index
    %96 = vector.load %arg26[%c0_63, %c0_64] : memref<288x256xf32, #tpu.memory_space<vmem>>, vector<8x256xf32>
    tpu.vector_store %arg26[%c0_63, %c0_64], %95 {strides = array<i32>} : memref<288x256xf32, #tpu.memory_space<vmem>>, vector<8x256xf32>,
    %c0_65 = arith.constant 0 : index
    %c80 = arith.constant 80 : index
    %97 = vector.load %arg25[%c0_65, %c80] : memref<32x512xf32, #tpu.memory_space<vmem>>, vector<8x256xf32>
    %c8_66 = arith.constant 8 : index
    %c0_67 = arith.constant 0 : index
    %98 = vector.load %arg26[%c8_66, %c0_67] : memref<288x256xf32, #tpu.memory_space<vmem>>, vector<8x256xf32>
    tpu.vector_store %arg26[%c8_66, %c0_67], %97 {strides = array<i32>} : memref<288x256xf32, #tpu.memory_space<vmem>>, vector<8x256xf32>,
    %c0_68 = arith.constant 0 : index
    %c83 = arith.constant 83 : index
    %99 = vector.load %arg25[%c0_68, %c83] : memref<32x512xf32, #tpu.memory_space<vmem>>, vector<8x256xf32>
    %c3_i32 = arith.constant 3 : i32
    %100 = vector.broadcast %c3_i32 : i32 to vector<1x256xi32>
    %101 = arith.addi %16, %100 : vector<1x256xi32>
    %c0_i32_69 = arith.constant 0 : i32
    %102 = vector.broadcast %c0_i32_69 : i32 to vector<1x256xi32>
    %103 = arith.cmpi sge, %101, %102 : vector<1x256xi32>
    %c3_i32_70 = arith.constant 3 : i32
    %104 = vector.broadcast %c3_i32_70 : i32 to vector<1x256xi32>
    %105 = arith.addi %16, %104 : vector<1x256xi32>
    %c16_i32_71 = arith.constant 16 : i32
    %106 = vector.broadcast %c16_i32_71 : i32 to vector<1x256xi32>
    %107 = arith.cmpi slt, %105, %106 : vector<1x256xi32>
    %108 = arith.andi %103, %107 : vector<1x256xi1>
    %cst_72 = arith.constant 0.000000e+00 : f32
    %109 = vector.shape_cast %108 : vector<1x256xi1> to vector<1x256xi1>
    %110 = vector.broadcast %109 : vector<1x256xi1> to vector<8x256xi1>
    %111 = vector.broadcast %cst_72 : f32 to vector<8x256xf32>
    %112 = arith.select %110, %99, %111 : vector<8x256xi1>, vector<8x256xf32>
    %c16_73 = arith.constant 16 : index
    %c0_74 = arith.constant 0 : index
    %113 = vector.load %arg26[%c16_73, %c0_74] : memref<288x256xf32, #tpu.memory_space<vmem>>, vector<8x256xf32>
    tpu.vector_store %arg26[%c16_73, %c0_74], %112 {strides = array<i32>} : memref<288x256xf32, #tpu.memory_space<vmem>>, vector<8x256xf32>,
    %c0_75 = arith.constant 0 : index
    %c125 = arith.constant 125 : index
    %114 = vector.load %arg25[%c0_75, %c125] : memref<32x512xf32, #tpu.memory_space<vmem>>, vector<8x256xf32>
    %c-3_i32_76 = arith.constant -3 : i32
    %115 = vector.broadcast %c-3_i32_76 : i32 to vector<1x256xi32>
    %116 = arith.addi %16, %115 : vector<1x256xi32>
    %c0_i32_77 = arith.constant 0 : i32
    %117 = vector.broadcast %c0_i32_77 : i32 to vector<1x256xi32>
    %118 = arith.cmpi sge, %116, %117 : vector<1x256xi32>
    %c-3_i32_78 = arith.constant -3 : i32
    %119 = vector.broadcast %c-3_i32_78 : i32 to vector<1x256xi32>
    %120 = arith.addi %16, %119 : vector<1x256xi32>
    %c16_i32_79 = arith.constant 16 : i32
    %121 = vector.broadcast %c16_i32_79 : i32 to vector<1x256xi32>
    %122 = arith.cmpi slt, %120, %121 : vector<1x256xi32>
    %123 = arith.andi %118, %122 : vector<1x256xi1>
    %cst_80 = arith.constant 0.000000e+00 : f32
    %124 = vector.shape_cast %123 : vector<1x256xi1> to vector<1x256xi1>
    %125 = vector.broadcast %124 : vector<1x256xi1> to vector<8x256xi1>
    %126 = vector.broadcast %cst_80 : f32 to vector<8x256xf32>
    %127 = arith.select %125, %114, %126 : vector<8x256xi1>, vector<8x256xf32>
    %c24 = arith.constant 24 : index
    %c0_81 = arith.constant 0 : index
    %128 = vector.load %arg26[%c24, %c0_81] : memref<288x256xf32, #tpu.memory_space<vmem>>, vector<8x256xf32>
    tpu.vector_store %arg26[%c24, %c0_81], %127 {strides = array<i32>} : memref<288x256xf32, #tpu.memory_space<vmem>>, vector<8x256xf32>,
    %c32 = arith.constant 32 : index
    %c0_82 = arith.constant 0 : index
    %129 = vector.load %arg26[%c32, %c0_82] : memref<288x256xf32, #tpu.memory_space<vmem>>, vector<8x256xf32>
    tpu.vector_store %arg26[%c32, %c0_82], %80 {strides = array<i32>} : memref<288x256xf32, #tpu.memory_space<vmem>>, vector<8x256xf32>,
    %c0_83 = arith.constant 0 : index
    %c131 = arith.constant 131 : index
    %130 = vector.load %arg25[%c0_83, %c131] : memref<32x512xf32, #tpu.memory_space<vmem>>, vector<8x256xf32>
    %c3_i32_84 = arith.constant 3 : i32
    %131 = vector.broadcast %c3_i32_84 : i32 to vector<1x256xi32>
    %132 = arith.addi %16, %131 : vector<1x256xi32>
    %c0_i32_85 = arith.constant 0 : i32
    %133 = vector.broadcast %c0_i32_85 : i32 to vector<1x256xi32>
    %134 = arith.cmpi sge, %132, %133 : vector<1x256xi32>
    %c3_i32_86 = arith.constant 3 : i32
    %135 = vector.broadcast %c3_i32_86 : i32 to vector<1x256xi32>
    %136 = arith.addi %16, %135 : vector<1x256xi32>
    %c16_i32_87 = arith.constant 16 : i32
    %137 = vector.broadcast %c16_i32_87 : i32 to vector<1x256xi32>
    %138 = arith.cmpi slt, %136, %137 : vector<1x256xi32>
    %139 = arith.andi %134, %138 : vector<1x256xi1>
    %cst_88 = arith.constant 0.000000e+00 : f32
    %140 = vector.shape_cast %139 : vector<1x256xi1> to vector<1x256xi1>
    %141 = vector.broadcast %140 : vector<1x256xi1> to vector<8x256xi1>
    %142 = vector.broadcast %cst_88 : f32 to vector<8x256xf32>
    %143 = arith.select %141, %130, %142 : vector<8x256xi1>, vector<8x256xf32>
    %c40 = arith.constant 40 : index
    %c0_89 = arith.constant 0 : index
    %144 = vector.load %arg26[%c40, %c0_89] : memref<288x256xf32, #tpu.memory_space<vmem>>, vector<8x256xf32>
    tpu.vector_store %arg26[%c40, %c0_89], %143 {strides = array<i32>} : memref<288x256xf32, #tpu.memory_space<vmem>>, vector<8x256xf32>,
    %c0_90 = arith.constant 0 : index
    %c173 = arith.constant 173 : index
    %145 = vector.load %arg25[%c0_90, %c173] : memref<32x512xf32, #tpu.memory_space<vmem>>, vector<8x256xf32>
    %c-3_i32_91 = arith.constant -3 : i32
    %146 = vector.broadcast %c-3_i32_91 : i32 to vector<1x256xi32>
    %147 = arith.addi %16, %146 : vector<1x256xi32>
    %c0_i32_92 = arith.constant 0 : i32
    %148 = vector.broadcast %c0_i32_92 : i32 to vector<1x256xi32>
    %149 = arith.cmpi sge, %147, %148 : vector<1x256xi32>
    %c-3_i32_93 = arith.constant -3 : i32
    %150 = vector.broadcast %c-3_i32_93 : i32 to vector<1x256xi32>
    %151 = arith.addi %16, %150 : vector<1x256xi32>
    %c16_i32_94 = arith.constant 16 : i32
    %152 = vector.broadcast %c16_i32_94 : i32 to vector<1x256xi32>
    %153 = arith.cmpi slt, %151, %152 : vector<1x256xi32>
    %154 = arith.andi %149, %153 : vector<1x256xi1>
    %cst_95 = arith.constant 0.000000e+00 : f32
    %155 = vector.shape_cast %154 : vector<1x256xi1> to vector<1x256xi1>
    %156 = vector.broadcast %155 : vector<1x256xi1> to vector<8x256xi1>
    %157 = vector.broadcast %cst_95 : f32 to vector<8x256xf32>
    %158 = arith.select %156, %145, %157 : vector<8x256xi1>, vector<8x256xf32>
    %c48 = arith.constant 48 : index
    %c0_96 = arith.constant 0 : index
    %159 = vector.load %arg26[%c48, %c0_96] : memref<288x256xf32, #tpu.memory_space<vmem>>, vector<8x256xf32>
    tpu.vector_store %arg26[%c48, %c0_96], %158 {strides = array<i32>} : memref<288x256xf32, #tpu.memory_space<vmem>>, vector<8x256xf32>,
    %c0_97 = arith.constant 0 : index
    %c176 = arith.constant 176 : index
    %160 = vector.load %arg25[%c0_97, %c176] : memref<32x512xf32, #tpu.memory_space<vmem>>, vector<8x256xf32>
    %c56 = arith.constant 56 : index
    %c0_98 = arith.constant 0 : index
    %161 = vector.load %arg26[%c56, %c0_98] : memref<288x256xf32, #tpu.memory_space<vmem>>, vector<8x256xf32>
    tpu.vector_store %arg26[%c56, %c0_98], %160 {strides = array<i32>} : memref<288x256xf32, #tpu.memory_space<vmem>>, vector<8x256xf32>,
    %c0_99 = arith.constant 0 : index
    %c179 = arith.constant 179 : index
    %162 = vector.load %arg25[%c0_99, %c179] : memref<32x512xf32, #tpu.memory_space<vmem>>, vector<8x256xf32>
    %c3_i32_100 = arith.constant 3 : i32
    %163 = vector.broadcast %c3_i32_100 : i32 to vector<1x256xi32>
    %164 = arith.addi %16, %163 : vector<1x256xi32>
    %c0_i32_101 = arith.constant 0 : i32
    %165 = vector.broadcast %c0_i32_101 : i32 to vector<1x256xi32>
    %166 = arith.cmpi sge, %164, %165 : vector<1x256xi32>
    %c3_i32_102 = arith.constant 3 : i32
    %167 = vector.broadcast %c3_i32_102 : i32 to vector<1x256xi32>
    %168 = arith.addi %16, %167 : vector<1x256xi32>
    %c16_i32_103 = arith.constant 16 : i32
    %169 = vector.broadcast %c16_i32_103 : i32 to vector<1x256xi32>
    %170 = arith.cmpi slt, %168, %169 : vector<1x256xi32>
    %171 = arith.andi %166, %170 : vector<1x256xi1>
    %cst_104 = arith.constant 0.000000e+00 : f32
    %172 = vector.shape_cast %171 : vector<1x256xi1> to vector<1x256xi1>
    %173 = vector.broadcast %172 : vector<1x256xi1> to vector<8x256xi1>
    %174 = vector.broadcast %cst_104 : f32 to vector<8x256xf32>
    %175 = arith.select %173, %162, %174 : vector<8x256xi1>, vector<8x256xf32>
    %c64 = arith.constant 64 : index
    %c0_105 = arith.constant 0 : index
    %176 = vector.load %arg26[%c64, %c0_105] : memref<288x256xf32, #tpu.memory_space<vmem>>, vector<8x256xf32>
    tpu.vector_store %arg26[%c64, %c0_105], %175 {strides = array<i32>} : memref<288x256xf32, #tpu.memory_space<vmem>>, vector<8x256xf32>,
    %c0_106 = arith.constant 0 : index
    %c0_107 = arith.constant 0 : index
    %177 = vector.load %arg8[%c0_106, %c0_107] : memref<8x72xf32, #tpu.memory_space<vmem>>, vector<8x72xf32>
    %c0_108 = arith.constant 0 : index
    %c0_109 = arith.constant 0 : index
    %178 = vector.load %arg26[%c0_108, %c0_109] : memref<288x256xf32, #tpu.memory_space<vmem>>, vector<72x256xf32>
    %cst_110 = arith.constant dense<0.000000e+00> : vector<8x256xf32>
    %179 = tpu.matmul %177, %178, %cst_110 {dimension_numbers = #tpu.dot_dimension_numbers<[1], [0], [0], [1], [0, 0, 1, 1], [], []>} : vector<8x72xf32>, vector<72x256xf32>, vector<8x256xf32> -> vector<8x256xf32>
    %c0_111 = arith.constant 0 : index
    %c0_112 = arith.constant 0 : index
    %180 = vector.load %arg9[%c0_111, %c0_112] : memref<8x1xf32, #tpu.memory_space<vmem>>, vector<8x1xf32>
    %181 = vector.broadcast %180 : vector<8x1xf32> to vector<8x256xf32>
    %182 = arith.addf %179, %181 : vector<8x256xf32>
    %c8_113 = arith.constant 8 : index
    %c0_114 = arith.constant 0 : index
    %183 = vector.load %arg27[%c8_113, %c0_114] : memref<32x256xf32, #tpu.memory_space<vmem>>, vector<8x256xf32>
    tpu.vector_store %arg27[%c8_113, %c0_114], %182 {strides = array<i32>} : memref<32x256xf32, #tpu.memory_space<vmem>>, vector<8x256xf32>,
    %184 = vector.extract_strided_slice %27 {offsets = [16, 0], sizes = [8, 256], strides = [1, 1]} : vector<40x256xf32> to vector<8x256xf32>
    %c0_115 = arith.constant 0 : index
    %c128_116 = arith.constant 128 : index
    %185 = vector.load %arg25[%c0_115, %c128_116] : memref<32x512xf32, #tpu.memory_space<vmem>>, vector<8x256xf32>
    tpu.vector_store %arg25[%c0_115, %c128_116], %184 {strides = array<i32>} : memref<32x512xf32, #tpu.memory_space<vmem>>, vector<8x256xf32>,
    %c0_117 = arith.constant 0 : index
    %c126 = arith.constant 126 : index
    %186 = vector.load %arg25[%c0_117, %c126] : memref<32x512xf32, #tpu.memory_space<vmem>>, vector<8x256xf32>
    %c-2_i32 = arith.constant -2 : i32
    %187 = vector.broadcast %c-2_i32 : i32 to vector<1x256xi32>
    %188 = arith.addi %16, %187 : vector<1x256xi32>
    %c0_i32_118 = arith.constant 0 : i32
    %189 = vector.broadcast %c0_i32_118 : i32 to vector<1x256xi32>
    %190 = arith.cmpi sge, %188, %189 : vector<1x256xi32>
    %c-2_i32_119 = arith.constant -2 : i32
    %191 = vector.broadcast %c-2_i32_119 : i32 to vector<1x256xi32>
    %192 = arith.addi %16, %191 : vector<1x256xi32>
    %c16_i32_120 = arith.constant 16 : i32
    %193 = vector.broadcast %c16_i32_120 : i32 to vector<1x256xi32>
    %194 = arith.cmpi slt, %192, %193 : vector<1x256xi32>
    %195 = arith.andi %190, %194 : vector<1x256xi1>
    %cst_121 = arith.constant 0.000000e+00 : f32
    %196 = vector.shape_cast %195 : vector<1x256xi1> to vector<1x256xi1>
    %197 = vector.broadcast %196 : vector<1x256xi1> to vector<8x256xi1>
    %198 = vector.broadcast %cst_121 : f32 to vector<8x256xf32>
    %199 = arith.select %197, %186, %198 : vector<8x256xi1>, vector<8x256xf32>
    %c0_122 = arith.constant 0 : index
    %c0_123 = arith.constant 0 : index
    %200 = vector.load %arg26[%c0_122, %c0_123] : memref<288x256xf32, #tpu.memory_space<vmem>>, vector<8x256xf32>
    tpu.vector_store %arg26[%c0_122, %c0_123], %199 {strides = array<i32>} : memref<288x256xf32, #tpu.memory_space<vmem>>, vector<8x256xf32>,
    %c0_124 = arith.constant 0 : index
    %c127_125 = arith.constant 127 : index
    %201 = vector.load %arg25[%c0_124, %c127_125] : memref<32x512xf32, #tpu.memory_space<vmem>>, vector<8x256xf32>
    %c-1_i32_126 = arith.constant -1 : i32
    %202 = vector.broadcast %c-1_i32_126 : i32 to vector<1x256xi32>
    %203 = arith.addi %16, %202 : vector<1x256xi32>
    %c0_i32_127 = arith.constant 0 : i32
    %204 = vector.broadcast %c0_i32_127 : i32 to vector<1x256xi32>
    %205 = arith.cmpi sge, %203, %204 : vector<1x256xi32>
    %c-1_i32_128 = arith.constant -1 : i32
    %206 = vector.broadcast %c-1_i32_128 : i32 to vector<1x256xi32>
    %207 = arith.addi %16, %206 : vector<1x256xi32>
    %c16_i32_129 = arith.constant 16 : i32
    %208 = vector.broadcast %c16_i32_129 : i32 to vector<1x256xi32>
    %209 = arith.cmpi slt, %207, %208 : vector<1x256xi32>
    %210 = arith.andi %205, %209 : vector<1x256xi1>
    %cst_130 = arith.constant 0.000000e+00 : f32
    %211 = vector.shape_cast %210 : vector<1x256xi1> to vector<1x256xi1>
    %212 = vector.broadcast %211 : vector<1x256xi1> to vector<8x256xi1>
    %213 = vector.broadcast %cst_130 : f32 to vector<8x256xf32>
    %214 = arith.select %212, %201, %213 : vector<8x256xi1>, vector<8x256xf32>
    %c8_131 = arith.constant 8 : index
    %c0_132 = arith.constant 0 : index
    %215 = vector.load %arg26[%c8_131, %c0_132] : memref<288x256xf32, #tpu.memory_space<vmem>>, vector<8x256xf32>
    tpu.vector_store %arg26[%c8_131, %c0_132], %214 {strides = array<i32>} : memref<288x256xf32, #tpu.memory_space<vmem>>, vector<8x256xf32>,
    %c16_133 = arith.constant 16 : index
    %c0_134 = arith.constant 0 : index
    %216 = vector.load %arg26[%c16_133, %c0_134] : memref<288x256xf32, #tpu.memory_space<vmem>>, vector<8x256xf32>
    tpu.vector_store %arg26[%c16_133, %c0_134], %184 {strides = array<i32>} : memref<288x256xf32, #tpu.memory_space<vmem>>, vector<8x256xf32>,
    %c0_135 = arith.constant 0 : index
    %c129_136 = arith.constant 129 : index
    %217 = vector.load %arg25[%c0_135, %c129_136] : memref<32x512xf32, #tpu.memory_space<vmem>>, vector<8x256xf32>
    %c1_i32_137 = arith.constant 1 : i32
    %218 = vector.broadcast %c1_i32_137 : i32 to vector<1x256xi32>
    %219 = arith.addi %16, %218 : vector<1x256xi32>
    %c0_i32_138 = arith.constant 0 : i32
    %220 = vector.broadcast %c0_i32_138 : i32 to vector<1x256xi32>
    %221 = arith.cmpi sge, %219, %220 : vector<1x256xi32>
    %c1_i32_139 = arith.constant 1 : i32
    %222 = vector.broadcast %c1_i32_139 : i32 to vector<1x256xi32>
    %223 = arith.addi %16, %222 : vector<1x256xi32>
    %c16_i32_140 = arith.constant 16 : i32
    %224 = vector.broadcast %c16_i32_140 : i32 to vector<1x256xi32>
    %225 = arith.cmpi slt, %223, %224 : vector<1x256xi32>
    %226 = arith.andi %221, %225 : vector<1x256xi1>
    %cst_141 = arith.constant 0.000000e+00 : f32
    %227 = vector.shape_cast %226 : vector<1x256xi1> to vector<1x256xi1>
    %228 = vector.broadcast %227 : vector<1x256xi1> to vector<8x256xi1>
    %229 = vector.broadcast %cst_141 : f32 to vector<8x256xf32>
    %230 = arith.select %228, %217, %229 : vector<8x256xi1>, vector<8x256xf32>
    %c24_142 = arith.constant 24 : index
    %c0_143 = arith.constant 0 : index
    %231 = vector.load %arg26[%c24_142, %c0_143] : memref<288x256xf32, #tpu.memory_space<vmem>>, vector<8x256xf32>
    tpu.vector_store %arg26[%c24_142, %c0_143], %230 {strides = array<i32>} : memref<288x256xf32, #tpu.memory_space<vmem>>, vector<8x256xf32>,
    %c0_144 = arith.constant 0 : index
    %c130 = arith.constant 130 : index
    %232 = vector.load %arg25[%c0_144, %c130] : memref<32x512xf32, #tpu.memory_space<vmem>>, vector<8x256xf32>
    %c2_i32 = arith.constant 2 : i32
    %233 = vector.broadcast %c2_i32 : i32 to vector<1x256xi32>
    %234 = arith.addi %16, %233 : vector<1x256xi32>
    %c0_i32_145 = arith.constant 0 : i32
    %235 = vector.broadcast %c0_i32_145 : i32 to vector<1x256xi32>
    %236 = arith.cmpi sge, %234, %235 : vector<1x256xi32>
    %c2_i32_146 = arith.constant 2 : i32
    %237 = vector.broadcast %c2_i32_146 : i32 to vector<1x256xi32>
    %238 = arith.addi %16, %237 : vector<1x256xi32>
    %c16_i32_147 = arith.constant 16 : i32
    %239 = vector.broadcast %c16_i32_147 : i32 to vector<1x256xi32>
    %240 = arith.cmpi slt, %238, %239 : vector<1x256xi32>
    %241 = arith.andi %236, %240 : vector<1x256xi1>
    %cst_148 = arith.constant 0.000000e+00 : f32
    %242 = vector.shape_cast %241 : vector<1x256xi1> to vector<1x256xi1>
    %243 = vector.broadcast %242 : vector<1x256xi1> to vector<8x256xi1>
    %244 = vector.broadcast %cst_148 : f32 to vector<8x256xf32>
    %245 = arith.select %243, %232, %244 : vector<8x256xi1>, vector<8x256xf32>
    %c32_149 = arith.constant 32 : index
    %c0_150 = arith.constant 0 : index
    %246 = vector.load %arg26[%c32_149, %c0_150] : memref<288x256xf32, #tpu.memory_space<vmem>>, vector<8x256xf32>
    tpu.vector_store %arg26[%c32_149, %c0_150], %245 {strides = array<i32>} : memref<288x256xf32, #tpu.memory_space<vmem>>, vector<8x256xf32>,
    %c0_151 = arith.constant 0 : index
    %c0_152 = arith.constant 0 : index
    %247 = vector.load %arg10[%c0_151, %c0_152] : memref<8x40xf32, #tpu.memory_space<vmem>>, vector<8x40xf32>
    %c0_153 = arith.constant 0 : index
    %c0_154 = arith.constant 0 : index
    %248 = vector.load %arg26[%c0_153, %c0_154] : memref<288x256xf32, #tpu.memory_space<vmem>>, vector<40x256xf32>
    %cst_155 = arith.constant dense<0.000000e+00> : vector<8x256xf32>
    %249 = tpu.matmul %247, %248, %cst_155 {dimension_numbers = #tpu.dot_dimension_numbers<[1], [0], [0], [1], [0, 0, 1, 1], [], []>} : vector<8x40xf32>, vector<40x256xf32>, vector<8x256xf32> -> vector<8x256xf32>
    %c0_156 = arith.constant 0 : index
    %c0_157 = arith.constant 0 : index
    %250 = vector.load %arg11[%c0_156, %c0_157] : memref<8x1xf32, #tpu.memory_space<vmem>>, vector<8x1xf32>
    %251 = vector.broadcast %250 : vector<8x1xf32> to vector<8x256xf32>
    %252 = arith.addf %249, %251 : vector<8x256xf32>
    %c0_158 = arith.constant 0 : index
    %c128_159 = arith.constant 128 : index
    %253 = vector.load %arg25[%c0_158, %c128_159] : memref<32x512xf32, #tpu.memory_space<vmem>>, vector<8x256xf32>
    tpu.vector_store %arg25[%c0_158, %c128_159], %252 {strides = array<i32>} : memref<32x512xf32, #tpu.memory_space<vmem>>, vector<8x256xf32>,
    %c0_160 = arith.constant 0 : index
    %c96 = arith.constant 96 : index
    %254 = vector.load %arg25[%c0_160, %c96] : memref<32x512xf32, #tpu.memory_space<vmem>>, vector<8x256xf32>
    %c0_161 = arith.constant 0 : index
    %c0_162 = arith.constant 0 : index
    %255 = vector.load %arg26[%c0_161, %c0_162] : memref<288x256xf32, #tpu.memory_space<vmem>>, vector<8x256xf32>
    tpu.vector_store %arg26[%c0_161, %c0_162], %254 {strides = array<i32>} : memref<288x256xf32, #tpu.memory_space<vmem>>, vector<8x256xf32>,
    %c0_163 = arith.constant 0 : index
    %c112_164 = arith.constant 112 : index
    %256 = vector.load %arg25[%c0_163, %c112_164] : memref<32x512xf32, #tpu.memory_space<vmem>>, vector<8x256xf32>
    %c8_165 = arith.constant 8 : index
    %c0_166 = arith.constant 0 : index
    %257 = vector.load %arg26[%c8_165, %c0_166] : memref<288x256xf32, #tpu.memory_space<vmem>>, vector<8x256xf32>
    tpu.vector_store %arg26[%c8_165, %c0_166], %256 {strides = array<i32>} : memref<288x256xf32, #tpu.memory_space<vmem>>, vector<8x256xf32>,
    %c16_167 = arith.constant 16 : index
    %c0_168 = arith.constant 0 : index
    %258 = vector.load %arg26[%c16_167, %c0_168] : memref<288x256xf32, #tpu.memory_space<vmem>>, vector<8x256xf32>
    tpu.vector_store %arg26[%c16_167, %c0_168], %252 {strides = array<i32>} : memref<288x256xf32, #tpu.memory_space<vmem>>, vector<8x256xf32>,
    %c0_169 = arith.constant 0 : index
    %c144_170 = arith.constant 144 : index
    %259 = vector.load %arg25[%c0_169, %c144_170] : memref<32x512xf32, #tpu.memory_space<vmem>>, vector<8x256xf32>
    %c24_171 = arith.constant 24 : index
    %c0_172 = arith.constant 0 : index
    %260 = vector.load %arg26[%c24_171, %c0_172] : memref<288x256xf32, #tpu.memory_space<vmem>>, vector<8x256xf32>
    tpu.vector_store %arg26[%c24_171, %c0_172], %259 {strides = array<i32>} : memref<288x256xf32, #tpu.memory_space<vmem>>, vector<8x256xf32>,
    %c0_173 = arith.constant 0 : index
    %c160 = arith.constant 160 : index
    %261 = vector.load %arg25[%c0_173, %c160] : memref<32x512xf32, #tpu.memory_space<vmem>>, vector<8x256xf32>
    %c32_174 = arith.constant 32 : index
    %c0_175 = arith.constant 0 : index
    %262 = vector.load %arg26[%c32_174, %c0_175] : memref<288x256xf32, #tpu.memory_space<vmem>>, vector<8x256xf32>
    tpu.vector_store %arg26[%c32_174, %c0_175], %261 {strides = array<i32>} : memref<288x256xf32, #tpu.memory_space<vmem>>, vector<8x256xf32>,
    %c0_176 = arith.constant 0 : index
    %c0_177 = arith.constant 0 : index
    %263 = vector.load %arg12[%c0_176, %c0_177] : memref<8x40xf32, #tpu.memory_space<vmem>>, vector<8x40xf32>
    %c0_178 = arith.constant 0 : index
    %c0_179 = arith.constant 0 : index
    %264 = vector.load %arg26[%c0_178, %c0_179] : memref<288x256xf32, #tpu.memory_space<vmem>>, vector<40x256xf32>
    %cst_180 = arith.constant dense<0.000000e+00> : vector<8x256xf32>
    %265 = tpu.matmul %263, %264, %cst_180 {dimension_numbers = #tpu.dot_dimension_numbers<[1], [0], [0], [1], [0, 0, 1, 1], [], []>} : vector<8x40xf32>, vector<40x256xf32>, vector<8x256xf32> -> vector<8x256xf32>
    %c0_181 = arith.constant 0 : index
    %c0_182 = arith.constant 0 : index
    %266 = vector.load %arg13[%c0_181, %c0_182] : memref<8x1xf32, #tpu.memory_space<vmem>>, vector<8x1xf32>
    %267 = vector.broadcast %266 : vector<8x1xf32> to vector<8x256xf32>
    %268 = arith.addf %265, %267 : vector<8x256xf32>
    %c0_183 = arith.constant 0 : index
    %c128_184 = arith.constant 128 : index
    %269 = vector.load %arg25[%c0_183, %c128_184] : memref<32x512xf32, #tpu.memory_space<vmem>>, vector<8x256xf32>
    tpu.vector_store %arg25[%c0_183, %c128_184], %268 {strides = array<i32>} : memref<32x512xf32, #tpu.memory_space<vmem>>, vector<8x256xf32>,
    %c0_185 = arith.constant 0 : index
    %c43 = arith.constant 43 : index
    %270 = vector.load %arg25[%c0_185, %c43] : memref<32x512xf32, #tpu.memory_space<vmem>>, vector<8x256xf32>
    %c-5_i32 = arith.constant -5 : i32
    %271 = vector.broadcast %c-5_i32 : i32 to vector<1x256xi32>
    %272 = arith.addi %16, %271 : vector<1x256xi32>
    %c0_i32_186 = arith.constant 0 : i32
    %273 = vector.broadcast %c0_i32_186 : i32 to vector<1x256xi32>
    %274 = arith.cmpi sge, %272, %273 : vector<1x256xi32>
    %c-5_i32_187 = arith.constant -5 : i32
    %275 = vector.broadcast %c-5_i32_187 : i32 to vector<1x256xi32>
    %276 = arith.addi %16, %275 : vector<1x256xi32>
    %c16_i32_188 = arith.constant 16 : i32
    %277 = vector.broadcast %c16_i32_188 : i32 to vector<1x256xi32>
    %278 = arith.cmpi slt, %276, %277 : vector<1x256xi32>
    %279 = arith.andi %274, %278 : vector<1x256xi1>
    %cst_189 = arith.constant 0.000000e+00 : f32
    %280 = vector.shape_cast %279 : vector<1x256xi1> to vector<1x256xi1>
    %281 = vector.broadcast %280 : vector<1x256xi1> to vector<8x256xi1>
    %282 = vector.broadcast %cst_189 : f32 to vector<8x256xf32>
    %283 = arith.select %281, %270, %282 : vector<8x256xi1>, vector<8x256xf32>
    %c0_190 = arith.constant 0 : index
    %c0_191 = arith.constant 0 : index
    %284 = vector.load %arg26[%c0_190, %c0_191] : memref<288x256xf32, #tpu.memory_space<vmem>>, vector<8x256xf32>
    tpu.vector_store %arg26[%c0_190, %c0_191], %283 {strides = array<i32>} : memref<288x256xf32, #tpu.memory_space<vmem>>, vector<8x256xf32>,
    %c0_192 = arith.constant 0 : index
    %c48_193 = arith.constant 48 : index
    %285 = vector.load %arg25[%c0_192, %c48_193] : memref<32x512xf32, #tpu.memory_space<vmem>>, vector<8x256xf32>
    %c8_194 = arith.constant 8 : index
    %c0_195 = arith.constant 0 : index
    %286 = vector.load %arg26[%c8_194, %c0_195] : memref<288x256xf32, #tpu.memory_space<vmem>>, vector<8x256xf32>
    tpu.vector_store %arg26[%c8_194, %c0_195], %285 {strides = array<i32>} : memref<288x256xf32, #tpu.memory_space<vmem>>, vector<8x256xf32>,
    %c0_196 = arith.constant 0 : index
    %c53 = arith.constant 53 : index
    %287 = vector.load %arg25[%c0_196, %c53] : memref<32x512xf32, #tpu.memory_space<vmem>>, vector<8x256xf32>
    %c5_i32 = arith.constant 5 : i32
    %288 = vector.broadcast %c5_i32 : i32 to vector<1x256xi32>
    %289 = arith.addi %16, %288 : vector<1x256xi32>
    %c0_i32_197 = arith.constant 0 : i32
    %290 = vector.broadcast %c0_i32_197 : i32 to vector<1x256xi32>
    %291 = arith.cmpi sge, %289, %290 : vector<1x256xi32>
    %c5_i32_198 = arith.constant 5 : i32
    %292 = vector.broadcast %c5_i32_198 : i32 to vector<1x256xi32>
    %293 = arith.addi %16, %292 : vector<1x256xi32>
    %c16_i32_199 = arith.constant 16 : i32
    %294 = vector.broadcast %c16_i32_199 : i32 to vector<1x256xi32>
    %295 = arith.cmpi slt, %293, %294 : vector<1x256xi32>
    %296 = arith.andi %291, %295 : vector<1x256xi1>
    %cst_200 = arith.constant 0.000000e+00 : f32
    %297 = vector.shape_cast %296 : vector<1x256xi1> to vector<1x256xi1>
    %298 = vector.broadcast %297 : vector<1x256xi1> to vector<8x256xi1>
    %299 = vector.broadcast %cst_200 : f32 to vector<8x256xf32>
    %300 = arith.select %298, %287, %299 : vector<8x256xi1>, vector<8x256xf32>
    %c16_201 = arith.constant 16 : index
    %c0_202 = arith.constant 0 : index
    %301 = vector.load %arg26[%c16_201, %c0_202] : memref<288x256xf32, #tpu.memory_space<vmem>>, vector<8x256xf32>
    tpu.vector_store %arg26[%c16_201, %c0_202], %300 {strides = array<i32>} : memref<288x256xf32, #tpu.memory_space<vmem>>, vector<8x256xf32>,
    %c0_203 = arith.constant 0 : index
    %c123 = arith.constant 123 : index
    %302 = vector.load %arg25[%c0_203, %c123] : memref<32x512xf32, #tpu.memory_space<vmem>>, vector<8x256xf32>
    %c-5_i32_204 = arith.constant -5 : i32
    %303 = vector.broadcast %c-5_i32_204 : i32 to vector<1x256xi32>
    %304 = arith.addi %16, %303 : vector<1x256xi32>
    %c0_i32_205 = arith.constant 0 : i32
    %305 = vector.broadcast %c0_i32_205 : i32 to vector<1x256xi32>
    %306 = arith.cmpi sge, %304, %305 : vector<1x256xi32>
    %c-5_i32_206 = arith.constant -5 : i32
    %307 = vector.broadcast %c-5_i32_206 : i32 to vector<1x256xi32>
    %308 = arith.addi %16, %307 : vector<1x256xi32>
    %c16_i32_207 = arith.constant 16 : i32
    %309 = vector.broadcast %c16_i32_207 : i32 to vector<1x256xi32>
    %310 = arith.cmpi slt, %308, %309 : vector<1x256xi32>
    %311 = arith.andi %306, %310 : vector<1x256xi1>
    %cst_208 = arith.constant 0.000000e+00 : f32
    %312 = vector.shape_cast %311 : vector<1x256xi1> to vector<1x256xi1>
    %313 = vector.broadcast %312 : vector<1x256xi1> to vector<8x256xi1>
    %314 = vector.broadcast %cst_208 : f32 to vector<8x256xf32>
    %315 = arith.select %313, %302, %314 : vector<8x256xi1>, vector<8x256xf32>
    %c24_209 = arith.constant 24 : index
    %c0_210 = arith.constant 0 : index
    %316 = vector.load %arg26[%c24_209, %c0_210] : memref<288x256xf32, #tpu.memory_space<vmem>>, vector<8x256xf32>
    tpu.vector_store %arg26[%c24_209, %c0_210], %315 {strides = array<i32>} : memref<288x256xf32, #tpu.memory_space<vmem>>, vector<8x256xf32>,
    %c32_211 = arith.constant 32 : index
    %c0_212 = arith.constant 0 : index
    %317 = vector.load %arg26[%c32_211, %c0_212] : memref<288x256xf32, #tpu.memory_space<vmem>>, vector<8x256xf32>
    tpu.vector_store %arg26[%c32_211, %c0_212], %268 {strides = array<i32>} : memref<288x256xf32, #tpu.memory_space<vmem>>, vector<8x256xf32>,
    %c0_213 = arith.constant 0 : index
    %c133 = arith.constant 133 : index
    %318 = vector.load %arg25[%c0_213, %c133] : memref<32x512xf32, #tpu.memory_space<vmem>>, vector<8x256xf32>
    %c5_i32_214 = arith.constant 5 : i32
    %319 = vector.broadcast %c5_i32_214 : i32 to vector<1x256xi32>
    %320 = arith.addi %16, %319 : vector<1x256xi32>
    %c0_i32_215 = arith.constant 0 : i32
    %321 = vector.broadcast %c0_i32_215 : i32 to vector<1x256xi32>
    %322 = arith.cmpi sge, %320, %321 : vector<1x256xi32>
    %c5_i32_216 = arith.constant 5 : i32
    %323 = vector.broadcast %c5_i32_216 : i32 to vector<1x256xi32>
    %324 = arith.addi %16, %323 : vector<1x256xi32>
    %c16_i32_217 = arith.constant 16 : i32
    %325 = vector.broadcast %c16_i32_217 : i32 to vector<1x256xi32>
    %326 = arith.cmpi slt, %324, %325 : vector<1x256xi32>
    %327 = arith.andi %322, %326 : vector<1x256xi1>
    %cst_218 = arith.constant 0.000000e+00 : f32
    %328 = vector.shape_cast %327 : vector<1x256xi1> to vector<1x256xi1>
    %329 = vector.broadcast %328 : vector<1x256xi1> to vector<8x256xi1>
    %330 = vector.broadcast %cst_218 : f32 to vector<8x256xf32>
    %331 = arith.select %329, %318, %330 : vector<8x256xi1>, vector<8x256xf32>
    %c40_219 = arith.constant 40 : index
    %c0_220 = arith.constant 0 : index
    %332 = vector.load %arg26[%c40_219, %c0_220] : memref<288x256xf32, #tpu.memory_space<vmem>>, vector<8x256xf32>
    tpu.vector_store %arg26[%c40_219, %c0_220], %331 {strides = array<i32>} : memref<288x256xf32, #tpu.memory_space<vmem>>, vector<8x256xf32>,
    %c0_221 = arith.constant 0 : index
    %c203 = arith.constant 203 : index
    %333 = vector.load %arg25[%c0_221, %c203] : memref<32x512xf32, #tpu.memory_space<vmem>>, vector<8x256xf32>
    %c-5_i32_222 = arith.constant -5 : i32
    %334 = vector.broadcast %c-5_i32_222 : i32 to vector<1x256xi32>
    %335 = arith.addi %16, %334 : vector<1x256xi32>
    %c0_i32_223 = arith.constant 0 : i32
    %336 = vector.broadcast %c0_i32_223 : i32 to vector<1x256xi32>
    %337 = arith.cmpi sge, %335, %336 : vector<1x256xi32>
    %c-5_i32_224 = arith.constant -5 : i32
    %338 = vector.broadcast %c-5_i32_224 : i32 to vector<1x256xi32>
    %339 = arith.addi %16, %338 : vector<1x256xi32>
    %c16_i32_225 = arith.constant 16 : i32
    %340 = vector.broadcast %c16_i32_225 : i32 to vector<1x256xi32>
    %341 = arith.cmpi slt, %339, %340 : vector<1x256xi32>
    %342 = arith.andi %337, %341 : vector<1x256xi1>
    %cst_226 = arith.constant 0.000000e+00 : f32
    %343 = vector.shape_cast %342 : vector<1x256xi1> to vector<1x256xi1>
    %344 = vector.broadcast %343 : vector<1x256xi1> to vector<8x256xi1>
    %345 = vector.broadcast %cst_226 : f32 to vector<8x256xf32>
    %346 = arith.select %344, %333, %345 : vector<8x256xi1>, vector<8x256xf32>
    %c48_227 = arith.constant 48 : index
    %c0_228 = arith.constant 0 : index
    %347 = vector.load %arg26[%c48_227, %c0_228] : memref<288x256xf32, #tpu.memory_space<vmem>>, vector<8x256xf32>
    tpu.vector_store %arg26[%c48_227, %c0_228], %346 {strides = array<i32>} : memref<288x256xf32, #tpu.memory_space<vmem>>, vector<8x256xf32>,
    %c0_229 = arith.constant 0 : index
    %c208 = arith.constant 208 : index
    %348 = vector.load %arg25[%c0_229, %c208] : memref<32x512xf32, #tpu.memory_space<vmem>>, vector<8x256xf32>
    %c56_230 = arith.constant 56 : index
    %c0_231 = arith.constant 0 : index
    %349 = vector.load %arg26[%c56_230, %c0_231] : memref<288x256xf32, #tpu.memory_space<vmem>>, vector<8x256xf32>
    tpu.vector_store %arg26[%c56_230, %c0_231], %348 {strides = array<i32>} : memref<288x256xf32, #tpu.memory_space<vmem>>, vector<8x256xf32>,
    %c0_232 = arith.constant 0 : index
    %c213 = arith.constant 213 : index
    %350 = vector.load %arg25[%c0_232, %c213] : memref<32x512xf32, #tpu.memory_space<vmem>>, vector<8x256xf32>
    %c5_i32_233 = arith.constant 5 : i32
    %351 = vector.broadcast %c5_i32_233 : i32 to vector<1x256xi32>
    %352 = arith.addi %16, %351 : vector<1x256xi32>
    %c0_i32_234 = arith.constant 0 : i32
    %353 = vector.broadcast %c0_i32_234 : i32 to vector<1x256xi32>
    %354 = arith.cmpi sge, %352, %353 : vector<1x256xi32>
    %c5_i32_235 = arith.constant 5 : i32
    %355 = vector.broadcast %c5_i32_235 : i32 to vector<1x256xi32>
    %356 = arith.addi %16, %355 : vector<1x256xi32>
    %c16_i32_236 = arith.constant 16 : i32
    %357 = vector.broadcast %c16_i32_236 : i32 to vector<1x256xi32>
    %358 = arith.cmpi slt, %356, %357 : vector<1x256xi32>
    %359 = arith.andi %354, %358 : vector<1x256xi1>
    %cst_237 = arith.constant 0.000000e+00 : f32
    %360 = vector.shape_cast %359 : vector<1x256xi1> to vector<1x256xi1>
    %361 = vector.broadcast %360 : vector<1x256xi1> to vector<8x256xi1>
    %362 = vector.broadcast %cst_237 : f32 to vector<8x256xf32>
    %363 = arith.select %361, %350, %362 : vector<8x256xi1>, vector<8x256xf32>
    %c64_238 = arith.constant 64 : index
    %c0_239 = arith.constant 0 : index
    %364 = vector.load %arg26[%c64_238, %c0_239] : memref<288x256xf32, #tpu.memory_space<vmem>>, vector<8x256xf32>
    tpu.vector_store %arg26[%c64_238, %c0_239], %363 {strides = array<i32>} : memref<288x256xf32, #tpu.memory_space<vmem>>, vector<8x256xf32>,
    %c0_240 = arith.constant 0 : index
    %c0_241 = arith.constant 0 : index
    %365 = vector.load %arg14[%c0_240, %c0_241] : memref<8x72xf32, #tpu.memory_space<vmem>>, vector<8x72xf32>
    %c0_242 = arith.constant 0 : index
    %c0_243 = arith.constant 0 : index
    %366 = vector.load %arg26[%c0_242, %c0_243] : memref<288x256xf32, #tpu.memory_space<vmem>>, vector<72x256xf32>
    %cst_244 = arith.constant dense<0.000000e+00> : vector<8x256xf32>
    %367 = tpu.matmul %365, %366, %cst_244 {dimension_numbers = #tpu.dot_dimension_numbers<[1], [0], [0], [1], [0, 0, 1, 1], [], []>} : vector<8x72xf32>, vector<72x256xf32>, vector<8x256xf32> -> vector<8x256xf32>
    %c0_245 = arith.constant 0 : index
    %c0_246 = arith.constant 0 : index
    %368 = vector.load %arg15[%c0_245, %c0_246] : memref<8x1xf32, #tpu.memory_space<vmem>>, vector<8x1xf32>
    %369 = vector.broadcast %368 : vector<8x1xf32> to vector<8x256xf32>
    %370 = arith.addf %367, %369 : vector<8x256xf32>
    %c16_247 = arith.constant 16 : index
    %c0_248 = arith.constant 0 : index
    %371 = vector.load %arg27[%c16_247, %c0_248] : memref<32x256xf32, #tpu.memory_space<vmem>>, vector<8x256xf32>
    tpu.vector_store %arg27[%c16_247, %c0_248], %370 {strides = array<i32>} : memref<32x256xf32, #tpu.memory_space<vmem>>, vector<8x256xf32>,
    %372 = vector.extract_strided_slice %27 {offsets = [24, 0], sizes = [8, 256], strides = [1, 1]} : vector<40x256xf32> to vector<8x256xf32>
    %c0_249 = arith.constant 0 : index
    %c128_250 = arith.constant 128 : index
    %373 = vector.load %arg25[%c0_249, %c128_250] : memref<32x512xf32, #tpu.memory_space<vmem>>, vector<8x256xf32>
    tpu.vector_store %arg25[%c0_249, %c128_250], %372 {strides = array<i32>} : memref<32x512xf32, #tpu.memory_space<vmem>>, vector<8x256xf32>,
    %c0_251 = arith.constant 0 : index
    %c125_252 = arith.constant 125 : index
    %374 = vector.load %arg25[%c0_251, %c125_252] : memref<32x512xf32, #tpu.memory_space<vmem>>, vector<8x256xf32>
    %c-3_i32_253 = arith.constant -3 : i32
    %375 = vector.broadcast %c-3_i32_253 : i32 to vector<1x256xi32>
    %376 = arith.addi %16, %375 : vector<1x256xi32>
    %c0_i32_254 = arith.constant 0 : i32
    %377 = vector.broadcast %c0_i32_254 : i32 to vector<1x256xi32>
    %378 = arith.cmpi sge, %376, %377 : vector<1x256xi32>
    %c-3_i32_255 = arith.constant -3 : i32
    %379 = vector.broadcast %c-3_i32_255 : i32 to vector<1x256xi32>
    %380 = arith.addi %16, %379 : vector<1x256xi32>
    %c16_i32_256 = arith.constant 16 : i32
    %381 = vector.broadcast %c16_i32_256 : i32 to vector<1x256xi32>
    %382 = arith.cmpi slt, %380, %381 : vector<1x256xi32>
    %383 = arith.andi %378, %382 : vector<1x256xi1>
    %cst_257 = arith.constant 0.000000e+00 : f32
    %384 = vector.shape_cast %383 : vector<1x256xi1> to vector<1x256xi1>
    %385 = vector.broadcast %384 : vector<1x256xi1> to vector<8x256xi1>
    %386 = vector.broadcast %cst_257 : f32 to vector<8x256xf32>
    %387 = arith.select %385, %374, %386 : vector<8x256xi1>, vector<8x256xf32>
    %c0_258 = arith.constant 0 : index
    %c0_259 = arith.constant 0 : index
    %388 = vector.load %arg26[%c0_258, %c0_259] : memref<288x256xf32, #tpu.memory_space<vmem>>, vector<8x256xf32>
    tpu.vector_store %arg26[%c0_258, %c0_259], %387 {strides = array<i32>} : memref<288x256xf32, #tpu.memory_space<vmem>>, vector<8x256xf32>,
    %c0_260 = arith.constant 0 : index
    %c126_261 = arith.constant 126 : index
    %389 = vector.load %arg25[%c0_260, %c126_261] : memref<32x512xf32, #tpu.memory_space<vmem>>, vector<8x256xf32>
    %c-2_i32_262 = arith.constant -2 : i32
    %390 = vector.broadcast %c-2_i32_262 : i32 to vector<1x256xi32>
    %391 = arith.addi %16, %390 : vector<1x256xi32>
    %c0_i32_263 = arith.constant 0 : i32
    %392 = vector.broadcast %c0_i32_263 : i32 to vector<1x256xi32>
    %393 = arith.cmpi sge, %391, %392 : vector<1x256xi32>
    %c-2_i32_264 = arith.constant -2 : i32
    %394 = vector.broadcast %c-2_i32_264 : i32 to vector<1x256xi32>
    %395 = arith.addi %16, %394 : vector<1x256xi32>
    %c16_i32_265 = arith.constant 16 : i32
    %396 = vector.broadcast %c16_i32_265 : i32 to vector<1x256xi32>
    %397 = arith.cmpi slt, %395, %396 : vector<1x256xi32>
    %398 = arith.andi %393, %397 : vector<1x256xi1>
    %cst_266 = arith.constant 0.000000e+00 : f32
    %399 = vector.shape_cast %398 : vector<1x256xi1> to vector<1x256xi1>
    %400 = vector.broadcast %399 : vector<1x256xi1> to vector<8x256xi1>
    %401 = vector.broadcast %cst_266 : f32 to vector<8x256xf32>
    %402 = arith.select %400, %389, %401 : vector<8x256xi1>, vector<8x256xf32>
    %c8_267 = arith.constant 8 : index
    %c0_268 = arith.constant 0 : index
    %403 = vector.load %arg26[%c8_267, %c0_268] : memref<288x256xf32, #tpu.memory_space<vmem>>, vector<8x256xf32>
    tpu.vector_store %arg26[%c8_267, %c0_268], %402 {strides = array<i32>} : memref<288x256xf32, #tpu.memory_space<vmem>>, vector<8x256xf32>,
    %c0_269 = arith.constant 0 : index
    %c127_270 = arith.constant 127 : index
    %404 = vector.load %arg25[%c0_269, %c127_270] : memref<32x512xf32, #tpu.memory_space<vmem>>, vector<8x256xf32>
    %c-1_i32_271 = arith.constant -1 : i32
    %405 = vector.broadcast %c-1_i32_271 : i32 to vector<1x256xi32>
    %406 = arith.addi %16, %405 : vector<1x256xi32>
    %c0_i32_272 = arith.constant 0 : i32
    %407 = vector.broadcast %c0_i32_272 : i32 to vector<1x256xi32>
    %408 = arith.cmpi sge, %406, %407 : vector<1x256xi32>
    %c-1_i32_273 = arith.constant -1 : i32
    %409 = vector.broadcast %c-1_i32_273 : i32 to vector<1x256xi32>
    %410 = arith.addi %16, %409 : vector<1x256xi32>
    %c16_i32_274 = arith.constant 16 : i32
    %411 = vector.broadcast %c16_i32_274 : i32 to vector<1x256xi32>
    %412 = arith.cmpi slt, %410, %411 : vector<1x256xi32>
    %413 = arith.andi %408, %412 : vector<1x256xi1>
    %cst_275 = arith.constant 0.000000e+00 : f32
    %414 = vector.shape_cast %413 : vector<1x256xi1> to vector<1x256xi1>
    %415 = vector.broadcast %414 : vector<1x256xi1> to vector<8x256xi1>
    %416 = vector.broadcast %cst_275 : f32 to vector<8x256xf32>
    %417 = arith.select %415, %404, %416 : vector<8x256xi1>, vector<8x256xf32>
    %c16_276 = arith.constant 16 : index
    %c0_277 = arith.constant 0 : index
    %418 = vector.load %arg26[%c16_276, %c0_277] : memref<288x256xf32, #tpu.memory_space<vmem>>, vector<8x256xf32>
    tpu.vector_store %arg26[%c16_276, %c0_277], %417 {strides = array<i32>} : memref<288x256xf32, #tpu.memory_space<vmem>>, vector<8x256xf32>,
    %c24_278 = arith.constant 24 : index
    %c0_279 = arith.constant 0 : index
    %419 = vector.load %arg26[%c24_278, %c0_279] : memref<288x256xf32, #tpu.memory_space<vmem>>, vector<8x256xf32>
    tpu.vector_store %arg26[%c24_278, %c0_279], %372 {strides = array<i32>} : memref<288x256xf32, #tpu.memory_space<vmem>>, vector<8x256xf32>,
    %c0_280 = arith.constant 0 : index
    %c129_281 = arith.constant 129 : index
    %420 = vector.load %arg25[%c0_280, %c129_281] : memref<32x512xf32, #tpu.memory_space<vmem>>, vector<8x256xf32>
    %c1_i32_282 = arith.constant 1 : i32
    %421 = vector.broadcast %c1_i32_282 : i32 to vector<1x256xi32>
    %422 = arith.addi %16, %421 : vector<1x256xi32>
    %c0_i32_283 = arith.constant 0 : i32
    %423 = vector.broadcast %c0_i32_283 : i32 to vector<1x256xi32>
    %424 = arith.cmpi sge, %422, %423 : vector<1x256xi32>
    %c1_i32_284 = arith.constant 1 : i32
    %425 = vector.broadcast %c1_i32_284 : i32 to vector<1x256xi32>
    %426 = arith.addi %16, %425 : vector<1x256xi32>
    %c16_i32_285 = arith.constant 16 : i32
    %427 = vector.broadcast %c16_i32_285 : i32 to vector<1x256xi32>
    %428 = arith.cmpi slt, %426, %427 : vector<1x256xi32>
    %429 = arith.andi %424, %428 : vector<1x256xi1>
    %cst_286 = arith.constant 0.000000e+00 : f32
    %430 = vector.shape_cast %429 : vector<1x256xi1> to vector<1x256xi1>
    %431 = vector.broadcast %430 : vector<1x256xi1> to vector<8x256xi1>
    %432 = vector.broadcast %cst_286 : f32 to vector<8x256xf32>
    %433 = arith.select %431, %420, %432 : vector<8x256xi1>, vector<8x256xf32>
    %c32_287 = arith.constant 32 : index
    %c0_288 = arith.constant 0 : index
    %434 = vector.load %arg26[%c32_287, %c0_288] : memref<288x256xf32, #tpu.memory_space<vmem>>, vector<8x256xf32>
    tpu.vector_store %arg26[%c32_287, %c0_288], %433 {strides = array<i32>} : memref<288x256xf32, #tpu.memory_space<vmem>>, vector<8x256xf32>,
    %c0_289 = arith.constant 0 : index
    %c130_290 = arith.constant 130 : index
    %435 = vector.load %arg25[%c0_289, %c130_290] : memref<32x512xf32, #tpu.memory_space<vmem>>, vector<8x256xf32>
    %c2_i32_291 = arith.constant 2 : i32
    %436 = vector.broadcast %c2_i32_291 : i32 to vector<1x256xi32>
    %437 = arith.addi %16, %436 : vector<1x256xi32>
    %c0_i32_292 = arith.constant 0 : i32
    %438 = vector.broadcast %c0_i32_292 : i32 to vector<1x256xi32>
    %439 = arith.cmpi sge, %437, %438 : vector<1x256xi32>
    %c2_i32_293 = arith.constant 2 : i32
    %440 = vector.broadcast %c2_i32_293 : i32 to vector<1x256xi32>
    %441 = arith.addi %16, %440 : vector<1x256xi32>
    %c16_i32_294 = arith.constant 16 : i32
    %442 = vector.broadcast %c16_i32_294 : i32 to vector<1x256xi32>
    %443 = arith.cmpi slt, %441, %442 : vector<1x256xi32>
    %444 = arith.andi %439, %443 : vector<1x256xi1>
    %cst_295 = arith.constant 0.000000e+00 : f32
    %445 = vector.shape_cast %444 : vector<1x256xi1> to vector<1x256xi1>
    %446 = vector.broadcast %445 : vector<1x256xi1> to vector<8x256xi1>
    %447 = vector.broadcast %cst_295 : f32 to vector<8x256xf32>
    %448 = arith.select %446, %435, %447 : vector<8x256xi1>, vector<8x256xf32>
    %c40_296 = arith.constant 40 : index
    %c0_297 = arith.constant 0 : index
    %449 = vector.load %arg26[%c40_296, %c0_297] : memref<288x256xf32, #tpu.memory_space<vmem>>, vector<8x256xf32>
    tpu.vector_store %arg26[%c40_296, %c0_297], %448 {strides = array<i32>} : memref<288x256xf32, #tpu.memory_space<vmem>>, vector<8x256xf32>,
    %c0_298 = arith.constant 0 : index
    %c131_299 = arith.constant 131 : index
    %450 = vector.load %arg25[%c0_298, %c131_299] : memref<32x512xf32, #tpu.memory_space<vmem>>, vector<8x256xf32>
    %c3_i32_300 = arith.constant 3 : i32
    %451 = vector.broadcast %c3_i32_300 : i32 to vector<1x256xi32>
    %452 = arith.addi %16, %451 : vector<1x256xi32>
    %c0_i32_301 = arith.constant 0 : i32
    %453 = vector.broadcast %c0_i32_301 : i32 to vector<1x256xi32>
    %454 = arith.cmpi sge, %452, %453 : vector<1x256xi32>
    %c3_i32_302 = arith.constant 3 : i32
    %455 = vector.broadcast %c3_i32_302 : i32 to vector<1x256xi32>
    %456 = arith.addi %16, %455 : vector<1x256xi32>
    %c16_i32_303 = arith.constant 16 : i32
    %457 = vector.broadcast %c16_i32_303 : i32 to vector<1x256xi32>
    %458 = arith.cmpi slt, %456, %457 : vector<1x256xi32>
    %459 = arith.andi %454, %458 : vector<1x256xi1>
    %cst_304 = arith.constant 0.000000e+00 : f32
    %460 = vector.shape_cast %459 : vector<1x256xi1> to vector<1x256xi1>
    %461 = vector.broadcast %460 : vector<1x256xi1> to vector<8x256xi1>
    %462 = vector.broadcast %cst_304 : f32 to vector<8x256xf32>
    %463 = arith.select %461, %450, %462 : vector<8x256xi1>, vector<8x256xf32>
    %c48_305 = arith.constant 48 : index
    %c0_306 = arith.constant 0 : index
    %464 = vector.load %arg26[%c48_305, %c0_306] : memref<288x256xf32, #tpu.memory_space<vmem>>, vector<8x256xf32>
    tpu.vector_store %arg26[%c48_305, %c0_306], %463 {strides = array<i32>} : memref<288x256xf32, #tpu.memory_space<vmem>>, vector<8x256xf32>,
    %c0_307 = arith.constant 0 : index
    %c0_308 = arith.constant 0 : index
    %465 = vector.load %arg16[%c0_307, %c0_308] : memref<8x56xf32, #tpu.memory_space<vmem>>, vector<8x56xf32>
    %c0_309 = arith.constant 0 : index
    %c0_310 = arith.constant 0 : index
    %466 = vector.load %arg26[%c0_309, %c0_310] : memref<288x256xf32, #tpu.memory_space<vmem>>, vector<56x256xf32>
    %cst_311 = arith.constant dense<0.000000e+00> : vector<8x256xf32>
    %467 = tpu.matmul %465, %466, %cst_311 {dimension_numbers = #tpu.dot_dimension_numbers<[1], [0], [0], [1], [0, 0, 1, 1], [], []>} : vector<8x56xf32>, vector<56x256xf32>, vector<8x256xf32> -> vector<8x256xf32>
    %c0_312 = arith.constant 0 : index
    %c0_313 = arith.constant 0 : index
    %468 = vector.load %arg17[%c0_312, %c0_313] : memref<8x1xf32, #tpu.memory_space<vmem>>, vector<8x1xf32>
    %469 = vector.broadcast %468 : vector<8x1xf32> to vector<8x256xf32>
    %470 = arith.addf %467, %469 : vector<8x256xf32>
    %c0_314 = arith.constant 0 : index
    %c128_315 = arith.constant 128 : index
    %471 = vector.load %arg25[%c0_314, %c128_315] : memref<32x512xf32, #tpu.memory_space<vmem>>, vector<8x256xf32>
    tpu.vector_store %arg25[%c0_314, %c128_315], %470 {strides = array<i32>} : memref<32x512xf32, #tpu.memory_space<vmem>>, vector<8x256xf32>,
    %c0_316 = arith.constant 0 : index
    %c80_317 = arith.constant 80 : index
    %472 = vector.load %arg25[%c0_316, %c80_317] : memref<32x512xf32, #tpu.memory_space<vmem>>, vector<8x256xf32>
    %c0_318 = arith.constant 0 : index
    %c0_319 = arith.constant 0 : index
    %473 = vector.load %arg26[%c0_318, %c0_319] : memref<288x256xf32, #tpu.memory_space<vmem>>, vector<8x256xf32>
    tpu.vector_store %arg26[%c0_318, %c0_319], %472 {strides = array<i32>} : memref<288x256xf32, #tpu.memory_space<vmem>>, vector<8x256xf32>,
    %c0_320 = arith.constant 0 : index
    %c96_321 = arith.constant 96 : index
    %474 = vector.load %arg25[%c0_320, %c96_321] : memref<32x512xf32, #tpu.memory_space<vmem>>, vector<8x256xf32>
    %c8_322 = arith.constant 8 : index
    %c0_323 = arith.constant 0 : index
    %475 = vector.load %arg26[%c8_322, %c0_323] : memref<288x256xf32, #tpu.memory_space<vmem>>, vector<8x256xf32>
    tpu.vector_store %arg26[%c8_322, %c0_323], %474 {strides = array<i32>} : memref<288x256xf32, #tpu.memory_space<vmem>>, vector<8x256xf32>,
    %c0_324 = arith.constant 0 : index
    %c112_325 = arith.constant 112 : index
    %476 = vector.load %arg25[%c0_324, %c112_325] : memref<32x512xf32, #tpu.memory_space<vmem>>, vector<8x256xf32>
    %c16_326 = arith.constant 16 : index
    %c0_327 = arith.constant 0 : index
    %477 = vector.load %arg26[%c16_326, %c0_327] : memref<288x256xf32, #tpu.memory_space<vmem>>, vector<8x256xf32>
    tpu.vector_store %arg26[%c16_326, %c0_327], %476 {strides = array<i32>} : memref<288x256xf32, #tpu.memory_space<vmem>>, vector<8x256xf32>,
    %c24_328 = arith.constant 24 : index
    %c0_329 = arith.constant 0 : index
    %478 = vector.load %arg26[%c24_328, %c0_329] : memref<288x256xf32, #tpu.memory_space<vmem>>, vector<8x256xf32>
    tpu.vector_store %arg26[%c24_328, %c0_329], %470 {strides = array<i32>} : memref<288x256xf32, #tpu.memory_space<vmem>>, vector<8x256xf32>,
    %c0_330 = arith.constant 0 : index
    %c144_331 = arith.constant 144 : index
    %479 = vector.load %arg25[%c0_330, %c144_331] : memref<32x512xf32, #tpu.memory_space<vmem>>, vector<8x256xf32>
    %c32_332 = arith.constant 32 : index
    %c0_333 = arith.constant 0 : index
    %480 = vector.load %arg26[%c32_332, %c0_333] : memref<288x256xf32, #tpu.memory_space<vmem>>, vector<8x256xf32>
    tpu.vector_store %arg26[%c32_332, %c0_333], %479 {strides = array<i32>} : memref<288x256xf32, #tpu.memory_space<vmem>>, vector<8x256xf32>,
    %c0_334 = arith.constant 0 : index
    %c160_335 = arith.constant 160 : index
    %481 = vector.load %arg25[%c0_334, %c160_335] : memref<32x512xf32, #tpu.memory_space<vmem>>, vector<8x256xf32>
    %c40_336 = arith.constant 40 : index
    %c0_337 = arith.constant 0 : index
    %482 = vector.load %arg26[%c40_336, %c0_337] : memref<288x256xf32, #tpu.memory_space<vmem>>, vector<8x256xf32>
    tpu.vector_store %arg26[%c40_336, %c0_337], %481 {strides = array<i32>} : memref<288x256xf32, #tpu.memory_space<vmem>>, vector<8x256xf32>,
    %c0_338 = arith.constant 0 : index
    %c176_339 = arith.constant 176 : index
    %483 = vector.load %arg25[%c0_338, %c176_339] : memref<32x512xf32, #tpu.memory_space<vmem>>, vector<8x256xf32>
    %c48_340 = arith.constant 48 : index
    %c0_341 = arith.constant 0 : index
    %484 = vector.load %arg26[%c48_340, %c0_341] : memref<288x256xf32, #tpu.memory_space<vmem>>, vector<8x256xf32>
    tpu.vector_store %arg26[%c48_340, %c0_341], %483 {strides = array<i32>} : memref<288x256xf32, #tpu.memory_space<vmem>>, vector<8x256xf32>,
    %c0_342 = arith.constant 0 : index
    %c0_343 = arith.constant 0 : index
    %485 = vector.load %arg18[%c0_342, %c0_343] : memref<8x56xf32, #tpu.memory_space<vmem>>, vector<8x56xf32>
    %c0_344 = arith.constant 0 : index
    %c0_345 = arith.constant 0 : index
    %486 = vector.load %arg26[%c0_344, %c0_345] : memref<288x256xf32, #tpu.memory_space<vmem>>, vector<56x256xf32>
    %cst_346 = arith.constant dense<0.000000e+00> : vector<8x256xf32>
    %487 = tpu.matmul %485, %486, %cst_346 {dimension_numbers = #tpu.dot_dimension_numbers<[1], [0], [0], [1], [0, 0, 1, 1], [], []>} : vector<8x56xf32>, vector<56x256xf32>, vector<8x256xf32> -> vector<8x256xf32>
    %c0_347 = arith.constant 0 : index
    %c0_348 = arith.constant 0 : index
    %488 = vector.load %arg19[%c0_347, %c0_348] : memref<8x1xf32, #tpu.memory_space<vmem>>, vector<8x1xf32>
    %489 = vector.broadcast %488 : vector<8x1xf32> to vector<8x256xf32>
    %490 = arith.addf %487, %489 : vector<8x256xf32>
    %c0_349 = arith.constant 0 : index
    %c128_350 = arith.constant 128 : index
    %491 = vector.load %arg25[%c0_349, %c128_350] : memref<32x512xf32, #tpu.memory_space<vmem>>, vector<8x256xf32>
    tpu.vector_store %arg25[%c0_349, %c128_350], %490 {strides = array<i32>} : memref<32x512xf32, #tpu.memory_space<vmem>>, vector<8x256xf32>,
    %c0_351 = arith.constant 0 : index
    %c9 = arith.constant 9 : index
    %492 = vector.load %arg25[%c0_351, %c9] : memref<32x512xf32, #tpu.memory_space<vmem>>, vector<8x256xf32>
    %c-7_i32 = arith.constant -7 : i32
    %493 = vector.broadcast %c-7_i32 : i32 to vector<1x256xi32>
    %494 = arith.addi %16, %493 : vector<1x256xi32>
    %c0_i32_352 = arith.constant 0 : i32
    %495 = vector.broadcast %c0_i32_352 : i32 to vector<1x256xi32>
    %496 = arith.cmpi sge, %494, %495 : vector<1x256xi32>
    %c-7_i32_353 = arith.constant -7 : i32
    %497 = vector.broadcast %c-7_i32_353 : i32 to vector<1x256xi32>
    %498 = arith.addi %16, %497 : vector<1x256xi32>
    %c16_i32_354 = arith.constant 16 : i32
    %499 = vector.broadcast %c16_i32_354 : i32 to vector<1x256xi32>
    %500 = arith.cmpi slt, %498, %499 : vector<1x256xi32>
    %501 = arith.andi %496, %500 : vector<1x256xi1>
    %cst_355 = arith.constant 0.000000e+00 : f32
    %502 = vector.shape_cast %501 : vector<1x256xi1> to vector<1x256xi1>
    %503 = vector.broadcast %502 : vector<1x256xi1> to vector<8x256xi1>
    %504 = vector.broadcast %cst_355 : f32 to vector<8x256xf32>
    %505 = arith.select %503, %492, %504 : vector<8x256xi1>, vector<8x256xf32>
    %c0_356 = arith.constant 0 : index
    %c0_357 = arith.constant 0 : index
    %506 = vector.load %arg26[%c0_356, %c0_357] : memref<288x256xf32, #tpu.memory_space<vmem>>, vector<8x256xf32>
    tpu.vector_store %arg26[%c0_356, %c0_357], %505 {strides = array<i32>} : memref<288x256xf32, #tpu.memory_space<vmem>>, vector<8x256xf32>,
    %c0_358 = arith.constant 0 : index
    %c16_359 = arith.constant 16 : index
    %507 = vector.load %arg25[%c0_358, %c16_359] : memref<32x512xf32, #tpu.memory_space<vmem>>, vector<8x256xf32>
    %c8_360 = arith.constant 8 : index
    %c0_361 = arith.constant 0 : index
    %508 = vector.load %arg26[%c8_360, %c0_361] : memref<288x256xf32, #tpu.memory_space<vmem>>, vector<8x256xf32>
    tpu.vector_store %arg26[%c8_360, %c0_361], %507 {strides = array<i32>} : memref<288x256xf32, #tpu.memory_space<vmem>>, vector<8x256xf32>,
    %c0_362 = arith.constant 0 : index
    %c23 = arith.constant 23 : index
    %509 = vector.load %arg25[%c0_362, %c23] : memref<32x512xf32, #tpu.memory_space<vmem>>, vector<8x256xf32>
    %c7_i32 = arith.constant 7 : i32
    %510 = vector.broadcast %c7_i32 : i32 to vector<1x256xi32>
    %511 = arith.addi %16, %510 : vector<1x256xi32>
    %c0_i32_363 = arith.constant 0 : i32
    %512 = vector.broadcast %c0_i32_363 : i32 to vector<1x256xi32>
    %513 = arith.cmpi sge, %511, %512 : vector<1x256xi32>
    %c7_i32_364 = arith.constant 7 : i32
    %514 = vector.broadcast %c7_i32_364 : i32 to vector<1x256xi32>
    %515 = arith.addi %16, %514 : vector<1x256xi32>
    %c16_i32_365 = arith.constant 16 : i32
    %516 = vector.broadcast %c16_i32_365 : i32 to vector<1x256xi32>
    %517 = arith.cmpi slt, %515, %516 : vector<1x256xi32>
    %518 = arith.andi %513, %517 : vector<1x256xi1>
    %cst_366 = arith.constant 0.000000e+00 : f32
    %519 = vector.shape_cast %518 : vector<1x256xi1> to vector<1x256xi1>
    %520 = vector.broadcast %519 : vector<1x256xi1> to vector<8x256xi1>
    %521 = vector.broadcast %cst_366 : f32 to vector<8x256xf32>
    %522 = arith.select %520, %509, %521 : vector<8x256xi1>, vector<8x256xf32>
    %c16_367 = arith.constant 16 : index
    %c0_368 = arith.constant 0 : index
    %523 = vector.load %arg26[%c16_367, %c0_368] : memref<288x256xf32, #tpu.memory_space<vmem>>, vector<8x256xf32>
    tpu.vector_store %arg26[%c16_367, %c0_368], %522 {strides = array<i32>} : memref<288x256xf32, #tpu.memory_space<vmem>>, vector<8x256xf32>,
    %c0_369 = arith.constant 0 : index
    %c121 = arith.constant 121 : index
    %524 = vector.load %arg25[%c0_369, %c121] : memref<32x512xf32, #tpu.memory_space<vmem>>, vector<8x256xf32>
    %c-7_i32_370 = arith.constant -7 : i32
    %525 = vector.broadcast %c-7_i32_370 : i32 to vector<1x256xi32>
    %526 = arith.addi %16, %525 : vector<1x256xi32>
    %c0_i32_371 = arith.constant 0 : i32
    %527 = vector.broadcast %c0_i32_371 : i32 to vector<1x256xi32>
    %528 = arith.cmpi sge, %526, %527 : vector<1x256xi32>
    %c-7_i32_372 = arith.constant -7 : i32
    %529 = vector.broadcast %c-7_i32_372 : i32 to vector<1x256xi32>
    %530 = arith.addi %16, %529 : vector<1x256xi32>
    %c16_i32_373 = arith.constant 16 : i32
    %531 = vector.broadcast %c16_i32_373 : i32 to vector<1x256xi32>
    %532 = arith.cmpi slt, %530, %531 : vector<1x256xi32>
    %533 = arith.andi %528, %532 : vector<1x256xi1>
    %cst_374 = arith.constant 0.000000e+00 : f32
    %534 = vector.shape_cast %533 : vector<1x256xi1> to vector<1x256xi1>
    %535 = vector.broadcast %534 : vector<1x256xi1> to vector<8x256xi1>
    %536 = vector.broadcast %cst_374 : f32 to vector<8x256xf32>
    %537 = arith.select %535, %524, %536 : vector<8x256xi1>, vector<8x256xf32>
    %c24_375 = arith.constant 24 : index
    %c0_376 = arith.constant 0 : index
    %538 = vector.load %arg26[%c24_375, %c0_376] : memref<288x256xf32, #tpu.memory_space<vmem>>, vector<8x256xf32>
    tpu.vector_store %arg26[%c24_375, %c0_376], %537 {strides = array<i32>} : memref<288x256xf32, #tpu.memory_space<vmem>>, vector<8x256xf32>,
    %c32_377 = arith.constant 32 : index
    %c0_378 = arith.constant 0 : index
    %539 = vector.load %arg26[%c32_377, %c0_378] : memref<288x256xf32, #tpu.memory_space<vmem>>, vector<8x256xf32>
    tpu.vector_store %arg26[%c32_377, %c0_378], %490 {strides = array<i32>} : memref<288x256xf32, #tpu.memory_space<vmem>>, vector<8x256xf32>,
    %c0_379 = arith.constant 0 : index
    %c135 = arith.constant 135 : index
    %540 = vector.load %arg25[%c0_379, %c135] : memref<32x512xf32, #tpu.memory_space<vmem>>, vector<8x256xf32>
    %c7_i32_380 = arith.constant 7 : i32
    %541 = vector.broadcast %c7_i32_380 : i32 to vector<1x256xi32>
    %542 = arith.addi %16, %541 : vector<1x256xi32>
    %c0_i32_381 = arith.constant 0 : i32
    %543 = vector.broadcast %c0_i32_381 : i32 to vector<1x256xi32>
    %544 = arith.cmpi sge, %542, %543 : vector<1x256xi32>
    %c7_i32_382 = arith.constant 7 : i32
    %545 = vector.broadcast %c7_i32_382 : i32 to vector<1x256xi32>
    %546 = arith.addi %16, %545 : vector<1x256xi32>
    %c16_i32_383 = arith.constant 16 : i32
    %547 = vector.broadcast %c16_i32_383 : i32 to vector<1x256xi32>
    %548 = arith.cmpi slt, %546, %547 : vector<1x256xi32>
    %549 = arith.andi %544, %548 : vector<1x256xi1>
    %cst_384 = arith.constant 0.000000e+00 : f32
    %550 = vector.shape_cast %549 : vector<1x256xi1> to vector<1x256xi1>
    %551 = vector.broadcast %550 : vector<1x256xi1> to vector<8x256xi1>
    %552 = vector.broadcast %cst_384 : f32 to vector<8x256xf32>
    %553 = arith.select %551, %540, %552 : vector<8x256xi1>, vector<8x256xf32>
    %c40_385 = arith.constant 40 : index
    %c0_386 = arith.constant 0 : index
    %554 = vector.load %arg26[%c40_385, %c0_386] : memref<288x256xf32, #tpu.memory_space<vmem>>, vector<8x256xf32>
    tpu.vector_store %arg26[%c40_385, %c0_386], %553 {strides = array<i32>} : memref<288x256xf32, #tpu.memory_space<vmem>>, vector<8x256xf32>,
    %c0_387 = arith.constant 0 : index
    %c233 = arith.constant 233 : index
    %555 = vector.load %arg25[%c0_387, %c233] : memref<32x512xf32, #tpu.memory_space<vmem>>, vector<8x256xf32>
    %c-7_i32_388 = arith.constant -7 : i32
    %556 = vector.broadcast %c-7_i32_388 : i32 to vector<1x256xi32>
    %557 = arith.addi %16, %556 : vector<1x256xi32>
    %c0_i32_389 = arith.constant 0 : i32
    %558 = vector.broadcast %c0_i32_389 : i32 to vector<1x256xi32>
    %559 = arith.cmpi sge, %557, %558 : vector<1x256xi32>
    %c-7_i32_390 = arith.constant -7 : i32
    %560 = vector.broadcast %c-7_i32_390 : i32 to vector<1x256xi32>
    %561 = arith.addi %16, %560 : vector<1x256xi32>
    %c16_i32_391 = arith.constant 16 : i32
    %562 = vector.broadcast %c16_i32_391 : i32 to vector<1x256xi32>
    %563 = arith.cmpi slt, %561, %562 : vector<1x256xi32>
    %564 = arith.andi %559, %563 : vector<1x256xi1>
    %cst_392 = arith.constant 0.000000e+00 : f32
    %565 = vector.shape_cast %564 : vector<1x256xi1> to vector<1x256xi1>
    %566 = vector.broadcast %565 : vector<1x256xi1> to vector<8x256xi1>
    %567 = vector.broadcast %cst_392 : f32 to vector<8x256xf32>
    %568 = arith.select %566, %555, %567 : vector<8x256xi1>, vector<8x256xf32>
    %c48_393 = arith.constant 48 : index
    %c0_394 = arith.constant 0 : index
    %569 = vector.load %arg26[%c48_393, %c0_394] : memref<288x256xf32, #tpu.memory_space<vmem>>, vector<8x256xf32>
    tpu.vector_store %arg26[%c48_393, %c0_394], %568 {strides = array<i32>} : memref<288x256xf32, #tpu.memory_space<vmem>>, vector<8x256xf32>,
    %c0_395 = arith.constant 0 : index
    %c240 = arith.constant 240 : index
    %570 = vector.load %arg25[%c0_395, %c240] : memref<32x512xf32, #tpu.memory_space<vmem>>, vector<8x256xf32>
    %c56_396 = arith.constant 56 : index
    %c0_397 = arith.constant 0 : index
    %571 = vector.load %arg26[%c56_396, %c0_397] : memref<288x256xf32, #tpu.memory_space<vmem>>, vector<8x256xf32>
    tpu.vector_store %arg26[%c56_396, %c0_397], %570 {strides = array<i32>} : memref<288x256xf32, #tpu.memory_space<vmem>>, vector<8x256xf32>,
    %c0_398 = arith.constant 0 : index
    %c247 = arith.constant 247 : index
    %572 = vector.load %arg25[%c0_398, %c247] : memref<32x512xf32, #tpu.memory_space<vmem>>, vector<8x256xf32>
    %c7_i32_399 = arith.constant 7 : i32
    %573 = vector.broadcast %c7_i32_399 : i32 to vector<1x256xi32>
    %574 = arith.addi %16, %573 : vector<1x256xi32>
    %c0_i32_400 = arith.constant 0 : i32
    %575 = vector.broadcast %c0_i32_400 : i32 to vector<1x256xi32>
    %576 = arith.cmpi sge, %574, %575 : vector<1x256xi32>
    %c7_i32_401 = arith.constant 7 : i32
    %577 = vector.broadcast %c7_i32_401 : i32 to vector<1x256xi32>
    %578 = arith.addi %16, %577 : vector<1x256xi32>
    %c16_i32_402 = arith.constant 16 : i32
    %579 = vector.broadcast %c16_i32_402 : i32 to vector<1x256xi32>
    %580 = arith.cmpi slt, %578, %579 : vector<1x256xi32>
    %581 = arith.andi %576, %580 : vector<1x256xi1>
    %cst_403 = arith.constant 0.000000e+00 : f32
    %582 = vector.shape_cast %581 : vector<1x256xi1> to vector<1x256xi1>
    %583 = vector.broadcast %582 : vector<1x256xi1> to vector<8x256xi1>
    %584 = vector.broadcast %cst_403 : f32 to vector<8x256xf32>
    %585 = arith.select %583, %572, %584 : vector<8x256xi1>, vector<8x256xf32>
    %c64_404 = arith.constant 64 : index
    %c0_405 = arith.constant 0 : index
    %586 = vector.load %arg26[%c64_404, %c0_405] : memref<288x256xf32, #tpu.memory_space<vmem>>, vector<8x256xf32>
    tpu.vector_store %arg26[%c64_404, %c0_405], %585 {strides = array<i32>} : memref<288x256xf32, #tpu.memory_space<vmem>>, vector<8x256xf32>,
    %c0_406 = arith.constant 0 : index
    %c0_407 = arith.constant 0 : index
    %587 = vector.load %arg20[%c0_406, %c0_407] : memref<8x72xf32, #tpu.memory_space<vmem>>, vector<8x72xf32>
    %c0_408 = arith.constant 0 : index
    %c0_409 = arith.constant 0 : index
    %588 = vector.load %arg26[%c0_408, %c0_409] : memref<288x256xf32, #tpu.memory_space<vmem>>, vector<72x256xf32>
    %cst_410 = arith.constant dense<0.000000e+00> : vector<8x256xf32>
    %589 = tpu.matmul %587, %588, %cst_410 {dimension_numbers = #tpu.dot_dimension_numbers<[1], [0], [0], [1], [0, 0, 1, 1], [], []>} : vector<8x72xf32>, vector<72x256xf32>, vector<8x256xf32> -> vector<8x256xf32>
    %c0_411 = arith.constant 0 : index
    %c0_412 = arith.constant 0 : index
    %590 = vector.load %arg21[%c0_411, %c0_412] : memref<8x1xf32, #tpu.memory_space<vmem>>, vector<8x1xf32>
    %591 = vector.broadcast %590 : vector<8x1xf32> to vector<8x256xf32>
    %592 = arith.addf %589, %591 : vector<8x256xf32>
    %c24_413 = arith.constant 24 : index
    %c0_414 = arith.constant 0 : index
    %593 = vector.load %arg27[%c24_413, %c0_414] : memref<32x256xf32, #tpu.memory_space<vmem>>, vector<8x256xf32>
    tpu.vector_store %arg27[%c24_413, %c0_414], %592 {strides = array<i32>} : memref<32x256xf32, #tpu.memory_space<vmem>>, vector<8x256xf32>,
    %594 = vector.extract_strided_slice %27 {offsets = [32, 0], sizes = [8, 256], strides = [1, 1]} : vector<40x256xf32> to vector<8x256xf32>
    %c0_415 = arith.constant 0 : index
    %c0_416 = arith.constant 0 : index
    %595 = vector.load %arg27[%c0_415, %c0_416] : memref<32x256xf32, #tpu.memory_space<vmem>>, vector<32x256xf32>
    %c0_417 = arith.constant 0 : index
    %c128_418 = arith.constant 128 : index
    %596 = vector.load %arg25[%c0_417, %c128_418] : memref<32x512xf32, #tpu.memory_space<vmem>>, vector<32x256xf32>
    tpu.vector_store %arg25[%c0_417, %c128_418], %595 {strides = array<i32>} : memref<32x512xf32, #tpu.memory_space<vmem>>, vector<32x256xf32>,
    %c0_419 = arith.constant 0 : index
    %c111 = arith.constant 111 : index
    %597 = vector.load %arg25[%c0_419, %c111] : memref<32x512xf32, #tpu.memory_space<vmem>>, vector<32x256xf32>
    %c-1_i32_420 = arith.constant -1 : i32
    %598 = vector.broadcast %c-1_i32_420 : i32 to vector<1x256xi32>
    %599 = arith.addi %16, %598 : vector<1x256xi32>
    %c0_i32_421 = arith.constant 0 : i32
    %600 = vector.broadcast %c0_i32_421 : i32 to vector<1x256xi32>
    %601 = arith.cmpi sge, %599, %600 : vector<1x256xi32>
    %c-1_i32_422 = arith.constant -1 : i32
    %602 = vector.broadcast %c-1_i32_422 : i32 to vector<1x256xi32>
    %603 = arith.addi %16, %602 : vector<1x256xi32>
    %c16_i32_423 = arith.constant 16 : i32
    %604 = vector.broadcast %c16_i32_423 : i32 to vector<1x256xi32>
    %605 = arith.cmpi slt, %603, %604 : vector<1x256xi32>
    %606 = arith.andi %601, %605 : vector<1x256xi1>
    %cst_424 = arith.constant 0.000000e+00 : f32
    %607 = vector.shape_cast %606 : vector<1x256xi1> to vector<1x256xi1>
    %608 = vector.broadcast %607 : vector<1x256xi1> to vector<32x256xi1>
    %609 = vector.broadcast %cst_424 : f32 to vector<32x256xf32>
    %610 = arith.select %608, %597, %609 : vector<32x256xi1>, vector<32x256xf32>
    %c0_425 = arith.constant 0 : index
    %c0_426 = arith.constant 0 : index
    %611 = vector.load %arg26[%c0_425, %c0_426] : memref<288x256xf32, #tpu.memory_space<vmem>>, vector<32x256xf32>
    tpu.vector_store %arg26[%c0_425, %c0_426], %610 {strides = array<i32>} : memref<288x256xf32, #tpu.memory_space<vmem>>, vector<32x256xf32>,
    %c0_427 = arith.constant 0 : index
    %c112_428 = arith.constant 112 : index
    %612 = vector.load %arg25[%c0_427, %c112_428] : memref<32x512xf32, #tpu.memory_space<vmem>>, vector<32x256xf32>
    %c32_429 = arith.constant 32 : index
    %c0_430 = arith.constant 0 : index
    %613 = vector.load %arg26[%c32_429, %c0_430] : memref<288x256xf32, #tpu.memory_space<vmem>>, vector<32x256xf32>
    tpu.vector_store %arg26[%c32_429, %c0_430], %612 {strides = array<i32>} : memref<288x256xf32, #tpu.memory_space<vmem>>, vector<32x256xf32>,
    %c0_431 = arith.constant 0 : index
    %c113 = arith.constant 113 : index
    %614 = vector.load %arg25[%c0_431, %c113] : memref<32x512xf32, #tpu.memory_space<vmem>>, vector<32x256xf32>
    %c1_i32_432 = arith.constant 1 : i32
    %615 = vector.broadcast %c1_i32_432 : i32 to vector<1x256xi32>
    %616 = arith.addi %16, %615 : vector<1x256xi32>
    %c0_i32_433 = arith.constant 0 : i32
    %617 = vector.broadcast %c0_i32_433 : i32 to vector<1x256xi32>
    %618 = arith.cmpi sge, %616, %617 : vector<1x256xi32>
    %c1_i32_434 = arith.constant 1 : i32
    %619 = vector.broadcast %c1_i32_434 : i32 to vector<1x256xi32>
    %620 = arith.addi %16, %619 : vector<1x256xi32>
    %c16_i32_435 = arith.constant 16 : i32
    %621 = vector.broadcast %c16_i32_435 : i32 to vector<1x256xi32>
    %622 = arith.cmpi slt, %620, %621 : vector<1x256xi32>
    %623 = arith.andi %618, %622 : vector<1x256xi1>
    %cst_436 = arith.constant 0.000000e+00 : f32
    %624 = vector.shape_cast %623 : vector<1x256xi1> to vector<1x256xi1>
    %625 = vector.broadcast %624 : vector<1x256xi1> to vector<32x256xi1>
    %626 = vector.broadcast %cst_436 : f32 to vector<32x256xf32>
    %627 = arith.select %625, %614, %626 : vector<32x256xi1>, vector<32x256xf32>
    %c64_437 = arith.constant 64 : index
    %c0_438 = arith.constant 0 : index
    %628 = vector.load %arg26[%c64_437, %c0_438] : memref<288x256xf32, #tpu.memory_space<vmem>>, vector<32x256xf32>
    tpu.vector_store %arg26[%c64_437, %c0_438], %627 {strides = array<i32>} : memref<288x256xf32, #tpu.memory_space<vmem>>, vector<32x256xf32>,
    %c0_439 = arith.constant 0 : index
    %c127_440 = arith.constant 127 : index
    %629 = vector.load %arg25[%c0_439, %c127_440] : memref<32x512xf32, #tpu.memory_space<vmem>>, vector<32x256xf32>
    %c-1_i32_441 = arith.constant -1 : i32
    %630 = vector.broadcast %c-1_i32_441 : i32 to vector<1x256xi32>
    %631 = arith.addi %16, %630 : vector<1x256xi32>
    %c0_i32_442 = arith.constant 0 : i32
    %632 = vector.broadcast %c0_i32_442 : i32 to vector<1x256xi32>
    %633 = arith.cmpi sge, %631, %632 : vector<1x256xi32>
    %c-1_i32_443 = arith.constant -1 : i32
    %634 = vector.broadcast %c-1_i32_443 : i32 to vector<1x256xi32>
    %635 = arith.addi %16, %634 : vector<1x256xi32>
    %c16_i32_444 = arith.constant 16 : i32
    %636 = vector.broadcast %c16_i32_444 : i32 to vector<1x256xi32>
    %637 = arith.cmpi slt, %635, %636 : vector<1x256xi32>
    %638 = arith.andi %633, %637 : vector<1x256xi1>
    %cst_445 = arith.constant 0.000000e+00 : f32
    %639 = vector.shape_cast %638 : vector<1x256xi1> to vector<1x256xi1>
    %640 = vector.broadcast %639 : vector<1x256xi1> to vector<32x256xi1>
    %641 = vector.broadcast %cst_445 : f32 to vector<32x256xf32>
    %642 = arith.select %640, %629, %641 : vector<32x256xi1>, vector<32x256xf32>
    %c96_446 = arith.constant 96 : index
    %c0_447 = arith.constant 0 : index
    %643 = vector.load %arg26[%c96_446, %c0_447] : memref<288x256xf32, #tpu.memory_space<vmem>>, vector<32x256xf32>
    tpu.vector_store %arg26[%c96_446, %c0_447], %642 {strides = array<i32>} : memref<288x256xf32, #tpu.memory_space<vmem>>, vector<32x256xf32>,
    %c128_448 = arith.constant 128 : index
    %c0_449 = arith.constant 0 : index
    %644 = vector.load %arg26[%c128_448, %c0_449] : memref<288x256xf32, #tpu.memory_space<vmem>>, vector<32x256xf32>
    tpu.vector_store %arg26[%c128_448, %c0_449], %595 {strides = array<i32>} : memref<288x256xf32, #tpu.memory_space<vmem>>, vector<32x256xf32>,
    %c0_450 = arith.constant 0 : index
    %c129_451 = arith.constant 129 : index
    %645 = vector.load %arg25[%c0_450, %c129_451] : memref<32x512xf32, #tpu.memory_space<vmem>>, vector<32x256xf32>
    %c1_i32_452 = arith.constant 1 : i32
    %646 = vector.broadcast %c1_i32_452 : i32 to vector<1x256xi32>
    %647 = arith.addi %16, %646 : vector<1x256xi32>
    %c0_i32_453 = arith.constant 0 : i32
    %648 = vector.broadcast %c0_i32_453 : i32 to vector<1x256xi32>
    %649 = arith.cmpi sge, %647, %648 : vector<1x256xi32>
    %c1_i32_454 = arith.constant 1 : i32
    %650 = vector.broadcast %c1_i32_454 : i32 to vector<1x256xi32>
    %651 = arith.addi %16, %650 : vector<1x256xi32>
    %c16_i32_455 = arith.constant 16 : i32
    %652 = vector.broadcast %c16_i32_455 : i32 to vector<1x256xi32>
    %653 = arith.cmpi slt, %651, %652 : vector<1x256xi32>
    %654 = arith.andi %649, %653 : vector<1x256xi1>
    %cst_456 = arith.constant 0.000000e+00 : f32
    %655 = vector.shape_cast %654 : vector<1x256xi1> to vector<1x256xi1>
    %656 = vector.broadcast %655 : vector<1x256xi1> to vector<32x256xi1>
    %657 = vector.broadcast %cst_456 : f32 to vector<32x256xf32>
    %658 = arith.select %656, %645, %657 : vector<32x256xi1>, vector<32x256xf32>
    %c160_457 = arith.constant 160 : index
    %c0_458 = arith.constant 0 : index
    %659 = vector.load %arg26[%c160_457, %c0_458] : memref<288x256xf32, #tpu.memory_space<vmem>>, vector<32x256xf32>
    tpu.vector_store %arg26[%c160_457, %c0_458], %658 {strides = array<i32>} : memref<288x256xf32, #tpu.memory_space<vmem>>, vector<32x256xf32>,
    %c0_459 = arith.constant 0 : index
    %c143 = arith.constant 143 : index
    %660 = vector.load %arg25[%c0_459, %c143] : memref<32x512xf32, #tpu.memory_space<vmem>>, vector<32x256xf32>
    %c-1_i32_460 = arith.constant -1 : i32
    %661 = vector.broadcast %c-1_i32_460 : i32 to vector<1x256xi32>
    %662 = arith.addi %16, %661 : vector<1x256xi32>
    %c0_i32_461 = arith.constant 0 : i32
    %663 = vector.broadcast %c0_i32_461 : i32 to vector<1x256xi32>
    %664 = arith.cmpi sge, %662, %663 : vector<1x256xi32>
    %c-1_i32_462 = arith.constant -1 : i32
    %665 = vector.broadcast %c-1_i32_462 : i32 to vector<1x256xi32>
    %666 = arith.addi %16, %665 : vector<1x256xi32>
    %c16_i32_463 = arith.constant 16 : i32
    %667 = vector.broadcast %c16_i32_463 : i32 to vector<1x256xi32>
    %668 = arith.cmpi slt, %666, %667 : vector<1x256xi32>
    %669 = arith.andi %664, %668 : vector<1x256xi1>
    %cst_464 = arith.constant 0.000000e+00 : f32
    %670 = vector.shape_cast %669 : vector<1x256xi1> to vector<1x256xi1>
    %671 = vector.broadcast %670 : vector<1x256xi1> to vector<32x256xi1>
    %672 = vector.broadcast %cst_464 : f32 to vector<32x256xf32>
    %673 = arith.select %671, %660, %672 : vector<32x256xi1>, vector<32x256xf32>
    %c192 = arith.constant 192 : index
    %c0_465 = arith.constant 0 : index
    %674 = vector.load %arg26[%c192, %c0_465] : memref<288x256xf32, #tpu.memory_space<vmem>>, vector<32x256xf32>
    tpu.vector_store %arg26[%c192, %c0_465], %673 {strides = array<i32>} : memref<288x256xf32, #tpu.memory_space<vmem>>, vector<32x256xf32>,
    %c0_466 = arith.constant 0 : index
    %c144_467 = arith.constant 144 : index
    %675 = vector.load %arg25[%c0_466, %c144_467] : memref<32x512xf32, #tpu.memory_space<vmem>>, vector<32x256xf32>
    %c224 = arith.constant 224 : index
    %c0_468 = arith.constant 0 : index
    %676 = vector.load %arg26[%c224, %c0_468] : memref<288x256xf32, #tpu.memory_space<vmem>>, vector<32x256xf32>
    tpu.vector_store %arg26[%c224, %c0_468], %675 {strides = array<i32>} : memref<288x256xf32, #tpu.memory_space<vmem>>, vector<32x256xf32>,
    %c0_469 = arith.constant 0 : index
    %c145 = arith.constant 145 : index
    %677 = vector.load %arg25[%c0_469, %c145] : memref<32x512xf32, #tpu.memory_space<vmem>>, vector<32x256xf32>
    %c1_i32_470 = arith.constant 1 : i32
    %678 = vector.broadcast %c1_i32_470 : i32 to vector<1x256xi32>
    %679 = arith.addi %16, %678 : vector<1x256xi32>
    %c0_i32_471 = arith.constant 0 : i32
    %680 = vector.broadcast %c0_i32_471 : i32 to vector<1x256xi32>
    %681 = arith.cmpi sge, %679, %680 : vector<1x256xi32>
    %c1_i32_472 = arith.constant 1 : i32
    %682 = vector.broadcast %c1_i32_472 : i32 to vector<1x256xi32>
    %683 = arith.addi %16, %682 : vector<1x256xi32>
    %c16_i32_473 = arith.constant 16 : i32
    %684 = vector.broadcast %c16_i32_473 : i32 to vector<1x256xi32>
    %685 = arith.cmpi slt, %683, %684 : vector<1x256xi32>
    %686 = arith.andi %681, %685 : vector<1x256xi1>
    %cst_474 = arith.constant 0.000000e+00 : f32
    %687 = vector.shape_cast %686 : vector<1x256xi1> to vector<1x256xi1>
    %688 = vector.broadcast %687 : vector<1x256xi1> to vector<32x256xi1>
    %689 = vector.broadcast %cst_474 : f32 to vector<32x256xf32>
    %690 = arith.select %688, %677, %689 : vector<32x256xi1>, vector<32x256xf32>
    %c256 = arith.constant 256 : index
    %c0_475 = arith.constant 0 : index
    %691 = vector.load %arg26[%c256, %c0_475] : memref<288x256xf32, #tpu.memory_space<vmem>>, vector<32x256xf32>
    tpu.vector_store %arg26[%c256, %c0_475], %690 {strides = array<i32>} : memref<288x256xf32, #tpu.memory_space<vmem>>, vector<32x256xf32>,
    %c0_476 = arith.constant 0 : index
    %c0_477 = arith.constant 0 : index
    %692 = vector.load %arg22[%c0_476, %c0_477] : memref<8x288xf32, #tpu.memory_space<vmem>>, vector<8x288xf32>
    %c0_478 = arith.constant 0 : index
    %c0_479 = arith.constant 0 : index
    %693 = vector.load %arg26[%c0_478, %c0_479] : memref<288x256xf32, #tpu.memory_space<vmem>>, vector<288x256xf32>
    %cst_480 = arith.constant dense<0.000000e+00> : vector<8x256xf32>
    %694 = tpu.matmul %692, %693, %cst_480 {dimension_numbers = #tpu.dot_dimension_numbers<[1], [0], [0], [1], [0, 0, 1, 1], [], []>} : vector<8x288xf32>, vector<288x256xf32>, vector<8x256xf32> -> vector<8x256xf32>
    %c0_481 = arith.constant 0 : index
    %c0_482 = arith.constant 0 : index
    %695 = vector.load %arg23[%c0_481, %c0_482] : memref<8x1xf32, #tpu.memory_space<vmem>>, vector<8x1xf32>
    %696 = vector.broadcast %695 : vector<8x1xf32> to vector<8x256xf32>
    %697 = arith.addf %694, %696 : vector<8x256xf32>
    %698 = arith.addf %697, %594 : vector<8x256xf32>
    %cst_483 = arith.constant 0.000000e+00 : f32
    %699 = vector.broadcast %cst_483 : f32 to vector<8x256xf32>
    %700 = arith.maximumf %698, %699 : vector<8x256xf32>
    %c0_484 = arith.constant 0 : index
    %c0_485 = arith.constant 0 : index
    %c0_486 = arith.constant 0 : index
    %701 = vector.load %arg24[%c0_484, %c0_485, %c0_486] : memref<1x8x256xf32, #tpu.memory_space<vmem>>, vector<1x8x256xf32>
    %702 = vector.shape_cast %701 : vector<1x8x256xf32> to vector<8x256xf32>
    %703 = vector.shape_cast %700 : vector<8x256xf32> to vector<1x8x256xf32>
    tpu.vector_store %arg24[%c0_484, %c0_485, %c0_486], %703 {strides = array<i32>} : memref<1x8x256xf32, #tpu.memory_space<vmem>>, vector<1x8x256xf32>,
    return
  }
  func.func @transform_0(%arg0: i32) -> (i32, i32, i32) {
    %c0_i32 = arith.constant 0 : i32
    %c0_i32_0 = arith.constant 0 : i32
    %c0_i32_1 = arith.constant 0 : i32
    return %arg0, %c0_i32, %c0_i32_0 : i32, i32, i32
  }
  func.func @transform_1(%arg0: i32) -> (i32, i32) {
    %c0_i32 = arith.constant 0 : i32
    %c0_i32_0 = arith.constant 0 : i32
    %c0_i32_1 = arith.constant 0 : i32
    return %c0_i32, %c0_i32_0 : i32, i32
  }
  func.func @transform_2(%arg0: i32) -> (i32, i32) {
    %c0_i32 = arith.constant 0 : i32
    %c0_i32_0 = arith.constant 0 : i32
    %c0_i32_1 = arith.constant 0 : i32
    return %c0_i32, %c0_i32_0 : i32, i32
  }
  func.func @transform_3(%arg0: i32) -> (i32, i32) {
    %c0_i32 = arith.constant 0 : i32
    %c0_i32_0 = arith.constant 0 : i32
    %c0_i32_1 = arith.constant 0 : i32
    return %c0_i32, %c0_i32_0 : i32, i32
  }
  func.func @transform_4(%arg0: i32) -> (i32, i32) {
    %c0_i32 = arith.constant 0 : i32
    %c0_i32_0 = arith.constant 0 : i32
    %c0_i32_1 = arith.constant 0 : i32
    return %c0_i32, %c0_i32_0 : i32, i32
  }
  func.func @transform_5(%arg0: i32) -> (i32, i32) {
    %c0_i32 = arith.constant 0 : i32
    %c0_i32_0 = arith.constant 0 : i32
    %c0_i32_1 = arith.constant 0 : i32
    return %c0_i32, %c0_i32_0 : i32, i32
  }
  func.func @transform_6(%arg0: i32) -> (i32, i32) {
    %c0_i32 = arith.constant 0 : i32
    %c0_i32_0 = arith.constant 0 : i32
    %c0_i32_1 = arith.constant 0 : i32
    return %c0_i32, %c0_i32_0 : i32, i32
  }
  func.func @transform_7(%arg0: i32) -> (i32, i32) {
    %c0_i32 = arith.constant 0 : i32
    %c0_i32_0 = arith.constant 0 : i32
    %c0_i32_1 = arith.constant 0 : i32
    return %c0_i32, %c0_i32_0 : i32, i32
  }
  func.func @transform_8(%arg0: i32) -> (i32, i32) {
    %c0_i32 = arith.constant 0 : i32
    %c0_i32_0 = arith.constant 0 : i32
    %c0_i32_1 = arith.constant 0 : i32
    return %c0_i32, %c0_i32_0 : i32, i32
  }
  func.func @transform_9(%arg0: i32) -> (i32, i32) {
    %c0_i32 = arith.constant 0 : i32
    %c0_i32_0 = arith.constant 0 : i32
    %c0_i32_1 = arith.constant 0 : i32
    return %c0_i32, %c0_i32_0 : i32, i32
  }
  func.func @transform_10(%arg0: i32) -> (i32, i32) {
    %c0_i32 = arith.constant 0 : i32
    %c0_i32_0 = arith.constant 0 : i32
    %c0_i32_1 = arith.constant 0 : i32
    return %c0_i32, %c0_i32_0 : i32, i32
  }
  func.func @transform_11(%arg0: i32) -> (i32, i32) {
    %c0_i32 = arith.constant 0 : i32
    %c0_i32_0 = arith.constant 0 : i32
    %c0_i32_1 = arith.constant 0 : i32
    return %c0_i32, %c0_i32_0 : i32, i32
  }
  func.func @transform_12(%arg0: i32) -> (i32, i32) {
    %c0_i32 = arith.constant 0 : i32
    %c0_i32_0 = arith.constant 0 : i32
    %c0_i32_1 = arith.constant 0 : i32
    return %c0_i32, %c0_i32_0 : i32, i32
  }
  func.func @transform_13(%arg0: i32) -> (i32, i32) {
    %c0_i32 = arith.constant 0 : i32
    %c0_i32_0 = arith.constant 0 : i32
    %c0_i32_1 = arith.constant 0 : i32
    return %c0_i32, %c0_i32_0 : i32, i32
  }
  func.func @transform_14(%arg0: i32) -> (i32, i32) {
    %c0_i32 = arith.constant 0 : i32
    %c0_i32_0 = arith.constant 0 : i32
    %c0_i32_1 = arith.constant 0 : i32
    return %c0_i32, %c0_i32_0 : i32, i32
  }
  func.func @transform_15(%arg0: i32) -> (i32, i32) {
    %c0_i32 = arith.constant 0 : i32
    %c0_i32_0 = arith.constant 0 : i32
    %c0_i32_1 = arith.constant 0 : i32
    return %c0_i32, %c0_i32_0 : i32, i32
  }
  func.func @transform_16(%arg0: i32) -> (i32, i32) {
    %c0_i32 = arith.constant 0 : i32
    %c0_i32_0 = arith.constant 0 : i32
    %c0_i32_1 = arith.constant 0 : i32
    return %c0_i32, %c0_i32_0 : i32, i32
  }
  func.func @transform_17(%arg0: i32) -> (i32, i32) {
    %c0_i32 = arith.constant 0 : i32
    %c0_i32_0 = arith.constant 0 : i32
    %c0_i32_1 = arith.constant 0 : i32
    return %c0_i32, %c0_i32_0 : i32, i32
  }
  func.func @transform_18(%arg0: i32) -> (i32, i32) {
    %c0_i32 = arith.constant 0 : i32
    %c0_i32_0 = arith.constant 0 : i32
    %c0_i32_1 = arith.constant 0 : i32
    return %c0_i32, %c0_i32_0 : i32, i32
  }
  func.func @transform_19(%arg0: i32) -> (i32, i32) {
    %c0_i32 = arith.constant 0 : i32
    %c0_i32_0 = arith.constant 0 : i32
    %c0_i32_1 = arith.constant 0 : i32
    return %c0_i32, %c0_i32_0 : i32, i32
  }
  func.func @transform_20(%arg0: i32) -> (i32, i32) {
    %c0_i32 = arith.constant 0 : i32
    %c0_i32_0 = arith.constant 0 : i32
    %c0_i32_1 = arith.constant 0 : i32
    return %c0_i32, %c0_i32_0 : i32, i32
  }
  func.func @transform_21(%arg0: i32) -> (i32, i32) {
    %c0_i32 = arith.constant 0 : i32
    %c0_i32_0 = arith.constant 0 : i32
    %c0_i32_1 = arith.constant 0 : i32
    return %c0_i32, %c0_i32_0 : i32, i32
  }
  func.func @transform_22(%arg0: i32) -> (i32, i32) {
    %c0_i32 = arith.constant 0 : i32
    %c0_i32_0 = arith.constant 0 : i32
    %c0_i32_1 = arith.constant 0 : i32
    return %c0_i32, %c0_i32_0 : i32, i32
  }
  func.func @transform_23(%arg0: i32) -> (i32, i32, i32) {
    %c0_i32 = arith.constant 0 : i32
    %c0_i32_0 = arith.constant 0 : i32
    %c0_i32_1 = arith.constant 0 : i32
    return %arg0, %c0_i32, %c0_i32_0 : i32, i32, i32
  }
}

</mosaic_0001>

<llo_original>
// kernel: rfb_forward.1
$region0: #{rfb_forward.1}
  #allocation0 [shape = 'u32[]', space=smem, size = 0x4, offset = 0x4, fixed_abs, tag = 'smem constant byte address 0x4 - core index']
  #allocation1 [shape = 'u32[72,128]{1,0:T(1,128)}', space=vmem, size = 0x9000, scoped, tag = 'internal scratch']
  #allocation2 [shape = 'f32[32,512]{1,0:T(8,128)}', space=vmem, size = 0x10000, scoped, tag = 'scratch operand']
  #allocation3 [shape = 'f32[288,256]{1,0:T(8,128)}', space=vmem, size = 0x48000, scoped, tag = 'scratch operand']
  #allocation4 [shape = 'f32[32,256]{1,0:T(8,128)}', space=vmem, size = 0x8000, scoped, tag = 'scratch operand']
  %s0 = inlined_call_operand.vmem [shape: f32[2,4,256], index: 0, kind: input, shape index: {}]
  %s1 = inlined_call_operand.vmem [shape: f32[40,4], index: 1, kind: input, shape index: {}]
  %s2 = inlined_call_operand.vmem [shape: f32[40,1], index: 2, kind: input, shape index: {}]
  %s3 = inlined_call_operand.vmem [shape: f32[8,24], index: 3, kind: input, shape index: {}]
  %s4 = inlined_call_operand.vmem [shape: f32[8,1], index: 4, kind: input, shape index: {}]
  %s5 = inlined_call_operand.vmem [shape: f32[8,24], index: 5, kind: input, shape index: {}]
  %s6 = inlined_call_operand.vmem [shape: f32[8,1], index: 6, kind: input, shape index: {}]
  %s7 = inlined_call_operand.vmem [shape: f32[8,72], index: 7, kind: input, shape index: {}]
  %s8 = inlined_call_operand.vmem [shape: f32[8,1], index: 8, kind: input, shape index: {}]
  %s9 = inlined_call_operand.vmem [shape: f32[8,40], index: 9, kind: input, shape index: {}]
  %s10 = inlined_call_operand.vmem [shape: f32[8,1], index: 10, kind: input, shape index: {}]
  %s11 = inlined_call_operand.vmem [shape: f32[8,40], index: 11, kind: input, shape index: {}]
  %s12 = inlined_call_operand.vmem [shape: f32[8,1], index: 12, kind: input, shape index: {}]
  %s13 = inlined_call_operand.vmem [shape: f32[8,72], index: 13, kind: input, shape index: {}]
  %s14 = inlined_call_operand.vmem [shape: f32[8,1], index: 14, kind: input, shape index: {}]
  %s15 = inlined_call_operand.vmem [shape: f32[8,56], index: 15, kind: input, shape index: {}]
  %s16 = inlined_call_operand.vmem [shape: f32[8,1], index: 16, kind: input, shape index: {}]
  %s17 = inlined_call_operand.vmem [shape: f32[8,56], index: 17, kind: input, shape index: {}]
  %s18 = inlined_call_operand.vmem [shape: f32[8,1], index: 18, kind: input, shape index: {}]
  %s19 = inlined_call_operand.vmem [shape: f32[8,72], index: 19, kind: input, shape index: {}]
  %s20 = inlined_call_operand.vmem [shape: f32[8,1], index: 20, kind: input, shape index: {}]
  %s21 = inlined_call_operand.vmem [shape: f32[8,288], index: 21, kind: input, shape index: {}]
  %s22 = inlined_call_operand.vmem [shape: f32[8,1], index: 22, kind: input, shape index: {}]
  %s23 = inlined_call_operand.vmem [shape: f32[2,8,256], index: 23, kind: output, shape index: {}]
  %s24 = sld [smem:[#allocation0]]
  $region125: #{rfb_forward.1} parent=0
    _
  %s26 = ssub.s32 1, %s24
  %s27 = scalar_select 0, %s26, %s24
  loop: start=0, step=1, limit=4
  $region2: #{rfb_forward.1} parent=0 // loop_pre_header
    _
  $region3: #{rfb_forward.1} parent=0 // loop_header
    %s29 = sphi 0, %s33
    %p30 = scmp.ge.s32.totalorder %s29, 4
    %s39 = sphi 0, %s41
    %s42 = sphi 0, %s39
    %s43 = sphi 0, %s42
    %s59 = sphi 0, %s43
    %s63 = sphi 0, %s63
    %s65 = sphi 0, %s63
    %s66 = sphi 0, %s65
    %s80 = sphi 0, %s66
    %s84 = sphi 0, %s84
    %s86 = sphi 0, %s84
    %s87 = sphi 0, %s86
    %s101 = sphi 0, %s87
    %s105 = sphi 0, %s105
    %s107 = sphi 0, %s105
    %s108 = sphi 0, %s107
    %s122 = sphi 0, %s108
    %s126 = sphi 0, %s126
    %s128 = sphi 0, %s126
    %s129 = sphi 0, %s128
    %s143 = sphi 0, %s129
    %s147 = sphi 0, %s147
    %s149 = sphi 0, %s147
    %s150 = sphi 0, %s149
    %s164 = sphi 0, %s150
    %s168 = sphi 0, %s168
    %s170 = sphi 0, %s168
    %s171 = sphi 0, %s170
    %s185 = sphi 0, %s171
    %s189 = sphi 0, %s189
    %s191 = sphi 0, %s189
    %s192 = sphi 0, %s191
    %s206 = sphi 0, %s192
    %s210 = sphi 0, %s210
    %s212 = sphi 0, %s210
    %s213 = sphi 0, %s212
    %s227 = sphi 0, %s213
    %s231 = sphi 0, %s231
    %s233 = sphi 0, %s231
    %s234 = sphi 0, %s233
    %s248 = sphi 0, %s234
    %s252 = sphi 0, %s252
    %s254 = sphi 0, %s252
    %s255 = sphi 0, %s254
    %s269 = sphi 0, %s255
    %s273 = sphi 0, %s273
    %s275 = sphi 0, %s273
    %s276 = sphi 0, %s275
    %s290 = sphi 0, %s276
    %s294 = sphi 0, %s294
    %s296 = sphi 0, %s294
    %s297 = sphi 0, %s296
    %s311 = sphi 0, %s297
    %s315 = sphi 0, %s315
    %s317 = sphi 0, %s315
    %s318 = sphi 0, %s317
    %s332 = sphi 0, %s318
    %s336 = sphi 0, %s336
    %s338 = sphi 0, %s336
    %s339 = sphi 0, %s338
    %s353 = sphi 0, %s339
    %s357 = sphi 0, %s357
    %s359 = sphi 0, %s357
    %s360 = sphi 0, %s359
    %s374 = sphi 0, %s360
    %s378 = sphi 0, %s378
    %s380 = sphi 0, %s378
    %s381 = sphi 0, %s380
    %s395 = sphi 0, %s381
    %s399 = sphi 0, %s399
    %s401 = sphi 0, %s399
    %s402 = sphi 0, %s401
    %s416 = sphi 0, %s402
    %s420 = sphi 0, %s420
    %s422 = sphi 0, %s420
    %s423 = sphi 0, %s422
    %s437 = sphi 0, %s423
    %s441 = sphi 0, %s441
    %s443 = sphi 0, %s441
    %s444 = sphi 0, %s443
    %s458 = sphi 0, %s444
    %s462 = sphi 0, %s462
    %s464 = sphi 0, %s462
    %s465 = sphi 0, %s464
    %s479 = sphi 0, %s465
    %s483 = sphi 0, %s483
    %s485 = sphi 0, %s483
    %s486 = sphi 0, %s485
    %s500 = sphi 0, %s486
    %s504 = sphi 0, %s504
    %s506 = sphi 0, %s504
    %s507 = sphi 0, %s506
    %s521 = sphi 0, %s507
    %s527 = sphi 0, %s529
    %s530 = sphi 0, %s527
    %s531 = sphi 0, %s530
    %s547 = sphi 0, %s531
  $region4: #{rfb_forward.1} parent=0 // loop_header_branch
    %32 = sbr.rel (%p30) target = $region8
  $region5: #{rfb_forward.1} parent=0 // loop_body
    %s34 = ssub.s32 %s29, 1
    %s35 = ssub.s32 %s29, 2
    %s36 = sadd.s32 %s29, 1
    %s37 = ssub.s32 %s29, %s36
    %p38 = scmp.eq.s32.totalorder %s37, 0
    %s40 = sadd.s32 %s39, 1
    %s41 = scalar_select %p38, %s39, %s40
    %p44 = pneg %p38
    %p45 = scmp.eq.s32.totalorder %s29, 1
    %p46 = por %p44, %p45
    %p47 = scmp.ne.s32.totalorder %s39, %s42
    %p48 = scmp.eq.s32.totalorder %s29, 0
    %p49 = por %p47, %p48
    %p50 = scmp.ne.s32.totalorder %s39, %s42
    %p51 = scmp.eq.s32.totalorder %s34, 1
    %p52 = por %p50, %p51
    %p53 = scmp.ne.s32.totalorder %s42, %s43
    %p54 = scmp.eq.s32.totalorder %s34, 0
    %p55 = por %p53, %p54
    %p56 = scmp.ne.s32.totalorder %s42, %s43
    %p57 = scmp.eq.s32.totalorder %s35, 1
    %p58 = por %p56, %p57
    %p60 = scmp.ne.s32.totalorder %s43, %s59
    %p61 = scmp.eq.s32.totalorder %s35, 0
    %p62 = por %p60, %p61
    %s64 = sadd.s32 %s63, 1
    %p67 = scmp.eq.s32.totalorder %s29, 1
    %p68 = scmp.ne.s32.totalorder %s63, %s65
    %p69 = scmp.eq.s32.totalorder %s29, 0
    %p70 = por %p68, %p69
    %p71 = scmp.ne.s32.totalorder %s63, %s65
    %p72 = scmp.eq.s32.totalorder %s34, 1
    %p73 = por %p71, %p72
    %p74 = scmp.ne.s32.totalorder %s65, %s66
    %p75 = scmp.eq.s32.totalorder %s34, 0
    %p76 = por %p74, %p75
    %p77 = scmp.ne.s32.totalorder %s65, %s66
    %p78 = scmp.eq.s32.totalorder %s35, 1
    %p79 = por %p77, %p78
    %p81 = scmp.ne.s32.totalorder %s66, %s80
    %p82 = scmp.eq.s32.totalorder %s35, 0
    %p83 = por %p81, %p82
    %s85 = sadd.s32 %s84, 1
    %p88 = scmp.eq.s32.totalorder %s29, 1
    %p89 = scmp.ne.s32.totalorder %s84, %s86
    %p90 = scmp.eq.s32.totalorder %s29, 0
    %p91 = por %p89, %p90
    %p92 = scmp.ne.s32.totalorder %s84, %s86
    %p93 = scmp.eq.s32.totalorder %s34, 1
    %p94 = por %p92, %p93
    %p95 = scmp.ne.s32.totalorder %s86, %s87
    %p96 = scmp.eq.s32.totalorder %s34, 0
    %p97 = por %p95, %p96
    %p98 = scmp.ne.s32.totalorder %s86, %s87
    %p99 = scmp.eq.s32.totalorder %s35, 1
    %p100 = por %p98, %p99
    %p102 = scmp.ne.s32.totalorder %s87, %s101
    %p103 = scmp.eq.s32.totalorder %s35, 0
    %p104 = por %p102, %p103
    %s106 = sadd.s32 %s105, 1
    %p109 = scmp.eq.s32.totalorder %s29, 1
    %p110 = scmp.ne.s32.totalorder %s105, %s107
    %p111 = scmp.eq.s32.totalorder %s29, 0
    %p112 = por %p110, %p111
    %p113 = scmp.ne.s32.totalorder %s105, %s107
    %p114 = scmp.eq.s32.totalorder %s34, 1
    %p115 = por %p113, %p114
    %p116 = scmp.ne.s32.totalorder %s107, %s108
    %p117 = scmp.eq.s32.totalorder %s34, 0
    %p118 = por %p116, %p117
    %p119 = scmp.ne.s32.totalorder %s107, %s108
    %p120 = scmp.eq.s32.totalorder %s35, 1
    %p121 = por %p119, %p120
    %p123 = scmp.ne.s32.totalorder %s108, %s122
    %p124 = scmp.eq.s32.totalorder %s35, 0
    %p125 = por %p123, %p124
    %s127 = sadd.s32 %s126, 1
    %p130 = scmp.eq.s32.totalorder %s29, 1
    %p131 = scmp.ne.s32.totalorder %s126, %s128
    %p132 = scmp.eq.s32.totalorder %s29, 0
    %p133 = por %p131, %p132
    %p134 = scmp.ne.s32.totalorder %s126, %s128
    %p135 = scmp.eq.s32.totalorder %s34, 1
    %p136 = por %p134, %p135
    %p137 = scmp.ne.s32.totalorder %s128, %s129
    %p138 = scmp.eq.s32.totalorder %s34, 0
    %p139 = por %p137, %p138
    %p140 = scmp.ne.s32.totalorder %s128, %s129
    %p141 = scmp.eq.s32.totalorder %s35, 1
    %p142 = por %p140, %p141
    %p144 = scmp.ne.s32.totalorder %s129, %s143
    %p145 = scmp.eq.s32.totalorder %s35, 0
    %p146 = por %p144, %p145
    %s148 = sadd.s32 %s147, 1
    %p151 = scmp.eq.s32.totalorder %s29, 1
    %p152 = scmp.ne.s32.totalorder %s147, %s149
    %p153 = scmp.eq.s32.totalorder %s29, 0
    %p154 = por %p152, %p153
    %p155 = scmp.ne.s32.totalorder %s147, %s149
    %p156 = scmp.eq.s32.totalorder %s34, 1
    %p157 = por %p155, %p156
    %p158 = scmp.ne.s32.totalorder %s149, %s150
    %p159 = scmp.eq.s32.totalorder %s34, 0
    %p160 = por %p158, %p159
    %p161 = scmp.ne.s32.totalorder %s149, %s150
    %p162 = scmp.eq.s32.totalorder %s35, 1
    %p163 = por %p161, %p162
    %p165 = scmp.ne.s32.totalorder %s150, %s164
    %p166 = scmp.eq.s32.totalorder %s35, 0
    %p167 = por %p165, %p166
    %s169 = sadd.s32 %s168, 1
    %p172 = scmp.eq.s32.totalorder %s29, 1
    %p173 = scmp.ne.s32.totalorder %s168, %s170
    %p174 = scmp.eq.s32.totalorder %s29, 0
    %p175 = por %p173, %p174
    %p176 = scmp.ne.s32.totalorder %s168, %s170
    %p177 = scmp.eq.s32.totalorder %s34, 1
    %p178 = por %p176, %p177
    %p179 = scmp.ne.s32.totalorder %s170, %s171
    %p180 = scmp.eq.s32.totalorder %s34, 0
    %p181 = por %p179, %p180
    %p182 = scmp.ne.s32.totalorder %s170, %s171
    %p183 = scmp.eq.s32.totalorder %s35, 1
    %p184 = por %p182, %p183
    %p186 = scmp.ne.s32.totalorder %s171, %s185
    %p187 = scmp.eq.s32.totalorder %s35, 0
    %p188 = por %p186, %p187
    %s190 = sadd.s32 %s189, 1
    %p193 = scmp.eq.s32.totalorder %s29, 1
    %p194 = scmp.ne.s32.totalorder %s189, %s191
    %p195 = scmp.eq.s32.totalorder %s29, 0
    %p196 = por %p194, %p195
    %p197 = scmp.ne.s32.totalorder %s189, %s191
    %p198 = scmp.eq.s32.totalorder %s34, 1
    %p199 = por %p197, %p198
    %p200 = scmp.ne.s32.totalorder %s191, %s192
    %p201 = scmp.eq.s32.totalorder %s34, 0
    %p202 = por %p200, %p201
    %p203 = scmp.ne.s32.totalorder %s191, %s192
    %p204 = scmp.eq.s32.totalorder %s35, 1
    %p205 = por %p203, %p204
    %p207 = scmp.ne.s32.totalorder %s192, %s206
    %p208 = scmp.eq.s32.totalorder %s35, 0
    %p209 = por %p207, %p208
    %s211 = sadd.s32 %s210, 1
    %p214 = scmp.eq.s32.totalorder %s29, 1
    %p215 = scmp.ne.s32.totalorder %s210, %s212
    %p216 = scmp.eq.s32.totalorder %s29, 0
    %p217 = por %p215, %p216
    %p218 = scmp.ne.s32.totalorder %s210, %s212
    %p219 = scmp.eq.s32.totalorder %s34, 1
    %p220 = por %p218, %p219
    %p221 = scmp.ne.s32.totalorder %s212, %s213
    %p222 = scmp.eq.s32.totalorder %s34, 0
    %p223 = por %p221, %p222
    %p224 = scmp.ne.s32.totalorder %s212, %s213
    %p225 = scmp.eq.s32.totalorder %s35, 1
    %p226 = por %p224, %p225
    %p228 = scmp.ne.s32.totalorder %s213, %s227
    %p229 = scmp.eq.s32.totalorder %s35, 0
    %p230 = por %p228, %p229
    %s232 = sadd.s32 %s231, 1
    %p235 = scmp.eq.s32.totalorder %s29, 1
    %p236 = scmp.ne.s32.totalorder %s231, %s233
    %p237 = scmp.eq.s32.totalorder %s29, 0
    %p238 = por %p236, %p237
    %p239 = scmp.ne.s32.totalorder %s231, %s233
    %p240 = scmp.eq.s32.totalorder %s34, 1
    %p241 = por %p239, %p240
    %p242 = scmp.ne.s32.totalorder %s233, %s234
    %p243 = scmp.eq.s32.totalorder %s34, 0
    %p244 = por %p242, %p243
    %p245 = scmp.ne.s32.totalorder %s233, %s234
    %p246 = scmp.eq.s32.totalorder %s35, 1
    %p247 = por %p245, %p246
    %p249 = scmp.ne.s32.totalorder %s234, %s248
    %p250 = scmp.eq.s32.totalorder %s35, 0
    %p251 = por %p249, %p250
    %s253 = sadd.s32 %s252, 1
    %p256 = scmp.eq.s32.totalorder %s29, 1
    %p257 = scmp.ne.s32.totalorder %s252, %s254
    %p258 = scmp.eq.s32.totalorder %s29, 0
    %p259 = por %p257, %p258
    %p260 = scmp.ne.s32.totalorder %s252, %s254
    %p261 = scmp.eq.s32.totalorder %s34, 1
    %p262 = por %p260, %p261
    %p263 = scmp.ne.s32.totalorder %s254, %s255
    %p264 = scmp.eq.s32.totalorder %s34, 0
    %p265 = por %p263, %p264
    %p266 = scmp.ne.s32.totalorder %s254, %s255
    %p267 = scmp.eq.s32.totalorder %s35, 1
    %p268 = por %p266, %p267
    %p270 = scmp.ne.s32.totalorder %s255, %s269
    %p271 = scmp.eq.s32.totalorder %s35, 0
    %p272 = por %p270, %p271
    %s274 = sadd.s32 %s273, 1
    %p277 = scmp.eq.s32.totalorder %s29, 1
    %p278 = scmp.ne.s32.totalorder %s273, %s275
    %p279 = scmp.eq.s32.totalorder %s29, 0
    %p280 = por %p278, %p279
    %p281 = scmp.ne.s32.totalorder %s273, %s275
    %p282 = scmp.eq.s32.totalorder %s34, 1
    %p283 = por %p281, %p282
    %p284 = scmp.ne.s32.totalorder %s275, %s276
    %p285 = scmp.eq.s32.totalorder %s34, 0
    %p286 = por %p284, %p285
    %p287 = scmp.ne.s32.totalorder %s275, %s276
    %p288 = scmp.eq.s32.totalorder %s35, 1
    %p289 = por %p287, %p288
    %p291 = scmp.ne.s32.totalorder %s276, %s290
    %p292 = scmp.eq.s32.totalorder %s35, 0
    %p293 = por %p291, %p292
    %s295 = sadd.s32 %s294, 1
    %p298 = scmp.eq.s32.totalorder %s29, 1
    %p299 = scmp.ne.s32.totalorder %s294, %s296
    %p300 = scmp.eq.s32.totalorder %s29, 0
    %p301 = por %p299, %p300
    %p302 = scmp.ne.s32.totalorder %s294, %s296
    %p303 = scmp.eq.s32.totalorder %s34, 1
    %p304 = por %p302, %p303
    %p305 = scmp.ne.s32.totalorder %s296, %s297
    %p306 = scmp.eq.s32.totalorder %s34, 0
    %p307 = por %p305, %p306
    %p308 = scmp.ne.s32.totalorder %s296, %s297
    %p309 = scmp.eq.s32.totalorder %s35, 1
    %p310 = por %p308, %p309
    %p312 = scmp.ne.s32.totalorder %s297, %s311
    %p313 = scmp.eq.s32.totalorder %s35, 0
    %p314 = por %p312, %p313
    %s316 = sadd.s32 %s315, 1
    %p319 = scmp.eq.s32.totalorder %s29, 1
    %p320 = scmp.ne.s32.totalorder %s315, %s317
    %p321 = scmp.eq.s32.totalorder %s29, 0
    %p322 = por %p320, %p321
    %p323 = scmp.ne.s32.totalorder %s315, %s317
    %p324 = scmp.eq.s32.totalorder %s34, 1
    %p325 = por %p323, %p324
    %p326 = scmp.ne.s32.totalorder %s317, %s318
    %p327 = scmp.eq.s32.totalorder %s34, 0
    %p328 = por %p326, %p327
    %p329 = scmp.ne.s32.totalorder %s317, %s318
    %p330 = scmp.eq.s32.totalorder %s35, 1
    %p331 = por %p329, %p330
    %p333 = scmp.ne.s32.totalorder %s318, %s332
    %p334 = scmp.eq.s32.totalorder %s35, 0
    %p335 = por %p333, %p334
    %s337 = sadd.s32 %s336, 1
    %p340 = scmp.eq.s32.totalorder %s29, 1
    %p341 = scmp.ne.s32.totalorder %s336, %s338
    %p342 = scmp.eq.s32.totalorder %s29, 0
    %p343 = por %p341, %p342
    %p344 = scmp.ne.s32.totalorder %s336, %s338
    %p345 = scmp.eq.s32.totalorder %s34, 1
    %p346 = por %p344, %p345
    %p347 = scmp.ne.s32.totalorder %s338, %s339
    %p348 = scmp.eq.s32.totalorder %s34, 0
    %p349 = por %p347, %p348
    %p350 = scmp.ne.s32.totalorder %s338, %s339
    %p351 = scmp.eq.s32.totalorder %s35, 1
    %p352 = por %p350, %p351
    %p354 = scmp.ne.s32.totalorder %s339, %s353
    %p355 = scmp.eq.s32.totalorder %s35, 0
    %p356 = por %p354, %p355
    %s358 = sadd.s32 %s357, 1
    %p361 = scmp.eq.s32.totalorder %s29, 1
    %p362 = scmp.ne.s32.totalorder %s357, %s359
    %p363 = scmp.eq.s32.totalorder %s29, 0
    %p364 = por %p362, %p363
    %p365 = scmp.ne.s32.totalorder %s357, %s359
    %p366 = scmp.eq.s32.totalorder %s34, 1
    %p367 = por %p365, %p366
    %p368 = scmp.ne.s32.totalorder %s359, %s360
    %p369 = scmp.eq.s32.totalorder %s34, 0
    %p370 = por %p368, %p369
    %p371 = scmp.ne.s32.totalorder %s359, %s360
    %p372 = scmp.eq.s32.totalorder %s35, 1
    %p373 = por %p371, %p372
    %p375 = scmp.ne.s32.totalorder %s360, %s374
    %p376 = scmp.eq.s32.totalorder %s35, 0
    %p377 = por %p375, %p376
    %s379 = sadd.s32 %s378, 1
    %p382 = scmp.eq.s32.totalorder %s29, 1
    %p383 = scmp.ne.s32.totalorder %s378, %s380
    %p384 = scmp.eq.s32.totalorder %s29, 0
    %p385 = por %p383, %p384
    %p386 = scmp.ne.s32.totalorder %s378, %s380
    %p387 = scmp.eq.s32.totalorder %s34, 1
    %p388 = por %p386, %p387
    %p389 = scmp.ne.s32.totalorder %s380, %s381
    %p390 = scmp.eq.s32.totalorder %s34, 0
    %p391 = por %p389, %p390
    %p392 = scmp.ne.s32.totalorder %s380, %s381
    %p393 = scmp.eq.s32.totalorder %s35, 1
    %p394 = por %p392, %p393
    %p396 = scmp.ne.s32.totalorder %s381, %s395
    %p397 = scmp.eq.s32.totalorder %s35, 0
    %p398 = por %p396, %p397
    %s400 = sadd.s32 %s399, 1
    %p403 = scmp.eq.s32.totalorder %s29, 1
    %p404 = scmp.ne.s32.totalorder %s399, %s401
    %p405 = scmp.eq.s32.totalorder %s29, 0
    %p406 = por %p404, %p405
    %p407 = scmp.ne.s32.totalorder %s399, %s401
    %p408 = scmp.eq.s32.totalorder %s34, 1
    %p409 = por %p407, %p408
    %p410 = scmp.ne.s32.totalorder %s401, %s402
    %p411 = scmp.eq.s32.totalorder %s34, 0
    %p412 = por %p410, %p411
    %p413 = scmp.ne.s32.totalorder %s401, %s402
    %p414 = scmp.eq.s32.totalorder %s35, 1
    %p415 = por %p413, %p414
    %p417 = scmp.ne.s32.totalorder %s402, %s416
    %p418 = scmp.eq.s32.totalorder %s35, 0
    %p419 = por %p417, %p418
    %s421 = sadd.s32 %s420, 1
    %p424 = scmp.eq.s32.totalorder %s29, 1
    %p425 = scmp.ne.s32.totalorder %s420, %s422
    %p426 = scmp.eq.s32.totalorder %s29, 0
    %p427 = por %p425, %p426
    %p428 = scmp.ne.s32.totalorder %s420, %s422
    %p429 = scmp.eq.s32.totalorder %s34, 1
    %p430 = por %p428, %p429
    %p431 = scmp.ne.s32.totalorder %s422, %s423
    %p432 = scmp.eq.s32.totalorder %s34, 0
    %p433 = por %p431, %p432
    %p434 = scmp.ne.s32.totalorder %s422, %s423
    %p435 = scmp.eq.s32.totalorder %s35, 1
    %p436 = por %p434, %p435
    %p438 = scmp.ne.s32.totalorder %s423, %s437
    %p439 = scmp.eq.s32.totalorder %s35, 0
    %p440 = por %p438, %p439
    %s442 = sadd.s32 %s441, 1
    %p445 = scmp.eq.s32.totalorder %s29, 1
    %p446 = scmp.ne.s32.totalorder %s441, %s443
    %p447 = scmp.eq.s32.totalorder %s29, 0
    %p448 = por %p446, %p447
    %p449 = scmp.ne.s32.totalorder %s441, %s443
    %p450 = scmp.eq.s32.totalorder %s34, 1
    %p451 = por %p449, %p450
    %p452 = scmp.ne.s32.totalorder %s443, %s444
    %p453 = scmp.eq.s32.totalorder %s34, 0
    %p454 = por %p452, %p453
    %p455 = scmp.ne.s32.totalorder %s443, %s444
    %p456 = scmp.eq.s32.totalorder %s35, 1
    %p457 = por %p455, %p456
    %p459 = scmp.ne.s32.totalorder %s444, %s458
    %p460 = scmp.eq.s32.totalorder %s35, 0
    %p461 = por %p459, %p460
    %s463 = sadd.s32 %s462, 1
    %p466 = scmp.eq.s32.totalorder %s29, 1
    %p467 = scmp.ne.s32.totalorder %s462, %s464
    %p468 = scmp.eq.s32.totalorder %s29, 0
    %p469 = por %p467, %p468
    %p470 = scmp.ne.s32.totalorder %s462, %s464
    %p471 = scmp.eq.s32.totalorder %s34, 1
    %p472 = por %p470, %p471
    %p473 = scmp.ne.s32.totalorder %s464, %s465
    %p474 = scmp.eq.s32.totalorder %s34, 0
    %p475 = por %p473, %p474
    %p476 = scmp.ne.s32.totalorder %s464, %s465
    %p477 = scmp.eq.s32.totalorder %s35, 1
    %p478 = por %p476, %p477
    %p480 = scmp.ne.s32.totalorder %s465, %s479
    %p481 = scmp.eq.s32.totalorder %s35, 0
    %p482 = por %p480, %p481
    %s484 = sadd.s32 %s483, 1
    %p487 = scmp.eq.s32.totalorder %s29, 1
    %p488 = scmp.ne.s32.totalorder %s483, %s485
    %p489 = scmp.eq.s32.totalorder %s29, 0
    %p490 = por %p488, %p489
    %p491 = scmp.ne.s32.totalorder %s483, %s485
    %p492 = scmp.eq.s32.totalorder %s34, 1
    %p493 = por %p491, %p492
    %p494 = scmp.ne.s32.totalorder %s485, %s486
    %p495 = scmp.eq.s32.totalorder %s34, 0
    %p496 = por %p494, %p495
    %p497 = scmp.ne.s32.totalorder %s485, %s486
    %p498 = scmp.eq.s32.totalorder %s35, 1
    %p499 = por %p497, %p498
    %p501 = scmp.ne.s32.totalorder %s486, %s500
    %p502 = scmp.eq.s32.totalorder %s35, 0
    %p503 = por %p501, %p502
    %s505 = sadd.s32 %s504, 1
    %p508 = scmp.eq.s32.totalorder %s29, 1
    %p509 = scmp.ne.s32.totalorder %s504, %s506
    %p510 = scmp.eq.s32.totalorder %s29, 0
    %p511 = por %p509, %p510
    %p512 = scmp.ne.s32.totalorder %s504, %s506
    %p513 = scmp.eq.s32.totalorder %s34, 1
    %p514 = por %p512, %p513
    %p515 = scmp.ne.s32.totalorder %s506, %s507
    %p516 = scmp.eq.s32.totalorder %s34, 0
    %p517 = por %p515, %p516
    %p518 = scmp.ne.s32.totalorder %s506, %s507
    %p519 = scmp.eq.s32.totalorder %s35, 1
    %p520 = por %p518, %p519
    %p522 = scmp.ne.s32.totalorder %s507, %s521
    %p523 = scmp.eq.s32.totalorder %s35, 0
    %p524 = por %p522, %p523
    %s525 = ssub.s32 %s29, %s36
    %p526 = scmp.eq.s32.totalorder %s525, 0
    %s528 = sadd.s32 %s527, 1
    %s529 = scalar_select %p526, %s527, %s528
    %p532 = pneg %p526
    %p533 = scmp.eq.s32.totalorder %s29, 1
    %p534 = por %p532, %p533
    %p535 = scmp.ne.s32.totalorder %s527, %s530
    %p536 = scmp.eq.s32.totalorder %s29, 0
    %p537 = por %p535, %p536
    %p538 = scmp.ne.s32.totalorder %s527, %s530
    %p539 = scmp.eq.s32.totalorder %s34, 1
    %p540 = por %p538, %p539
    %p541 = scmp.ne.s32.totalorder %s530, %s531
    %p542 = scmp.eq.s32.totalorder %s34, 0
    %p543 = por %p541, %p542
    %p544 = scmp.ne.s32.totalorder %s530, %s531
    %p545 = scmp.eq.s32.totalorder %s35, 1
    %p546 = por %p544, %p545
    %p548 = scmp.ne.s32.totalorder %s531, %s547
    %p549 = scmp.eq.s32.totalorder %s35, 0
    %p550 = por %p548, %p549
    %p551 = scmp.le.s32.totalorder 1, %s29
    %p552 = scmp.lt.s32.totalorder %s29, 3
    %p553 = pnand %p551, %p552
    %p554 = pneg %p553
    // Predicated region
    $region9: #{rfb_forward.1} parent=5 // pred_check
      _
    $region10: #{rfb_forward.1} parent=5 // pred_check_branch
      %556 = sbr.rel (%p553) target = $region12
    $region11: #{rfb_forward.1} parent=5 // pred_region
      %s557 = ssub.s32 %s29, 1
      // Predicated region
      $region13: #{rfb_forward.1} parent=11 // pred_check
        %p558 = pneg %p76
      $region14: #{rfb_forward.1} parent=11 // pred_check_branch
        %560 = sbr.rel (%p558) target = $region16
      $region15: #{rfb_forward.1} parent=11 // pred_region
        _
      $region16: #{rfb_forward.1} parent=11 // pred_fallthru
        _
      // Predicated region
      $region17: #{rfb_forward.1} parent=11 // pred_check
        %p561 = pneg %p97
      $region18: #{rfb_forward.1} parent=11 // pred_check_branch
        %563 = sbr.rel (%p561) target = $region20
      $region19: #{rfb_forward.1} parent=11 // pred_region
        _
      $region20: #{rfb_forward.1} parent=11 // pred_fallthru
        _
      // Predicated region
      $region21: #{rfb_forward.1} parent=11 // pred_check
        %p564 = pneg %p118
      $region22: #{rfb_forward.1} parent=11 // pred_check_branch
        %566 = sbr.rel (%p564) target = $region24
      $region23: #{rfb_forward.1} parent=11 // pred_region
        _
      $region24: #{rfb_forward.1} parent=11 // pred_fallthru
        _
      // Predicated region
      $region25: #{rfb_forward.1} parent=11 // pred_check
        %p567 = pneg %p139
      $region26: #{rfb_forward.1} parent=11 // pred_check_branch
        %569 = sbr.rel (%p567) target = $region28
      $region27: #{rfb_forward.1} parent=11 // pred_region
        _
      $region28: #{rfb_forward.1} parent=11 // pred_fallthru
        _
      // Predicated region
      $region29: #{rfb_forward.1} parent=11 // pred_check
        %p570 = pneg %p160
      $region30: #{rfb_forward.1} parent=11 // pred_check_branch
        %572 = sbr.rel (%p570) target = $region32
      $region31: #{rfb_forward.1} parent=11 // pred_region
        _
      $region32: #{rfb_forward.1} parent=11 // pred_fallthru
        _
      // Predicated region
      $region33: #{rfb_forward.1} parent=11 // pred_check
        %p573 = pneg %p181
      $region34: #{rfb_forward.1} parent=11 // pred_check_branch
        %575 = sbr.rel (%p573) target = $region36
      $region35: #{rfb_forward.1} parent=11 // pred_region
        _
      $region36: #{rfb_forward.1} parent=11 // pred_fallthru
        _
      // Predicated region
      $region37: #{rfb_forward.1} parent=11 // pred_check
        %p576 = pneg %p202
      $region38: #{rfb_forward.1} parent=11 // pred_check_branch
        %578 = sbr.rel (%p576) target = $region40
      $region39: #{rfb_forward.1} parent=11 // pred_region
        _
      $region40: #{rfb_forward.1} parent=11 // pred_fallthru
        _
      // Predicated region
      $region41: #{rfb_forward.1} parent=11 // pred_check
        %p579 = pneg %p223
      $region42: #{rfb_forward.1} parent=11 // pred_check_branch
        %581 = sbr.rel (%p579) target = $region44
      $region43: #{rfb_forward.1} parent=11 // pred_region
        _
      $region44: #{rfb_forward.1} parent=11 // pred_fallthru
        _
      // Predicated region
      $region45: #{rfb_forward.1} parent=11 // pred_check
        %p582 = pneg %p244
      $region46: #{rfb_forward.1} parent=11 // pred_check_branch
        %584 = sbr.rel (%p582) target = $region48
      $region47: #{rfb_forward.1} parent=11 // pred_region
        _
      $region48: #{rfb_forward.1} parent=11 // pred_fallthru
        _
      // Predicated region
      $region49: #{rfb_forward.1} parent=11 // pred_check
        %p585 = pneg %p265
      $region50: #{rfb_forward.1} parent=11 // pred_check_branch
        %587 = sbr.rel (%p585) target = $region52
      $region51: #{rfb_forward.1} parent=11 // pred_region
        _
      $region52: #{rfb_forward.1} parent=11 // pred_fallthru
        _
      // Predicated region
      $region53: #{rfb_forward.1} parent=11 // pred_check
        %p588 = pneg %p286
      $region54: #{rfb_forward.1} parent=11 // pred_check_branch
        %590 = sbr.rel (%p588) target = $region56
      $region55: #{rfb_forward.1} parent=11 // pred_region
        _
      $region56: #{rfb_forward.1} parent=11 // pred_fallthru
        _
      // Predicated region
      $region57: #{rfb_forward.1} parent=11 // pred_check
        %p591 = pneg %p307
      $region58: #{rfb_forward.1} parent=11 // pred_check_branch
        %593 = sbr.rel (%p591) target = $region60
      $region59: #{rfb_forward.1} parent=11 // pred_region
        _
      $region60: #{rfb_forward.1} parent=11 // pred_fallthru
        _
      // Predicated region
      $region61: #{rfb_forward.1} parent=11 // pred_check
        %p594 = pneg %p328
      $region62: #{rfb_forward.1} parent=11 // pred_check_branch
        %596 = sbr.rel (%p594) target = $region64
      $region63: #{rfb_forward.1} parent=11 // pred_region
        _
      $region64: #{rfb_forward.1} parent=11 // pred_fallthru
        _
      // Predicated region
      $region65: #{rfb_forward.1} parent=11 // pred_check
        %p597 = pneg %p349
      $region66: #{rfb_forward.1} parent=11 // pred_check_branch
        %599 = sbr.rel (%p597) target = $region68
      $region67: #{rfb_forward.1} parent=11 // pred_region
        _
      $region68: #{rfb_forward.1} parent=11 // pred_fallthru
        _
      // Predicated region
      $region69: #{rfb_forward.1} parent=11 // pred_check
        %p600 = pneg %p370
      $region70: #{rfb_forward.1} parent=11 // pred_check_branch
        %602 = sbr.rel (%p600) target = $region72
      $region71: #{rfb_forward.1} parent=11 // pred_region
        _
      $region72: #{rfb_forward.1} parent=11 // pred_fallthru
        _
      // Predicated region
      $region73: #{rfb_forward.1} parent=11 // pred_check
        %p603 = pneg %p391
      $region74: #{rfb_forward.1} parent=11 // pred_check_branch
        %605 = sbr.rel (%p603) target = $region76
      $region75: #{rfb_forward.1} parent=11 // pred_region
        _
      $region76: #{rfb_forward.1} parent=11 // pred_fallthru
        _
      // Predicated region
      $region77: #{rfb_forward.1} parent=11 // pred_check
        %p606 = pneg %p412
      $region78: #{rfb_forward.1} parent=11 // pred_check_branch
        %608 = sbr.rel (%p606) target = $region80
      $region79: #{rfb_forward.1} parent=11 // pred_region
        _
      $region80: #{rfb_forward.1} parent=11 // pred_fallthru
        _
      // Predicated region
      $region81: #{rfb_forward.1} parent=11 // pred_check
        %p609 = pneg %p433
      $region82: #{rfb_forward.1} parent=11 // pred_check_branch
        %611 = sbr.rel (%p609) target = $region84
      $region83: #{rfb_forward.1} parent=11 // pred_region
        _
      $region84: #{rfb_forward.1} parent=11 // pred_fallthru
        _
      // Predicated region
      $region85: #{rfb_forward.1} parent=11 // pred_check
        %p612 = pneg %p454
      $region86: #{rfb_forward.1} parent=11 // pred_check_branch
        %614 = sbr.rel (%p612) target = $region88
      $region87: #{rfb_forward.1} parent=11 // pred_region
        _
      $region88: #{rfb_forward.1} parent=11 // pred_fallthru
        _
      // Predicated region
      $region89: #{rfb_forward.1} parent=11 // pred_check
        %p615 = pneg %p475
      $region90: #{rfb_forward.1} parent=11 // pred_check_branch
        %617 = sbr.rel (%p615) target = $region92
      $region91: #{rfb_forward.1} parent=11 // pred_region
        _
      $region92: #{rfb_forward.1} parent=11 // pred_fallthru
        _
      // Predicated region
      $region93: #{rfb_forward.1} parent=11 // pred_check
        %p618 = pneg %p496
      $region94: #{rfb_forward.1} parent=11 // pred_check_branch
        %620 = sbr.rel (%p618) target = $region96
      $region95: #{rfb_forward.1} parent=11 // pred_region
        _
      $region96: #{rfb_forward.1} parent=11 // pred_fallthru
        _
      // Predicated region
      $region97: #{rfb_forward.1} parent=11 // pred_check
        %p621 = pneg %p517
      $region98: #{rfb_forward.1} parent=11 // pred_check_branch
        %623 = sbr.rel (%p621) target = $region100
      $region99: #{rfb_forward.1} parent=11 // pred_region
        _
      $region100: #{rfb_forward.1} parent=11 // pred_fallthru
        _
    $region12: #{rfb_forward.1} parent=5 // pred_fallthru
      _
    %p624 = scmp.lt.s32.totalorder %s29, 2
    // Predicated region
    $region101: #{rfb_forward.1} parent=5 // pred_check
      %p625 = pneg %p624
    $region102: #{rfb_forward.1} parent=5 // pred_check_branch
      %627 = sbr.rel (%p625) target = $region104
    $region103: #{rfb_forward.1} parent=5 // pred_region
      // Predicated region
      $region105: #{rfb_forward.1} parent=103 // pred_check
        %p628 = pneg %p49
      $region106: #{rfb_forward.1} parent=103 // pred_check_branch
        %630 = sbr.rel (%p628) target = $region108
      $region107: #{rfb_forward.1} parent=103 // pred_region
        %p631 = scmp.lt.s32.totalorder %s29, 1
        %s632 = scalar_select %p631, %s29, 1
        %s633 = smul.addr %s632, 2
        %s634 = smul.addr %s633, 4
        %s635 = scalar_lea.vmem %s0, %s634
      $region108: #{rfb_forward.1} parent=103 // pred_fallthru
        _
    $region104: #{rfb_forward.1} parent=5 // pred_fallthru
      _
    %p636 = scmp.le.s32.totalorder 1, %s29
    %p637 = scmp.lt.s32.totalorder %s29, 3
    %p638 = pnand %p636, %p637
    %p639 = pneg %p638
    // Predicated region
    $region109: #{rfb_forward.1} parent=5 // pred_check
      _
    $region110: #{rfb_forward.1} parent=5 // pred_check_branch
      %641 = sbr.rel (%p638) target = $region112
    $region111: #{rfb_forward.1} parent=5 // pred_region
      %s642 = ssub.s32 %s29, 1
      %p643 = scmp.lt.s32.totalorder %s34, 1
      %s644 = scalar_select %p643, %s34, 1
      %s645 = smul.addr %s644, 2
      %s646 = smul.addr %s645, 4
      %s647 = scalar_lea.vmem %s0, %s646
      %p648 = pneg %p55
      %p649 = pneg %p52
      %p650 = pneg %p76
      %p651 = pneg %p73
      %p652 = pneg %p97
      %p653 = pneg %p94
      %p654 = pneg %p118
      %p655 = pneg %p115
      %p656 = pneg %p139
      %p657 = pneg %p136
      %p658 = pneg %p160
      %p659 = pneg %p157
      %p660 = pneg %p181
      %p661 = pneg %p178
      %p662 = pneg %p202
      %p663 = pneg %p199
      %p664 = pneg %p223
      %p665 = pneg %p220
      %p666 = pneg %p244
      %p667 = pneg %p241
      %p668 = pneg %p265
      %p669 = pneg %p262
      %p670 = pneg %p286
      %p671 = pneg %p283
      %p672 = pneg %p307
      %p673 = pneg %p304
      %p674 = pneg %p328
      %p675 = pneg %p325
      %p676 = pneg %p349
      %p677 = pneg %p346
      %p678 = pneg %p370
      %p679 = pneg %p367
      %p680 = pneg %p391
      %p681 = pneg %p388
      %p682 = pneg %p412
      %p683 = pneg %p409
      %p684 = pneg %p433
      %p685 = pneg %p430
      %p686 = pneg %p454
      %p687 = pneg %p451
      %p688 = pneg %p475
      %p689 = pneg %p472
      %p690 = pneg %p496
      %p691 = pneg %p493
      %p692 = pneg %p517
      %p693 = pneg %p514
      %p694 = pneg %p543
      %p695 = pneg %p540
      %p696 = scmp.lt.s32.totalorder %s34, 1
      %s697 = scalar_select %p696, %s34, 1
      %s698 = smul.addr %s697, 2
      %s699 = smul.addr %s698, 8
      %s700 = scalar_lea.vmem %s23, %s699
      %p701 = scmp.lt.s32.totalorder %s34, 1
      %s702 = scalar_select %p701, %s34, 1
      %s703 = smul.addr %s702, 2
      %s704 = smul.addr %s703, 4
      %s705 = scalar_lea.vmem %s0, %s704
      %p706 = scmp.lt.s32.totalorder %s34, 1
      %s707 = scalar_select %p706, %s34, 1
      %s708 = smul.addr %s707, 2
      %s709 = smul.addr %s708, 8
      %s710 = scalar_lea.vmem %s23, %s709
      %v711 = vlaneseq
      %v712 = vand.u32 %v711, 127
      %v713 = vadd.s32 %v712, 128
      %vm714 = vcmp.lt.s32.totalorder %v712, 0
      %v715 = vsub.s32 0, %v712
      %v716 = vsel %vm714, %v715, %v712
      %v717 = vshrl.u32 %v716, 4
      %v718 = vand.u32 %v716, 15
      %v719 = vsub.s32 0, %v718
      %v720 = vsel %vm714, %v719, %v718
      %vm721 = vcmp.lt.s32.totalorder %v713, 0
      %v722 = vsub.s32 0, %v713
      %v723 = vsel %vm721, %v722, %v713
      %v724 = vshrl.u32 %v723, 4
      %v725 = vand.u32 %v723, 15
      %v726 = vsub.s32 0, %v725
      %v727 = vsel %vm721, %v726, %v725
      %vm728 = vcmp.ne.s32.totalorder %v720, 0
      %vm729 = vcmp.ne.s32.totalorder %v727, 0
      %vm730 = vcmp.lt.s32.totalorder %v720, 0
      %vm731 = vcmp.lt.s32.totalorder %v727, 0
      %vm732 = vmand %vm730, %vm728
      %vm733 = vmand %vm731, %vm729
      %v734 = vadd.s32 %v720, 16
      %v735 = vadd.s32 %v727, 16
      %v736 = vsel %vm732, %v734, %v720
      %v737 = vsel %vm733, %v735, %v727
      %738 = vst [vmem:[#allocation2] sm:$0xff] 0.0
      %739 = vst [vmem:[#allocation2 + $0x20] sm:$0xff] 0.0
      %740 = vst [vmem:[#allocation2 + $0x40] sm:$0xff] 0.0
      %741 = vst [vmem:[#allocation2 + $0x60] sm:$0xff] 0.0
      %742 = vst [vmem:[#allocation2 + $0x18] sm:$0xff] 0.0
      %743 = vst [vmem:[#allocation2 + $0x38] sm:$0xff] 0.0
      %744 = vst [vmem:[#allocation2 + $0x58] sm:$0xff] 0.0
      %745 = vst [vmem:[#allocation2 + $0x78] sm:$0xff] 0.0
      %v746 = vld [vmem:[%s705] sm:$0xff]
      %v747 = vld [vmem:[%s1] sm:$0xff]
      %v748 = vld [vmem:[%s1 + $0x8] sm:$0xff]
      %v749 = vld [vmem:[%s1 + $0x10] sm:$0xff]
      %v750 = vld [vmem:[%s1 + $0x18] sm:$0xff]
      %v751 = vld [vmem:[%s1 + $0x20] sm:$0xff]
      %v752 = vld [vmem:[%s2] sm:$0xff]
      %v753 = vld [vmem:[%s2 + $0x8] sm:$0xff]
      %v754 = vld [vmem:[%s2 + $0x10] sm:$0xff]
      %v755 = vld [vmem:[%s2 + $0x18] sm:$0xff]
      %v756 = vld [vmem:[%s2 + $0x20] sm:$0xff]
      %758 = vset.pattern.permute.xlu0 0
      %759 = vperm.xlu0 %758, %v752
      %v760 = vpop.permute.xlu0 %759
      %763 = vset.pattern.permute.xlu0 0
      %764 = vperm.xlu0 %763, %v753
      %v765 = vpop.permute.xlu0 %764
      %768 = vset.pattern.permute.xlu0 0
      %769 = vperm.xlu0 %768, %v754
      %v770 = vpop.permute.xlu0 %769
      %773 = vset.pattern.permute.xlu0 0
      %774 = vperm.xlu0 %773, %v755
      %v775 = vpop.permute.xlu0 %774
      %778 = vset.pattern.permute.xlu0 0
      %779 = vperm.xlu0 %778, %v756
      %v780 = vpop.permute.xlu0 %779
      %783 = vst [vmem:[#allocation1] ss:$2 sm:$0xff] %v746
      %v784 = vld.sshfl [vmem:[#allocation1] sm:$0xff pattern:$0x75316420]
      %v785 = vld.sshfl [vmem:[#allocation1 + $0x8] sm:$0xff pattern:$0x75316420]
      %vm786 = vcmask 31744
      %v788 = vsel %vm786, %v747, 0
      %v791 = vsel %vm786, %v748, 0
      %v794 = vsel %vm786, %v749, 0
      %v797 = vsel %vm786, %v750, 0
      %v800 = vsel %vm786, %v751, 0
      %vm802 = vcmask 1043456
      %v803 = vsel %vm802, %v784, 0
      %v805 = vsel %vm802, %v785, 0
      %807 = vmatpush.msra.mxu0 0.0
      %808 = vmatpush.msra.mxu0 0.0
      %809 = vmatpush.msra.mxu0 0.0
      %810 = vmatpush.msra.mxu0 0.0
      %811 = vmatpush.msra.mxu0 0.0
      %812 = vmatpush.msra.mxu0 0.0
      %813 = vmatpush.msra.mxu0 0.0
      %814 = vmatpush.msra.mxu0 0.0
      %815 = vmatpush.msra.mxu0 0.0
      %816 = vmatpush.msra.mxu0 0.0
      %817 = vmatpush.msra.mxu0 0.0
      %818 = vmatpush.msra.mxu0 0.0
      %819 = vmatpush.msra.mxu0 0.0
      %820 = vmatpush.msra.mxu0 0.0
      %821 = vmatpush.msra.mxu0 0.0
      %822 = vmatpush.msra.mxu0 %v803
      %823 = vmatmul.f32.gmra.mxu0 %v788
      %v824 = vpop.f32.mrf.mxu0
      %v825 = vadd.f32 %v760, %v824
      %826 = vmatmul.f32.gmra.mxu0 %v791
      %v827 = vpop.f32.mrf.mxu0
      %v828 = vadd.f32 %v765, %v827
      %829 = vmatmul.f32.gmra.mxu0 %v794
      %v830 = vpop.f32.mrf.mxu0
      %v831 = vadd.f32 %v770, %v830
      %832 = vmatmul.f32.gmra.mxu0 %v797
      %v833 = vpop.f32.mrf.mxu0
      %v834 = vadd.f32 %v775, %v833
      %835 = vmatmul.f32.gmra.mxu0 %v800
      %v836 = vpop.f32.mrf.mxu0
      %v837 = vadd.f32 %v780, %v836
      %838 = vdwg.mxu0
      %839 = vmatpush.msra.mxu0 0.0
      %840 = vmatpush.msra.mxu0 0.0
      %841 = vmatpush.msra.mxu0 0.0
      %842 = vmatpush.msra.mxu0 0.0
      %843 = vmatpush.msra.mxu0 0.0
      %844 = vmatpush.msra.mxu0 0.0
      %845 = vmatpush.msra.mxu0 0.0
      %846 = vmatpush.msra.mxu0 0.0
      %847 = vmatpush.msra.mxu0 0.0
      %848 = vmatpush.msra.mxu0 0.0
      %849 = vmatpush.msra.mxu0 0.0
      %850 = vmatpush.msra.mxu0 0.0
      %851 = vmatpush.msra.mxu0 0.0
      %852 = vmatpush.msra.mxu0 0.0
      %853 = vmatpush.msra.mxu0 0.0
      %854 = vmatpush.msra.mxu0 %v805
      %855 = vmatmul.f32.gmra.mxu0 %v788
      %v856 = vpop.f32.mrf.mxu0
      %v857 = vadd.f32 %v760, %v856
      %858 = vmatmul.f32.gmra.mxu0 %v791
      %v859 = vpop.f32.mrf.mxu0
      %v860 = vadd.f32 %v765, %v859
      %861 = vmatmul.f32.gmra.mxu0 %v794
      %v862 = vpop.f32.mrf.mxu0
      %v863 = vadd.f32 %v770, %v862
      %864 = vmatmul.f32.gmra.mxu0 %v797
      %v865 = vpop.f32.mrf.mxu0
      %v866 = vadd.f32 %v775, %v865
      %867 = vmatmul.f32.gmra.mxu0 %v800
      %v868 = vpop.f32.mrf.mxu0
      %v869 = vadd.f32 %v780, %v868
      %870 = vdwg.mxu0
      %871 = vst [vmem:[#allocation4] sm:$0xff] %v825
      %872 = vst [vmem:[#allocation4 + $0x8] sm:$0xff] %v857
      %873 = vst [vmem:[#allocation2 + $0x8] sm:$0xff] %v828
      %874 = vst [vmem:[#allocation2 + $0x10] sm:$0xff] %v860
      %v875 = vld [vmem:[#allocation2] sm:$0xff]
      %v876 = vld [vmem:[#allocation2 + $0x8] sm:$0xff]
      %v877 = vld [vmem:[#allocation2 + $0x10] sm:$0xff]
      %v878 = vadd.s32 %v736, 4294967295
      %v879 = vadd.s32 %v737, 4294967295
      %vm880 = vcmp.ge.s32.totalorder %v878, 0
      %vm881 = vcmp.ge.s32.totalorder %v879, 0
      %vm882 = vcmp.lt.s32.totalorder %v878, 16
      %vm883 = vcmp.lt.s32.totalorder %v879, 16
      %vm884 = vmand %vm880, %vm882
      %vm885 = vmand %vm881, %vm883
      %v886 = vsel %vm884, 1, 0
      %v887 = vsel %vm885, 1, 0
      %vm888 = vcmp.eq.s32.totalorder %v886, 1
      %vm889 = vcmp.eq.s32.totalorder %v887, 1
      %893 = vrot.lane.b32.xlu0 %v875, 1
      %v894 = vpop.permute.xlu0 %893
      %895 = vrot.lane.b32.xlu0 %v876, 1
      %v896 = vpop.permute.xlu0 %895
      %897 = vrot.lane.b32.xlu0 %v877, 1
      %v898 = vpop.permute.xlu0 %897
      %vm899 = vcmask 7168
      %v900 = vsel %vm899, %v894, %v896
      %v901 = vsel %vm899, %v896, %v898
      %v904 = vsel %vm888, %v900, 0.0
      %v905 = vsel %vm889, %v901, 0.0
      %906 = vst [vmem:[#allocation3] sm:$0xff] %v904
      %907 = vst [vmem:[#allocation3 + $0x8] sm:$0xff] %v905
      %908 = vst [vmem:[#allocation3 + $0x10] sm:$0xff] %v828
      %909 = vst [vmem:[#allocation3 + $0x18] sm:$0xff] %v860
      %v910 = vld [vmem:[#allocation2 + $0x8] sm:$0xff]
      %v911 = vld [vmem:[#allocation2 + $0x10] sm:$0xff]
      %v912 = vld [vmem:[#allocation2 + $0x18] sm:$0xff]
      %v913 = vadd.s32 %v736, 1
      %v914 = vadd.s32 %v737, 1
      %vm915 = vcmp.ge.s32.totalorder %v913, 0
      %vm916 = vcmp.ge.s32.totalorder %v914, 0
      %vm917 = vcmp.lt.s32.totalorder %v913, 16
      %vm918 = vcmp.lt.s32.totalorder %v914, 16
      %vm919 = vmand %vm915, %vm917
      %vm920 = vmand %vm916, %vm918
      %v921 = vsel %vm919, 1, 0
      %v922 = vsel %vm920, 1, 0
      %vm923 = vcmp.eq.s32.totalorder %v921, 1
      %vm924 = vcmp.eq.s32.totalorder %v922, 1
      %928 = vrot.lane.b32.xlu0 %v910, 127
      %v929 = vpop.permute.xlu0 %928
      %930 = vrot.lane.b32.xlu0 %v911, 127
      %v931 = vpop.permute.xlu0 %930
      %932 = vrot.lane.b32.xlu0 %v912, 127
      %v933 = vpop.permute.xlu0 %932
      %vm934 = vcmask 1039360
      %v935 = vsel %vm934, %v929, %v931
      %v936 = vsel %vm934, %v931, %v933
      %v939 = vsel %vm923, %v935, 0.0
      %v940 = vsel %vm924, %v936, 0.0
      %941 = vst [vmem:[#allocation3 + $0x20] sm:$0xff] %v939
      %942 = vst [vmem:[#allocation3 + $0x28] sm:$0xff] %v940
      %v943 = vld [vmem:[%s3] sm:$0xff]
      %v944 = vld [vmem:[#allocation3] sm:$0xff]
      %v945 = vld [vmem:[#allocation3 + $0x8] sm:$0xff]
      %v946 = vld [vmem:[#allocation3 + $0x10] sm:$0xff]
      %v947 = vld [vmem:[#allocation3 + $0x18] sm:$0xff]
      %v948 = vld [vmem:[#allocation3 + $0x20] sm:$0xff]
      %v949 = vld [vmem:[#allocation3 + $0x28] sm:$0xff]
      %v950 = vld [vmem:[%s4] sm:$0xff]
      %952 = vset.pattern.permute.xlu0 0
      %953 = vperm.xlu0 %952, %v950
      %v954 = vpop.permute.xlu0 %953
      %vm956 = vcmask 195584
      %v958 = vsel %vm956, %v943, 0
      %960 = vmatpush.msra.mxu0 0.0
      %961 = vmatpush.msra.mxu0 0.0
      %962 = vmatpush.msra.mxu0 0.0
      %963 = vmatpush.msra.mxu0 0.0
      %964 = vmatpush.msra.mxu0 0.0
      %965 = vmatpush.msra.mxu0 0.0
      %966 = vmatpush.msra.mxu0 0.0
      %967 = vmatpush.msra.mxu0 0.0
      %968 = vmatpush.msra.mxu0 0.0
      %969 = vmatpush.msra.mxu0 0.0
      %970 = vmatpush.msra.mxu0 0.0
      %971 = vmatpush.msra.mxu0 0.0
      %972 = vmatpush.msra.mxu0 0.0
      %973 = vmatpush.msra.mxu0 %v948
      %974 = vmatpush.msra.mxu0 %v946
      %975 = vmatpush.msra.mxu0 %v944
      %976 = vmatmul.f32.gmra.mxu0 %v958
      %v977 = vpop.f32.mrf.mxu0
      %v978 = vadd.f32 %v954, %v977
      %979 = vdwg.mxu0
      %980 = vmatpush.msra.mxu0 0.0
      %981 = vmatpush.msra.mxu0 0.0
      %982 = vmatpush.msra.mxu0 0.0
      %983 = vmatpush.msra.mxu0 0.0
      %984 = vmatpush.msra.mxu0 0.0
      %985 = vmatpush.msra.mxu0 0.0
      %986 = vmatpush.msra.mxu0 0.0
      %987 = vmatpush.msra.mxu0 0.0
      %988 = vmatpush.msra.mxu0 0.0
      %989 = vmatpush.msra.mxu0 0.0
      %990 = vmatpush.msra.mxu0 0.0
      %991 = vmatpush.msra.mxu0 0.0
      %992 = vmatpush.msra.mxu0 0.0
      %993 = vmatpush.msra.mxu0 %v949
      %994 = vmatpush.msra.mxu0 %v947
      %995 = vmatpush.msra.mxu0 %v945
      %996 = vmatmul.f32.gmra.mxu0 %v958
      %v997 = vpop.f32.mrf.mxu0
      %v998 = vadd.f32 %v954, %v997
      %999 = vdwg.mxu0
      %1000 = vst [vmem:[#allocation2 + $0x8] sm:$0xff] %v978
      %1001 = vst [vmem:[#allocation2 + $0x10] sm:$0xff] %v998
      %v1002 = vld [vmem:[#allocation2] sm:$0xff]
      %v1003 = vld [vmem:[#allocation2 + $0x8] sm:$0xff]
      %v1004 = vld [vmem:[#allocation2 + $0x10] sm:$0xff]
      %1008 = vrot.lane.b32.xlu0 %v1002, 16
      %v1009 = vpop.permute.xlu0 %1008
      %1010 = vrot.lane.b32.xlu0 %v1003, 16
      %v1011 = vpop.permute.xlu0 %1010
      %1012 = vrot.lane.b32.xlu0 %v1004, 16
      %v1013 = vpop.permute.xlu0 %1012
      %vm1014 = vcmask 130048
      %v1015 = vsel %vm1014, %v1009, %v1011
      %v1016 = vsel %vm1014, %v1011, %v1013
      %1019 = vst [vmem:[#allocation3] sm:$0xff] %v1015
      %1020 = vst [vmem:[#allocation3 + $0x8] sm:$0xff] %v1016
      %1021 = vst [vmem:[#allocation3 + $0x10] sm:$0xff] %v978
      %1022 = vst [vmem:[#allocation3 + $0x18] sm:$0xff] %v998
      %v1023 = vld [vmem:[#allocation2 + $0x8] sm:$0xff]
      %v1024 = vld [vmem:[#allocation2 + $0x10] sm:$0xff]
      %v1025 = vld [vmem:[#allocation2 + $0x18] sm:$0xff]
      %1029 = vrot.lane.b32.xlu0 %v1023, 112
      %v1030 = vpop.permute.xlu0 %1029
      %1031 = vrot.lane.b32.xlu0 %v1024, 112
      %v1032 = vpop.permute.xlu0 %1031
      %1033 = vrot.lane.b32.xlu0 %v1025, 112
      %v1034 = vpop.permute.xlu0 %1033
      %vm1035 = vcmask 916480
      %v1036 = vsel %vm1035, %v1030, %v1032
      %v1037 = vsel %vm1035, %v1032, %v1034
      %1040 = vst [vmem:[#allocation3 + $0x20] sm:$0xff] %v1036
      %1041 = vst [vmem:[#allocation3 + $0x28] sm:$0xff] %v1037
      %v1042 = vld [vmem:[%s5] sm:$0xff]
      %v1043 = vld [vmem:[#allocation3] sm:$0xff]
      %v1044 = vld [vmem:[#allocation3 + $0x8] sm:$0xff]
      %v1045 = vld [vmem:[#allocation3 + $0x10] sm:$0xff]
      %v1046 = vld [vmem:[#allocation3 + $0x18] sm:$0xff]
      %v1047 = vld [vmem:[#allocation3 + $0x20] sm:$0xff]
      %v1048 = vld [vmem:[#allocation3 + $0x28] sm:$0xff]
      %v1049 = vld [vmem:[%s6] sm:$0xff]
      %1051 = vset.pattern.permute.xlu0 0
      %1052 = vperm.xlu0 %1051, %v1049
      %v1053 = vpop.permute.xlu0 %1052
      %v1056 = vsel %vm956, %v1042, 0
      %1058 = vmatpush.msra.mxu0 0.0
      %1059 = vmatpush.msra.mxu0 0.0
      %1060 = vmatpush.msra.mxu0 0.0
      %1061 = vmatpush.msra.mxu0 0.0
      %1062 = vmatpush.msra.mxu0 0.0
      %1063 = vmatpush.msra.mxu0 0.0
      %1064 = vmatpush.msra.mxu0 0.0
      %1065 = vmatpush.msra.mxu0 0.0
      %1066 = vmatpush.msra.mxu0 0.0
      %1067 = vmatpush.msra.mxu0 0.0
      %1068 = vmatpush.msra.mxu0 0.0
      %1069 = vmatpush.msra.mxu0 0.0
      %1070 = vmatpush.msra.mxu0 0.0
      %1071 = vmatpush.msra.mxu0 %v1047
      %1072 = vmatpush.msra.mxu0 %v1045
      %1073 = vmatpush.msra.mxu0 %v1043
      %1074 = vmatmul.f32.gmra.mxu0 %v1056
      %v1075 = vpop.f32.mrf.mxu0
      %v1076 = vadd.f32 %v1053, %v1075
      %1077 = vdwg.mxu0
      %1078 = vmatpush.msra.mxu0 0.0
      %1079 = vmatpush.msra.mxu0 0.0
      %1080 = vmatpush.msra.mxu0 0.0
      %1081 = vmatpush.msra.mxu0 0.0
      %1082 = vmatpush.msra.mxu0 0.0
      %1083 = vmatpush.msra.mxu0 0.0
      %1084 = vmatpush.msra.mxu0 0.0
      %1085 = vmatpush.msra.mxu0 0.0
      %1086 = vmatpush.msra.mxu0 0.0
      %1087 = vmatpush.msra.mxu0 0.0
      %1088 = vmatpush.msra.mxu0 0.0
      %1089 = vmatpush.msra.mxu0 0.0
      %1090 = vmatpush.msra.mxu0 0.0
      %1091 = vmatpush.msra.mxu0 %v1048
      %1092 = vmatpush.msra.mxu0 %v1046
      %1093 = vmatpush.msra.mxu0 %v1044
      %1094 = vmatmul.f32.gmra.mxu0 %v1056
      %v1095 = vpop.f32.mrf.mxu0
      %v1096 = vadd.f32 %v1053, %v1095
      %1097 = vdwg.mxu0
      %1098 = vst [vmem:[#allocation2 + $0x8] sm:$0xff] %v1076
      %1099 = vst [vmem:[#allocation2 + $0x10] sm:$0xff] %v1096
      %v1100 = vld [vmem:[#allocation2] sm:$0xff]
      %v1101 = vld [vmem:[#allocation2 + $0x8] sm:$0xff]
      %v1102 = vld [vmem:[#allocation2 + $0x10] sm:$0xff]
      %v1103 = vadd.s32 %v736, 4294967293
      %v1104 = vadd.s32 %v737, 4294967293
      %vm1105 = vcmp.ge.s32.totalorder %v1103, 0
      %vm1106 = vcmp.ge.s32.totalorder %v1104, 0
      %vm1107 = vcmp.lt.s32.totalorder %v1103, 16
      %vm1108 = vcmp.lt.s32.totalorder %v1104, 16
      %vm1109 = vmand %vm1105, %vm1107
      %vm1110 = vmand %vm1106, %vm1108
      %v1111 = vsel %vm1109, 1, 0
      %v1112 = vsel %vm1110, 1, 0
      %vm1113 = vcmp.eq.s32.totalorder %v1111, 1
      %vm1114 = vcmp.eq.s32.totalorder %v1112, 1
      %1118 = vrot.lane.b32.xlu0 %v1100, 51
      %v1119 = vpop.permute.xlu0 %1118
      %1120 = vrot.lane.b32.xlu0 %v1101, 51
      %v1121 = vpop.permute.xlu0 %1120
      %1122 = vrot.lane.b32.xlu0 %v1102, 51
      %v1123 = vpop.permute.xlu0 %1122
      %vm1124 = vcmask 416768
      %v1125 = vsel %vm1124, %v1119, %v1121
      %v1126 = vsel %vm1124, %v1121, %v1123
      %v1129 = vsel %vm1113, %v1125, 0.0
      %v1130 = vsel %vm1114, %v1126, 0.0
      %1131 = vst [vmem:[#allocation3] sm:$0xff] %v1129
      %1132 = vst [vmem:[#allocation3 + $0x8] sm:$0xff] %v1130
      %v1133 = vld [vmem:[#allocation2] sm:$0xff]
      %v1134 = vld [vmem:[#allocation2 + $0x8] sm:$0xff]
      %v1135 = vld [vmem:[#allocation2 + $0x10] sm:$0xff]
      %1139 = vrot.lane.b32.xlu0 %v1133, 48
      %v1140 = vpop.permute.xlu0 %1139
      %1141 = vrot.lane.b32.xlu0 %v1134, 48
      %v1142 = vpop.permute.xlu0 %1141
      %1143 = vrot.lane.b32.xlu0 %v1135, 48
      %v1144 = vpop.permute.xlu0 %1143
      %vm1145 = vcmask 392192
      %v1146 = vsel %vm1145, %v1140, %v1142
      %v1147 = vsel %vm1145, %v1142, %v1144
      %1150 = vst [vmem:[#allocation3 + $0x10] sm:$0xff] %v1146
      %1151 = vst [vmem:[#allocation3 + $0x18] sm:$0xff] %v1147
      %v1152 = vld [vmem:[#allocation2] sm:$0xff]
      %v1153 = vld [vmem:[#allocation2 + $0x8] sm:$0xff]
      %v1154 = vld [vmem:[#allocation2 + $0x10] sm:$0xff]
      %v1155 = vadd.s32 %v736, 3
      %v1156 = vadd.s32 %v737, 3
      %vm1157 = vcmp.ge.s32.totalorder %v1155, 0
      %vm1158 = vcmp.ge.s32.totalorder %v1156, 0
      %vm1159 = vcmp.lt.s32.totalorder %v1155, 16
      %vm1160 = vcmp.lt.s32.totalorder %v1156, 16
      %vm1161 = vmand %vm1157, %vm1159
      %vm1162 = vmand %vm1158, %vm1160
      %v1163 = vsel %vm1161, 1, 0
      %v1164 = vsel %vm1162, 1, 0
      %vm1165 = vcmp.eq.s32.totalorder %v1163, 1
      %vm1166 = vcmp.eq.s32.totalorder %v1164, 1
      %1170 = vrot.lane.b32.xlu0 %v1152, 45
      %v1171 = vpop.permute.xlu0 %1170
      %1172 = vrot.lane.b32.xlu0 %v1153, 45
      %v1173 = vpop.permute.xlu0 %1172
      %1174 = vrot.lane.b32.xlu0 %v1154, 45
      %v1175 = vpop.permute.xlu0 %1174
      %vm1176 = vcmask 367616
      %v1177 = vsel %vm1176, %v1171, %v1173
      %v1178 = vsel %vm1176, %v1173, %v1175
      %v1181 = vsel %vm1165, %v1177, 0.0
      %v1182 = vsel %vm1166, %v1178, 0.0
      %1183 = vst [vmem:[#allocation3 + $0x20] sm:$0xff] %v1181
      %1184 = vst [vmem:[#allocation3 + $0x28] sm:$0xff] %v1182
      %v1185 = vld [vmem:[#allocation2] sm:$0xff]
      %v1186 = vld [vmem:[#allocation2 + $0x8] sm:$0xff]
      %v1187 = vld [vmem:[#allocation2 + $0x10] sm:$0xff]
      %1191 = vrot.lane.b32.xlu0 %v1185, 3
      %v1192 = vpop.permute.xlu0 %1191
      %1193 = vrot.lane.b32.xlu0 %v1186, 3
      %v1194 = vpop.permute.xlu0 %1193
      %1195 = vrot.lane.b32.xlu0 %v1187, 3
      %v1196 = vpop.permute.xlu0 %1195
      %vm1197 = vcmask 23552
      %v1198 = vsel %vm1197, %v1192, %v1194
      %v1199 = vsel %vm1197, %v1194, %v1196
      %v1202 = vsel %vm1113, %v1198, 0.0
      %v1203 = vsel %vm1114, %v1199, 0.0
      %1204 = vst [vmem:[#allocation3 + $0x30] sm:$0xff] %v1202
      %1205 = vst [vmem:[#allocation3 + $0x38] sm:$0xff] %v1203
      %1206 = vst [vmem:[#allocation3 + $0x40] sm:$0xff] %v1076
      %1207 = vst [vmem:[#allocation3 + $0x48] sm:$0xff] %v1096
      %v1208 = vld [vmem:[#allocation2 + $0x8] sm:$0xff]
      %v1209 = vld [vmem:[#allocation2 + $0x10] sm:$0xff]
      %v1210 = vld [vmem:[#allocation2 + $0x18] sm:$0xff]
      %1214 = vrot.lane.b32.xlu0 %v1208, 125
      %v1215 = vpop.permute.xlu0 %1214
      %1216 = vrot.lane.b32.xlu0 %v1209, 125
      %v1217 = vpop.permute.xlu0 %1216
      %1218 = vrot.lane.b32.xlu0 %v1210, 125
      %v1219 = vpop.permute.xlu0 %1218
      %vm1220 = vcmask 1022976
      %v1221 = vsel %vm1220, %v1215, %v1217
      %v1222 = vsel %vm1220, %v1217, %v1219
      %v1225 = vsel %vm1165, %v1221, 0.0
      %v1226 = vsel %vm1166, %v1222, 0.0
      %1227 = vst [vmem:[#allocation3 + $0x50] sm:$0xff] %v1225
      %1228 = vst [vmem:[#allocation3 + $0x58] sm:$0xff] %v1226
      %v1229 = vld [vmem:[#allocation2 + $0x8] sm:$0xff]
      %v1230 = vld [vmem:[#allocation2 + $0x10] sm:$0xff]
      %v1231 = vld [vmem:[#allocation2 + $0x18] sm:$0xff]
      %1235 = vrot.lane.b32.xlu0 %v1229, 83
      %v1236 = vpop.permute.xlu0 %1235
      %1237 = vrot.lane.b32.xlu0 %v1230, 83
      %v1238 = vpop.permute.xlu0 %1237
      %1239 = vrot.lane.b32.xlu0 %v1231, 83
      %v1240 = vpop.permute.xlu0 %1239
      %vm1241 = vcmask 678912
      %v1242 = vsel %vm1241, %v1236, %v1238
      %v1243 = vsel %vm1241, %v1238, %v1240
      %v1246 = vsel %vm1113, %v1242, 0.0
      %v1247 = vsel %vm1114, %v1243, 0.0
      %1248 = vst [vmem:[#allocation3 + $0x60] sm:$0xff] %v1246
      %1249 = vst [vmem:[#allocation3 + $0x68] sm:$0xff] %v1247
      %v1250 = vld [vmem:[#allocation2 + $0x8] sm:$0xff]
      %v1251 = vld [vmem:[#allocation2 + $0x10] sm:$0xff]
      %v1252 = vld [vmem:[#allocation2 + $0x18] sm:$0xff]
      %1256 = vrot.lane.b32.xlu0 %v1250, 80
      %v1257 = vpop.permute.xlu0 %1256
      %1258 = vrot.lane.b32.xlu0 %v1251, 80
      %v1259 = vpop.permute.xlu0 %1258
      %1260 = vrot.lane.b32.xlu0 %v1252, 80
      %v1261 = vpop.permute.xlu0 %1260
      %vm1262 = vcmask 654336
      %v1263 = vsel %vm1262, %v1257, %v1259
      %v1264 = vsel %vm1262, %v1259, %v1261
      %1267 = vst [vmem:[#allocation3 + $0x70] sm:$0xff] %v1263
      %1268 = vst [vmem:[#allocation3 + $0x78] sm:$0xff] %v1264
      %v1269 = vld [vmem:[#allocation2 + $0x8] sm:$0xff]
      %v1270 = vld [vmem:[#allocation2 + $0x10] sm:$0xff]
      %v1271 = vld [vmem:[#allocation2 + $0x18] sm:$0xff]
      %1275 = vrot.lane.b32.xlu0 %v1269, 77
      %v1276 = vpop.permute.xlu0 %1275
      %1277 = vrot.lane.b32.xlu0 %v1270, 77
      %v1278 = vpop.permute.xlu0 %1277
      %1279 = vrot.lane.b32.xlu0 %v1271, 77
      %v1280 = vpop.permute.xlu0 %1279
      %vm1281 = vcmask 629760
      %v1282 = vsel %vm1281, %v1276, %v1278
      %v1283 = vsel %vm1281, %v1278, %v1280
      %v1286 = vsel %vm1165, %v1282, 0.0
      %v1287 = vsel %vm1166, %v1283, 0.0
      %1288 = vst [vmem:[#allocation3 + $0x80] sm:$0xff] %v1286
      %1289 = vst [vmem:[#allocation3 + $0x88] sm:$0xff] %v1287
      %v1290 = vld [vmem:[%s7] sm:$0xff]
      %v1291 = vld [vmem:[#allocation3] sm:$0xff]
      %v1292 = vld [vmem:[#allocation3 + $0x8] sm:$0xff]
      %v1293 = vld [vmem:[#allocation3 + $0x10] sm:$0xff]
      %v1294 = vld [vmem:[#allocation3 + $0x18] sm:$0xff]
      %v1295 = vld [vmem:[#allocation3 + $0x20] sm:$0xff]
      %v1296 = vld [vmem:[#allocation3 + $0x28] sm:$0xff]
      %v1297 = vld [vmem:[#allocation3 + $0x30] sm:$0xff]
      %v1298 = vld [vmem:[#allocation3 + $0x38] sm:$0xff]
      %v1299 = vld [vmem:[#allocation3 + $0x40] sm:$0xff]
      %v1300 = vld [vmem:[#allocation3 + $0x48] sm:$0xff]
      %v1301 = vld [vmem:[#allocation3 + $0x50] sm:$0xff]
      %v1302 = vld [vmem:[#allocation3 + $0x58] sm:$0xff]
      %v1303 = vld [vmem:[#allocation3 + $0x60] sm:$0xff]
      %v1304 = vld [vmem:[#allocation3 + $0x68] sm:$0xff]
      %v1305 = vld [vmem:[#allocation3 + $0x70] sm:$0xff]
      %v1306 = vld [vmem:[#allocation3 + $0x78] sm:$0xff]
      %v1307 = vld [vmem:[#allocation3 + $0x80] sm:$0xff]
      %v1308 = vld [vmem:[#allocation3 + $0x88] sm:$0xff]
      %v1309 = vld [vmem:[%s8] sm:$0xff]
      %1311 = vset.pattern.permute.xlu0 0
      %1312 = vperm.xlu0 %1311, %v1309
      %v1313 = vpop.permute.xlu0 %1312
      %vm1315 = vcmask 588800
      %v1317 = vsel %vm1315, %v1290, 0
      %1319 = vmatpush.msra.mxu0 0.0
      %1320 = vmatpush.msra.mxu0 0.0
      %1321 = vmatpush.msra.mxu0 0.0
      %1322 = vmatpush.msra.mxu0 0.0
      %1323 = vmatpush.msra.mxu0 0.0
      %1324 = vmatpush.msra.mxu0 0.0
      %1325 = vmatpush.msra.mxu0 0.0
      %1326 = vmatpush.msra.mxu0 %v1307
      %1327 = vmatpush.msra.mxu0 %v1305
      %1328 = vmatpush.msra.mxu0 %v1303
      %1329 = vmatpush.msra.mxu0 %v1301
      %1330 = vmatpush.msra.mxu0 %v1299
      %1331 = vmatpush.msra.mxu0 %v1297
      %1332 = vmatpush.msra.mxu0 %v1295
      %1333 = vmatpush.msra.mxu0 %v1293
      %1334 = vmatpush.msra.mxu0 %v1291
      %1335 = vmatmul.f32.gmra.mxu0 %v1317
      %v1336 = vpop.f32.mrf.mxu0
      %v1337 = vadd.f32 %v1313, %v1336
      %1338 = vdwg.mxu0
      %1339 = vmatpush.msra.mxu0 0.0
      %1340 = vmatpush.msra.mxu0 0.0
      %1341 = vmatpush.msra.mxu0 0.0
      %1342 = vmatpush.msra.mxu0 0.0
      %1343 = vmatpush.msra.mxu0 0.0
      %1344 = vmatpush.msra.mxu0 0.0
      %1345 = vmatpush.msra.mxu0 0.0
      %1346 = vmatpush.msra.mxu0 %v1308
      %1347 = vmatpush.msra.mxu0 %v1306
      %1348 = vmatpush.msra.mxu0 %v1304
      %1349 = vmatpush.msra.mxu0 %v1302
      %1350 = vmatpush.msra.mxu0 %v1300
      %1351 = vmatpush.msra.mxu0 %v1298
      %1352 = vmatpush.msra.mxu0 %v1296
      %1353 = vmatpush.msra.mxu0 %v1294
      %1354 = vmatpush.msra.mxu0 %v1292
      %1355 = vmatmul.f32.gmra.mxu0 %v1317
      %v1356 = vpop.f32.mrf.mxu0
      %v1357 = vadd.f32 %v1313, %v1356
      %1358 = vdwg.mxu0
      %1359 = vst [vmem:[#allocation4 + $0x10] sm:$0xff] %v1337
      %1360 = vst [vmem:[#allocation4 + $0x18] sm:$0xff] %v1357
      %1361 = vst [vmem:[#allocation2 + $0x8] sm:$0xff] %v831
      %1362 = vst [vmem:[#allocation2 + $0x10] sm:$0xff] %v863
      %v1363 = vld [vmem:[#allocation2] sm:$0xff]
      %v1364 = vld [vmem:[#allocation2 + $0x8] sm:$0xff]
      %v1365 = vld [vmem:[#allocation2 + $0x10] sm:$0xff]
      %v1366 = vadd.s32 %v736, 4294967294
      %v1367 = vadd.s32 %v737, 4294967294
      %vm1368 = vcmp.ge.s32.totalorder %v1366, 0
      %vm1369 = vcmp.ge.s32.totalorder %v1367, 0
      %vm1370 = vcmp.lt.s32.totalorder %v1366, 16
      %vm1371 = vcmp.lt.s32.totalorder %v1367, 16
      %vm1372 = vmand %vm1368, %vm1370
      %vm1373 = vmand %vm1369, %vm1371
      %v1374 = vsel %vm1372, 1, 0
      %v1375 = vsel %vm1373, 1, 0
      %vm1376 = vcmp.eq.s32.totalorder %v1374, 1
      %vm1377 = vcmp.eq.s32.totalorder %v1375, 1
      %1381 = vrot.lane.b32.xlu0 %v1363, 2
      %v1382 = vpop.permute.xlu0 %1381
      %1383 = vrot.lane.b32.xlu0 %v1364, 2
      %v1384 = vpop.permute.xlu0 %1383
      %1385 = vrot.lane.b32.xlu0 %v1365, 2
      %v1386 = vpop.permute.xlu0 %1385
      %vm1387 = vcmask 15360
      %v1388 = vsel %vm1387, %v1382, %v1384
      %v1389 = vsel %vm1387, %v1384, %v1386
      %v1392 = vsel %vm1376, %v1388, 0.0
      %v1393 = vsel %vm1377, %v1389, 0.0
      %1394 = vst [vmem:[#allocation3] sm:$0xff] %v1392
      %1395 = vst [vmem:[#allocation3 + $0x8] sm:$0xff] %v1393
      %v1396 = vld [vmem:[#allocation2] sm:$0xff]
      %v1397 = vld [vmem:[#allocation2 + $0x8] sm:$0xff]
      %v1398 = vld [vmem:[#allocation2 + $0x10] sm:$0xff]
      %1402 = vrot.lane.b32.xlu0 %v1396, 1
      %v1403 = vpop.permute.xlu0 %1402
      %1404 = vrot.lane.b32.xlu0 %v1397, 1
      %v1405 = vpop.permute.xlu0 %1404
      %1406 = vrot.lane.b32.xlu0 %v1398, 1
      %v1407 = vpop.permute.xlu0 %1406
      %v1408 = vsel %vm899, %v1403, %v1405
      %v1409 = vsel %vm899, %v1405, %v1407
      %v1412 = vsel %vm888, %v1408, 0.0
      %v1413 = vsel %vm889, %v1409, 0.0
      %1414 = vst [vmem:[#allocation3 + $0x10] sm:$0xff] %v1412
      %1415 = vst [vmem:[#allocation3 + $0x18] sm:$0xff] %v1413
      %1416 = vst [vmem:[#allocation3 + $0x20] sm:$0xff] %v831
      %1417 = vst [vmem:[#allocation3 + $0x28] sm:$0xff] %v863
      %v1418 = vld [vmem:[#allocation2 + $0x8] sm:$0xff]
      %v1419 = vld [vmem:[#allocation2 + $0x10] sm:$0xff]
      %v1420 = vld [vmem:[#allocation2 + $0x18] sm:$0xff]
      %1424 = vrot.lane.b32.xlu0 %v1418, 127
      %v1425 = vpop.permute.xlu0 %1424
      %1426 = vrot.lane.b32.xlu0 %v1419, 127
      %v1427 = vpop.permute.xlu0 %1426
      %1428 = vrot.lane.b32.xlu0 %v1420, 127
      %v1429 = vpop.permute.xlu0 %1428
      %v1430 = vsel %vm934, %v1425, %v1427
      %v1431 = vsel %vm934, %v1427, %v1429
      %v1434 = vsel %vm923, %v1430, 0.0
      %v1435 = vsel %vm924, %v1431, 0.0
      %1436 = vst [vmem:[#allocation3 + $0x30] sm:$0xff] %v1434
      %1437 = vst [vmem:[#allocation3 + $0x38] sm:$0xff] %v1435
      %v1438 = vld [vmem:[#allocation2 + $0x8] sm:$0xff]
      %v1439 = vld [vmem:[#allocation2 + $0x10] sm:$0xff]
      %v1440 = vld [vmem:[#allocation2 + $0x18] sm:$0xff]
      %v1441 = vadd.s32 %v736, 2
      %v1442 = vadd.s32 %v737, 2
      %vm1443 = vcmp.ge.s32.totalorder %v1441, 0
      %vm1444 = vcmp.ge.s32.totalorder %v1442, 0
      %vm1445 = vcmp.lt.s32.totalorder %v1441, 16
      %vm1446 = vcmp.lt.s32.totalorder %v1442, 16
      %vm1447 = vmand %vm1443, %vm1445
      %vm1448 = vmand %vm1444, %vm1446
      %v1449 = vsel %vm1447, 1, 0
      %v1450 = vsel %vm1448, 1, 0
      %vm1451 = vcmp.eq.s32.totalorder %v1449, 1
      %vm1452 = vcmp.eq.s32.totalorder %v1450, 1
      %1456 = vrot.lane.b32.xlu0 %v1438, 126
      %v1457 = vpop.permute.xlu0 %1456
      %1458 = vrot.lane.b32.xlu0 %v1439, 126
      %v1459 = vpop.permute.xlu0 %1458
      %1460 = vrot.lane.b32.xlu0 %v1440, 126
      %v1461 = vpop.permute.xlu0 %1460
      %vm1462 = vcmask 1031168
      %v1463 = vsel %vm1462, %v1457, %v1459
      %v1464 = vsel %vm1462, %v1459, %v1461
      %v1467 = vsel %vm1451, %v1463, 0.0
      %v1468 = vsel %vm1452, %v1464, 0.0
      %1469 = vst [vmem:[#allocation3 + $0x40] sm:$0xff] %v1467
      %1470 = vst [vmem:[#allocation3 + $0x48] sm:$0xff] %v1468
      %v1471 = vld [vmem:[%s9] sm:$0xff]
      %v1472 = vld [vmem:[#allocation3] sm:$0xff]
      %v1473 = vld [vmem:[#allocation3 + $0x8] sm:$0xff]
      %v1474 = vld [vmem:[#allocation3 + $0x10] sm:$0xff]
      %v1475 = vld [vmem:[#allocation3 + $0x18] sm:$0xff]
      %v1476 = vld [vmem:[#allocation3 + $0x20] sm:$0xff]
      %v1477 = vld [vmem:[#allocation3 + $0x28] sm:$0xff]
      %v1478 = vld [vmem:[#allocation3 + $0x30] sm:$0xff]
      %v1479 = vld [vmem:[#allocation3 + $0x38] sm:$0xff]
      %v1480 = vld [vmem:[#allocation3 + $0x40] sm:$0xff]
      %v1481 = vld [vmem:[#allocation3 + $0x48] sm:$0xff]
      %v1482 = vld [vmem:[%s10] sm:$0xff]
      %1484 = vset.pattern.permute.xlu0 0
      %1485 = vperm.xlu0 %1484, %v1482
      %v1486 = vpop.permute.xlu0 %1485
      %vm1488 = vcmask 326656
      %v1490 = vsel %vm1488, %v1471, 0
      %1492 = vmatpush.msra.mxu0 0.0
      %1493 = vmatpush.msra.mxu0 0.0
      %1494 = vmatpush.msra.mxu0 0.0
      %1495 = vmatpush.msra.mxu0 0.0
      %1496 = vmatpush.msra.mxu0 0.0
      %1497 = vmatpush.msra.mxu0 0.0
      %1498 = vmatpush.msra.mxu0 0.0
      %1499 = vmatpush.msra.mxu0 0.0
      %1500 = vmatpush.msra.mxu0 0.0
      %1501 = vmatpush.msra.mxu0 0.0
      %1502 = vmatpush.msra.mxu0 0.0
      %1503 = vmatpush.msra.mxu0 %v1480
      %1504 = vmatpush.msra.mxu0 %v1478
      %1505 = vmatpush.msra.mxu0 %v1476
      %1506 = vmatpush.msra.mxu0 %v1474
      %1507 = vmatpush.msra.mxu0 %v1472
      %1508 = vmatmul.f32.gmra.mxu0 %v1490
      %v1509 = vpop.f32.mrf.mxu0
      %v1510 = vadd.f32 %v1486, %v1509
      %1511 = vdwg.mxu0
      %1512 = vmatpush.msra.mxu0 0.0
      %1513 = vmatpush.msra.mxu0 0.0
      %1514 = vmatpush.msra.mxu0 0.0
      %1515 = vmatpush.msra.mxu0 0.0
      %1516 = vmatpush.msra.mxu0 0.0
      %1517 = vmatpush.msra.mxu0 0.0
      %1518 = vmatpush.msra.mxu0 0.0
      %1519 = vmatpush.msra.mxu0 0.0
      %1520 = vmatpush.msra.mxu0 0.0
      %1521 = vmatpush.msra.mxu0 0.0
      %1522 = vmatpush.msra.mxu0 0.0
      %1523 = vmatpush.msra.mxu0 %v1481
      %1524 = vmatpush.msra.mxu0 %v1479
      %1525 = vmatpush.msra.mxu0 %v1477
      %1526 = vmatpush.msra.mxu0 %v1475
      %1527 = vmatpush.msra.mxu0 %v1473
      %1528 = vmatmul.f32.gmra.mxu0 %v1490
      %v1529 = vpop.f32.mrf.mxu0
      %v1530 = vadd.f32 %v1486, %v1529
      %1531 = vdwg.mxu0
      %1532 = vst [vmem:[#allocation2 + $0x8] sm:$0xff] %v1510
      %1533 = vst [vmem:[#allocation2 + $0x10] sm:$0xff] %v1530
      %v1534 = vld [vmem:[#allocation2] sm:$0xff]
      %v1535 = vld [vmem:[#allocation2 + $0x8] sm:$0xff]
      %v1536 = vld [vmem:[#allocation2 + $0x10] sm:$0xff]
      %1540 = vrot.lane.b32.xlu0 %v1534, 32
      %v1541 = vpop.permute.xlu0 %1540
      %1542 = vrot.lane.b32.xlu0 %v1535, 32
      %v1543 = vpop.permute.xlu0 %1542
      %1544 = vrot.lane.b32.xlu0 %v1536, 32
      %v1545 = vpop.permute.xlu0 %1544
      %vm1546 = vcmask 261120
      %v1547 = vsel %vm1546, %v1541, %v1543
      %v1548 = vsel %vm1546, %v1543, %v1545
      %1551 = vst [vmem:[#allocation3] sm:$0xff] %v1547
      %1552 = vst [vmem:[#allocation3 + $0x8] sm:$0xff] %v1548
      %v1553 = vld [vmem:[#allocation2] sm:$0xff]
      %v1554 = vld [vmem:[#allocation2 + $0x8] sm:$0xff]
      %v1555 = vld [vmem:[#allocation2 + $0x10] sm:$0xff]
      %1559 = vrot.lane.b32.xlu0 %v1553, 16
      %v1560 = vpop.permute.xlu0 %1559
      %1561 = vrot.lane.b32.xlu0 %v1554, 16
      %v1562 = vpop.permute.xlu0 %1561
      %1563 = vrot.lane.b32.xlu0 %v1555, 16
      %v1564 = vpop.permute.xlu0 %1563
      %v1565 = vsel %vm1014, %v1560, %v1562
      %v1566 = vsel %vm1014, %v1562, %v1564
      %1569 = vst [vmem:[#allocation3 + $0x10] sm:$0xff] %v1565
      %1570 = vst [vmem:[#allocation3 + $0x18] sm:$0xff] %v1566
      %1571 = vst [vmem:[#allocation3 + $0x20] sm:$0xff] %v1510
      %1572 = vst [vmem:[#allocation3 + $0x28] sm:$0xff] %v1530
      %v1573 = vld [vmem:[#allocation2 + $0x8] sm:$0xff]
      %v1574 = vld [vmem:[#allocation2 + $0x10] sm:$0xff]
      %v1575 = vld [vmem:[#allocation2 + $0x18] sm:$0xff]
      %1579 = vrot.lane.b32.xlu0 %v1573, 112
      %v1580 = vpop.permute.xlu0 %1579
      %1581 = vrot.lane.b32.xlu0 %v1574, 112
      %v1582 = vpop.permute.xlu0 %1581
      %1583 = vrot.lane.b32.xlu0 %v1575, 112
      %v1584 = vpop.permute.xlu0 %1583
      %v1585 = vsel %vm1035, %v1580, %v1582
      %v1586 = vsel %vm1035, %v1582, %v1584
      %1589 = vst [vmem:[#allocation3 + $0x30] sm:$0xff] %v1585
      %1590 = vst [vmem:[#allocation3 + $0x38] sm:$0xff] %v1586
      %v1591 = vld [vmem:[#allocation2 + $0x8] sm:$0xff]
      %v1592 = vld [vmem:[#allocation2 + $0x10] sm:$0xff]
      %v1593 = vld [vmem:[#allocation2 + $0x18] sm:$0xff]
      %1597 = vrot.lane.b32.xlu0 %v1591, 96
      %v1598 = vpop.permute.xlu0 %1597
      %1599 = vrot.lane.b32.xlu0 %v1592, 96
      %v1600 = vpop.permute.xlu0 %1599
      %1601 = vrot.lane.b32.xlu0 %v1593, 96
      %v1602 = vpop.permute.xlu0 %1601
      %vm1603 = vcmask 785408
      %v1604 = vsel %vm1603, %v1598, %v1600
      %v1605 = vsel %vm1603, %v1600, %v1602
      %1608 = vst [vmem:[#allocation3 + $0x40] sm:$0xff] %v1604
      %1609 = vst [vmem:[#allocation3 + $0x48] sm:$0xff] %v1605
      %v1610 = vld [vmem:[%s11] sm:$0xff]
      %v1611 = vld [vmem:[#allocation3] sm:$0xff]
      %v1612 = vld [vmem:[#allocation3 + $0x8] sm:$0xff]
      %v1613 = vld [vmem:[#allocation3 + $0x10] sm:$0xff]
      %v1614 = vld [vmem:[#allocation3 + $0x18] sm:$0xff]
      %v1615 = vld [vmem:[#allocation3 + $0x20] sm:$0xff]
      %v1616 = vld [vmem:[#allocation3 + $0x28] sm:$0xff]
      %v1617 = vld [vmem:[#allocation3 + $0x30] sm:$0xff]
      %v1618 = vld [vmem:[#allocation3 + $0x38] sm:$0xff]
      %v1619 = vld [vmem:[#allocation3 + $0x40] sm:$0xff]
      %v1620 = vld [vmem:[#allocation3 + $0x48] sm:$0xff]
      %v1621 = vld [vmem:[%s12] sm:$0xff]
      %1623 = vset.pattern.permute.xlu0 0
      %1624 = vperm.xlu0 %1623, %v1621
      %v1625 = vpop.permute.xlu0 %1624
      %v1628 = vsel %vm1488, %v1610, 0
      %1630 = vmatpush.msra.mxu0 0.0
      %1631 = vmatpush.msra.mxu0 0.0
      %1632 = vmatpush.msra.mxu0 0.0
      %1633 = vmatpush.msra.mxu0 0.0
      %1634 = vmatpush.msra.mxu0 0.0
      %1635 = vmatpush.msra.mxu0 0.0
      %1636 = vmatpush.msra.mxu0 0.0
      %1637 = vmatpush.msra.mxu0 0.0
      %1638 = vmatpush.msra.mxu0 0.0
      %1639 = vmatpush.msra.mxu0 0.0
      %1640 = vmatpush.msra.mxu0 0.0
      %1641 = vmatpush.msra.mxu0 %v1619
      %1642 = vmatpush.msra.mxu0 %v1617
      %1643 = vmatpush.msra.mxu0 %v1615
      %1644 = vmatpush.msra.mxu0 %v1613
      %1645 = vmatpush.msra.mxu0 %v1611
      %1646 = vmatmul.f32.gmra.mxu0 %v1628
      %v1647 = vpop.f32.mrf.mxu0
      %v1648 = vadd.f32 %v1625, %v1647
      %1649 = vdwg.mxu0
      %1650 = vmatpush.msra.mxu0 0.0
      %1651 = vmatpush.msra.mxu0 0.0
      %1652 = vmatpush.msra.mxu0 0.0
      %1653 = vmatpush.msra.mxu0 0.0
      %1654 = vmatpush.msra.mxu0 0.0
      %1655 = vmatpush.msra.mxu0 0.0
      %1656 = vmatpush.msra.mxu0 0.0
      %1657 = vmatpush.msra.mxu0 0.0
      %1658 = vmatpush.msra.mxu0 0.0
      %1659 = vmatpush.msra.mxu0 0.0
      %1660 = vmatpush.msra.mxu0 0.0
      %1661 = vmatpush.msra.mxu0 %v1620
      %1662 = vmatpush.msra.mxu0 %v1618
      %1663 = vmatpush.msra.mxu0 %v1616
      %1664 = vmatpush.msra.mxu0 %v1614
      %1665 = vmatpush.msra.mxu0 %v1612
      %1666 = vmatmul.f32.gmra.mxu0 %v1628
      %v1667 = vpop.f32.mrf.mxu0
      %v1668 = vadd.f32 %v1625, %v1667
      %1669 = vdwg.mxu0
      %1670 = vst [vmem:[#allocation2 + $0x8] sm:$0xff] %v1648
      %1671 = vst [vmem:[#allocation2 + $0x10] sm:$0xff] %v1668
      %v1672 = vld [vmem:[#allocation2] sm:$0xff]
      %v1673 = vld [vmem:[#allocation2 + $0x8] sm:$0xff]
      %v1674 = vld [vmem:[#allocation2 + $0x10] sm:$0xff]
      %v1675 = vadd.s32 %v736, 4294967291
      %v1676 = vadd.s32 %v737, 4294967291
      %vm1677 = vcmp.ge.s32.totalorder %v1675, 0
      %vm1678 = vcmp.ge.s32.totalorder %v1676, 0
      %vm1679 = vcmp.lt.s32.totalorder %v1675, 16
      %vm1680 = vcmp.lt.s32.totalorder %v1676, 16
      %vm1681 = vmand %vm1677, %vm1679
      %vm1682 = vmand %vm1678, %vm1680
      %v1683 = vsel %vm1681, 1, 0
      %v1684 = vsel %vm1682, 1, 0
      %vm1685 = vcmp.eq.s32.totalorder %v1683, 1
      %vm1686 = vcmp.eq.s32.totalorder %v1684, 1
      %1690 = vrot.lane.b32.xlu0 %v1672, 85
      %v1691 = vpop.permute.xlu0 %1690
      %1692 = vrot.lane.b32.xlu0 %v1673, 85
      %v1693 = vpop.permute.xlu0 %1692
      %1694 = vrot.lane.b32.xlu0 %v1674, 85
      %v1695 = vpop.permute.xlu0 %1694
      %vm1696 = vcmask 695296
      %v1697 = vsel %vm1696, %v1691, %v1693
      %v1698 = vsel %vm1696, %v1693, %v1695
      %v1701 = vsel %vm1685, %v1697, 0.0
      %v1702 = vsel %vm1686, %v1698, 0.0
      %1703 = vst [vmem:[#allocation3] sm:$0xff] %v1701
      %1704 = vst [vmem:[#allocation3 + $0x8] sm:$0xff] %v1702
      %v1705 = vld [vmem:[#allocation2] sm:$0xff]
      %v1706 = vld [vmem:[#allocation2 + $0x8] sm:$0xff]
      %v1707 = vld [vmem:[#allocation2 + $0x10] sm:$0xff]
      %1711 = vrot.lane.b32.xlu0 %v1705, 80
      %v1712 = vpop.permute.xlu0 %1711
      %1713 = vrot.lane.b32.xlu0 %v1706, 80
      %v1714 = vpop.permute.xlu0 %1713
      %1715 = vrot.lane.b32.xlu0 %v1707, 80
      %v1716 = vpop.permute.xlu0 %1715
      %v1717 = vsel %vm1262, %v1712, %v1714
      %v1718 = vsel %vm1262, %v1714, %v1716
      %1721 = vst [vmem:[#allocation3 + $0x10] sm:$0xff] %v1717
      %1722 = vst [vmem:[#allocation3 + $0x18] sm:$0xff] %v1718
      %v1723 = vld [vmem:[#allocation2] sm:$0xff]
      %v1724 = vld [vmem:[#allocation2 + $0x8] sm:$0xff]
      %v1725 = vld [vmem:[#allocation2 + $0x10] sm:$0xff]
      %v1726 = vadd.s32 %v736, 5
      %v1727 = vadd.s32 %v737, 5
      %vm1728 = vcmp.ge.s32.totalorder %v1726, 0
      %vm1729 = vcmp.ge.s32.totalorder %v1727, 0
      %vm1730 = vcmp.lt.s32.totalorder %v1726, 16
      %vm1731 = vcmp.lt.s32.totalorder %v1727, 16
      %vm1732 = vmand %vm1728, %vm1730
      %vm1733 = vmand %vm1729, %vm1731
      %v1734 = vsel %vm1732, 1, 0
      %v1735 = vsel %vm1733, 1, 0
      %vm1736 = vcmp.eq.s32.totalorder %v1734, 1
      %vm1737 = vcmp.eq.s32.totalorder %v1735, 1
      %1741 = vrot.lane.b32.xlu0 %v1723, 75
      %v1742 = vpop.permute.xlu0 %1741
      %1743 = vrot.lane.b32.xlu0 %v1724, 75
      %v1744 = vpop.permute.xlu0 %1743
      %1745 = vrot.lane.b32.xlu0 %v1725, 75
      %v1746 = vpop.permute.xlu0 %1745
      %vm1747 = vcmask 613376
      %v1748 = vsel %vm1747, %v1742, %v1744
      %v1749 = vsel %vm1747, %v1744, %v1746
      %v1752 = vsel %vm1736, %v1748, 0.0
      %v1753 = vsel %vm1737, %v1749, 0.0
      %1754 = vst [vmem:[#allocation3 + $0x20] sm:$0xff] %v1752
      %1755 = vst [vmem:[#allocation3 + $0x28] sm:$0xff] %v1753
      %v1756 = vld [vmem:[#allocation2] sm:$0xff]
      %v1757 = vld [vmem:[#allocation2 + $0x8] sm:$0xff]
      %v1758 = vld [vmem:[#allocation2 + $0x10] sm:$0xff]
      %1762 = vrot.lane.b32.xlu0 %v1756, 5
      %v1763 = vpop.permute.xlu0 %1762
      %1764 = vrot.lane.b32.xlu0 %v1757, 5
      %v1765 = vpop.permute.xlu0 %1764
      %1766 = vrot.lane.b32.xlu0 %v1758, 5
      %v1767 = vpop.permute.xlu0 %1766
      %vm1768 = vcmask 39936
      %v1769 = vsel %vm1768, %v1763, %v1765
      %v1770 = vsel %vm1768, %v1765, %v1767
      %v1773 = vsel %vm1685, %v1769, 0.0
      %v1774 = vsel %vm1686, %v1770, 0.0
      %1775 = vst [vmem:[#allocation3 + $0x30] sm:$0xff] %v1773
      %1776 = vst [vmem:[#allocation3 + $0x38] sm:$0xff] %v1774
      %1777 = vst [vmem:[#allocation3 + $0x40] sm:$0xff] %v1648
      %1778 = vst [vmem:[#allocation3 + $0x48] sm:$0xff] %v1668
      %v1779 = vld [vmem:[#allocation2 + $0x8] sm:$0xff]
      %v1780 = vld [vmem:[#allocation2 + $0x10] sm:$0xff]
      %v1781 = vld [vmem:[#allocation2 + $0x18] sm:$0xff]
      %1785 = vrot.lane.b32.xlu0 %v1779, 123
      %v1786 = vpop.permute.xlu0 %1785
      %1787 = vrot.lane.b32.xlu0 %v1780, 123
      %v1788 = vpop.permute.xlu0 %1787
      %1789 = vrot.lane.b32.xlu0 %v1781, 123
      %v1790 = vpop.permute.xlu0 %1789
      %vm1791 = vcmask 1006592
      %v1792 = vsel %vm1791, %v1786, %v1788
      %v1793 = vsel %vm1791, %v1788, %v1790
      %v1796 = vsel %vm1736, %v1792, 0.0
      %v1797 = vsel %vm1737, %v1793, 0.0
      %1798 = vst [vmem:[#allocation3 + $0x50] sm:$0xff] %v1796
      %1799 = vst [vmem:[#allocation3 + $0x58] sm:$0xff] %v1797
      %v1800 = vld [vmem:[#allocation2 + $0x8] sm:$0xff]
      %v1801 = vld [vmem:[#allocation2 + $0x10] sm:$0xff]
      %v1802 = vld [vmem:[#allocation2 + $0x18] sm:$0xff]
      %1806 = vrot.lane.b32.xlu0 %v1800, 53
      %v1807 = vpop.permute.xlu0 %1806
      %1808 = vrot.lane.b32.xlu0 %v1801, 53
      %v1809 = vpop.permute.xlu0 %1808
      %1810 = vrot.lane.b32.xlu0 %v1802, 53
      %v1811 = vpop.permute.xlu0 %1810
      %vm1812 = vcmask 433152
      %v1813 = vsel %vm1812, %v1807, %v1809
      %v1814 = vsel %vm1812, %v1809, %v1811
      %v1817 = vsel %vm1685, %v1813, 0.0
      %v1818 = vsel %vm1686, %v1814, 0.0
      %1819 = vst [vmem:[#allocation3 + $0x60] sm:$0xff] %v1817
      %1820 = vst [vmem:[#allocation3 + $0x68] sm:$0xff] %v1818
      %v1821 = vld [vmem:[#allocation2 + $0x8] sm:$0xff]
      %v1822 = vld [vmem:[#allocation2 + $0x10] sm:$0xff]
      %v1823 = vld [vmem:[#allocation2 + $0x18] sm:$0xff]
      %1827 = vrot.lane.b32.xlu0 %v1821, 48
      %v1828 = vpop.permute.xlu0 %1827
      %1829 = vrot.lane.b32.xlu0 %v1822, 48
      %v1830 = vpop.permute.xlu0 %1829
      %1831 = vrot.lane.b32.xlu0 %v1823, 48
      %v1832 = vpop.permute.xlu0 %1831
      %v1833 = vsel %vm1145, %v1828, %v1830
      %v1834 = vsel %vm1145, %v1830, %v1832
      %1837 = vst [vmem:[#allocation3 + $0x70] sm:$0xff] %v1833
      %1838 = vst [vmem:[#allocation3 + $0x78] sm:$0xff] %v1834
      %v1839 = vld [vmem:[#allocation2 + $0x8] sm:$0xff]
      %v1840 = vld [vmem:[#allocation2 + $0x10] sm:$0xff]
      %v1841 = vld [vmem:[#allocation2 + $0x18] sm:$0xff]
      %1845 = vrot.lane.b32.xlu0 %v1839, 43
      %v1846 = vpop.permute.xlu0 %1845
      %1847 = vrot.lane.b32.xlu0 %v1840, 43
      %v1848 = vpop.permute.xlu0 %1847
      %1849 = vrot.lane.b32.xlu0 %v1841, 43
      %v1850 = vpop.permute.xlu0 %1849
      %vm1851 = vcmask 351232
      %v1852 = vsel %vm1851, %v1846, %v1848
      %v1853 = vsel %vm1851, %v1848, %v1850
      %v1856 = vsel %vm1736, %v1852, 0.0
      %v1857 = vsel %vm1737, %v1853, 0.0
      %1858 = vst [vmem:[#allocation3 + $0x80] sm:$0xff] %v1856
      %1859 = vst [vmem:[#allocation3 + $0x88] sm:$0xff] %v1857
      %v1860 = vld [vmem:[%s13] sm:$0xff]
      %v1861 = vld [vmem:[#allocation3] sm:$0xff]
      %v1862 = vld [vmem:[#allocation3 + $0x8] sm:$0xff]
      %v1863 = vld [vmem:[#allocation3 + $0x10] sm:$0xff]
      %v1864 = vld [vmem:[#allocation3 + $0x18] sm:$0xff]
      %v1865 = vld [vmem:[#allocation3 + $0x20] sm:$0xff]
      %v1866 = vld [vmem:[#allocation3 + $0x28] sm:$0xff]
      %v1867 = vld [vmem:[#allocation3 + $0x30] sm:$0xff]
      %v1868 = vld [vmem:[#allocation3 + $0x38] sm:$0xff]
      %v1869 = vld [vmem:[#allocation3 + $0x40] sm:$0xff]
      %v1870 = vld [vmem:[#allocation3 + $0x48] sm:$0xff]
      %v1871 = vld [vmem:[#allocation3 + $0x50] sm:$0xff]
      %v1872 = vld [vmem:[#allocation3 + $0x58] sm:$0xff]
      %v1873 = vld [vmem:[#allocation3 + $0x60] sm:$0xff]
      %v1874 = vld [vmem:[#allocation3 + $0x68] sm:$0xff]
      %v1875 = vld [vmem:[#allocation3 + $0x70] sm:$0xff]
      %v1876 = vld [vmem:[#allocation3 + $0x78] sm:$0xff]
      %v1877 = vld [vmem:[#allocation3 + $0x80] sm:$0xff]
      %v1878 = vld [vmem:[#allocation3 + $0x88] sm:$0xff]
      %v1879 = vld [vmem:[%s14] sm:$0xff]
      %1881 = vset.pattern.permute.xlu0 0
      %1882 = vperm.xlu0 %1881, %v1879
      %v1883 = vpop.permute.xlu0 %1882
      %v1886 = vsel %vm1315, %v1860, 0
      %1888 = vmatpush.msra.mxu0 0.0
      %1889 = vmatpush.msra.mxu0 0.0
      %1890 = vmatpush.msra.mxu0 0.0
      %1891 = vmatpush.msra.mxu0 0.0
      %1892 = vmatpush.msra.mxu0 0.0
      %1893 = vmatpush.msra.mxu0 0.0
      %1894 = vmatpush.msra.mxu0 0.0
      %1895 = vmatpush.msra.mxu0 %v1877
      %1896 = vmatpush.msra.mxu0 %v1875
      %1897 = vmatpush.msra.mxu0 %v1873
      %1898 = vmatpush.msra.mxu0 %v1871
      %1899 = vmatpush.msra.mxu0 %v1869
      %1900 = vmatpush.msra.mxu0 %v1867
      %1901 = vmatpush.msra.mxu0 %v1865
      %1902 = vmatpush.msra.mxu0 %v1863
      %1903 = vmatpush.msra.mxu0 %v1861
      %1904 = vmatmul.f32.gmra.mxu0 %v1886
      %v1905 = vpop.f32.mrf.mxu0
      %v1906 = vadd.f32 %v1883, %v1905
      %1907 = vdwg.mxu0
      %1908 = vmatpush.msra.mxu0 0.0
      %1909 = vmatpush.msra.mxu0 0.0
      %1910 = vmatpush.msra.mxu0 0.0
      %1911 = vmatpush.msra.mxu0 0.0
      %1912 = vmatpush.msra.mxu0 0.0
      %1913 = vmatpush.msra.mxu0 0.0
      %1914 = vmatpush.msra.mxu0 0.0
      %1915 = vmatpush.msra.mxu0 %v1878
      %1916 = vmatpush.msra.mxu0 %v1876
      %1917 = vmatpush.msra.mxu0 %v1874
      %1918 = vmatpush.msra.mxu0 %v1872
      %1919 = vmatpush.msra.mxu0 %v1870
      %1920 = vmatpush.msra.mxu0 %v1868
      %1921 = vmatpush.msra.mxu0 %v1866
      %1922 = vmatpush.msra.mxu0 %v1864
      %1923 = vmatpush.msra.mxu0 %v1862
      %1924 = vmatmul.f32.gmra.mxu0 %v1886
      %v1925 = vpop.f32.mrf.mxu0
      %v1926 = vadd.f32 %v1883, %v1925
      %1927 = vdwg.mxu0
      %1928 = vst [vmem:[#allocation4 + $0x20] sm:$0xff] %v1906
      %1929 = vst [vmem:[#allocation4 + $0x28] sm:$0xff] %v1926
      %1930 = vst [vmem:[#allocation2 + $0x8] sm:$0xff] %v834
      %1931 = vst [vmem:[#allocation2 + $0x10] sm:$0xff] %v866
      %v1932 = vld [vmem:[#allocation2] sm:$0xff]
      %v1933 = vld [vmem:[#allocation2 + $0x8] sm:$0xff]
      %v1934 = vld [vmem:[#allocation2 + $0x10] sm:$0xff]
      %1938 = vrot.lane.b32.xlu0 %v1932, 3
      %v1939 = vpop.permute.xlu0 %1938
      %1940 = vrot.lane.b32.xlu0 %v1933, 3
      %v1941 = vpop.permute.xlu0 %1940
      %1942 = vrot.lane.b32.xlu0 %v1934, 3
      %v1943 = vpop.permute.xlu0 %1942
      %v1944 = vsel %vm1197, %v1939, %v1941
      %v1945 = vsel %vm1197, %v1941, %v1943
      %v1948 = vsel %vm1113, %v1944, 0.0
      %v1949 = vsel %vm1114, %v1945, 0.0
      %1950 = vst [vmem:[#allocation3] sm:$0xff] %v1948
      %1951 = vst [vmem:[#allocation3 + $0x8] sm:$0xff] %v1949
      %v1952 = vld [vmem:[#allocation2] sm:$0xff]
      %v1953 = vld [vmem:[#allocation2 + $0x8] sm:$0xff]
      %v1954 = vld [vmem:[#allocation2 + $0x10] sm:$0xff]
      %1958 = vrot.lane.b32.xlu0 %v1952, 2
      %v1959 = vpop.permute.xlu0 %1958
      %1960 = vrot.lane.b32.xlu0 %v1953, 2
      %v1961 = vpop.permute.xlu0 %1960
      %1962 = vrot.lane.b32.xlu0 %v1954, 2
      %v1963 = vpop.permute.xlu0 %1962
      %v1964 = vsel %vm1387, %v1959, %v1961
      %v1965 = vsel %vm1387, %v1961, %v1963
      %v1968 = vsel %vm1376, %v1964, 0.0
      %v1969 = vsel %vm1377, %v1965, 0.0
      %1970 = vst [vmem:[#allocation3 + $0x10] sm:$0xff] %v1968
      %1971 = vst [vmem:[#allocation3 + $0x18] sm:$0xff] %v1969
      %v1972 = vld [vmem:[#allocation2] sm:$0xff]
      %v1973 = vld [vmem:[#allocation2 + $0x8] sm:$0xff]
      %v1974 = vld [vmem:[#allocation2 + $0x10] sm:$0xff]
      %1978 = vrot.lane.b32.xlu0 %v1972, 1
      %v1979 = vpop.permute.xlu0 %1978
      %1980 = vrot.lane.b32.xlu0 %v1973, 1
      %v1981 = vpop.permute.xlu0 %1980
      %1982 = vrot.lane.b32.xlu0 %v1974, 1
      %v1983 = vpop.permute.xlu0 %1982
      %v1984 = vsel %vm899, %v1979, %v1981
      %v1985 = vsel %vm899, %v1981, %v1983
      %v1988 = vsel %vm888, %v1984, 0.0
      %v1989 = vsel %vm889, %v1985, 0.0
      %1990 = vst [vmem:[#allocation3 + $0x20] sm:$0xff] %v1988
      %1991 = vst [vmem:[#allocation3 + $0x28] sm:$0xff] %v1989
      %1992 = vst [vmem:[#allocation3 + $0x30] sm:$0xff] %v834
      %1993 = vst [vmem:[#allocation3 + $0x38] sm:$0xff] %v866
      %v1994 = vld [vmem:[#allocation2 + $0x8] sm:$0xff]
      %v1995 = vld [vmem:[#allocation2 + $0x10] sm:$0xff]
      %v1996 = vld [vmem:[#allocation2 + $0x18] sm:$0xff]
      %2000 = vrot.lane.b32.xlu0 %v1994, 127
      %v2001 = vpop.permute.xlu0 %2000
      %2002 = vrot.lane.b32.xlu0 %v1995, 127
      %v2003 = vpop.permute.xlu0 %2002
      %2004 = vrot.lane.b32.xlu0 %v1996, 127
      %v2005 = vpop.permute.xlu0 %2004
      %v2006 = vsel %vm934, %v2001, %v2003
      %v2007 = vsel %vm934, %v2003, %v2005
      %v2010 = vsel %vm923, %v2006, 0.0
      %v2011 = vsel %vm924, %v2007, 0.0
      %2012 = vst [vmem:[#allocation3 + $0x40] sm:$0xff] %v2010
      %2013 = vst [vmem:[#allocation3 + $0x48] sm:$0xff] %v2011
      %v2014 = vld [vmem:[#allocation2 + $0x8] sm:$0xff]
      %v2015 = vld [vmem:[#allocation2 + $0x10] sm:$0xff]
      %v2016 = vld [vmem:[#allocation2 + $0x18] sm:$0xff]
      %2020 = vrot.lane.b32.xlu0 %v2014, 126
      %v2021 = vpop.permute.xlu0 %2020
      %2022 = vrot.lane.b32.xlu0 %v2015, 126
      %v2023 = vpop.permute.xlu0 %2022
      %2024 = vrot.lane.b32.xlu0 %v2016, 126
      %v2025 = vpop.permute.xlu0 %2024
      %v2026 = vsel %vm1462, %v2021, %v2023
      %v2027 = vsel %vm1462, %v2023, %v2025
      %v2030 = vsel %vm1451, %v2026, 0.0
      %v2031 = vsel %vm1452, %v2027, 0.0
      %2032 = vst [vmem:[#allocation3 + $0x50] sm:$0xff] %v2030
      %2033 = vst [vmem:[#allocation3 + $0x58] sm:$0xff] %v2031
      %v2034 = vld [vmem:[#allocation2 + $0x8] sm:$0xff]
      %v2035 = vld [vmem:[#allocation2 + $0x10] sm:$0xff]
      %v2036 = vld [vmem:[#allocation2 + $0x18] sm:$0xff]
      %2040 = vrot.lane.b32.xlu0 %v2034, 125
      %v2041 = vpop.permute.xlu0 %2040
      %2042 = vrot.lane.b32.xlu0 %v2035, 125
      %v2043 = vpop.permute.xlu0 %2042
      %2044 = vrot.lane.b32.xlu0 %v2036, 125
      %v2045 = vpop.permute.xlu0 %2044
      %v2046 = vsel %vm1220, %v2041, %v2043
      %v2047 = vsel %vm1220, %v2043, %v2045
      %v2050 = vsel %vm1165, %v2046, 0.0
      %v2051 = vsel %vm1166, %v2047, 0.0
      %2052 = vst [vmem:[#allocation3 + $0x60] sm:$0xff] %v2050
      %2053 = vst [vmem:[#allocation3 + $0x68] sm:$0xff] %v2051
      %v2054 = vld [vmem:[%s15] sm:$0xff]
      %v2055 = vld [vmem:[#allocation3] sm:$0xff]
      %v2056 = vld [vmem:[#allocation3 + $0x8] sm:$0xff]
      %v2057 = vld [vmem:[#allocation3 + $0x10] sm:$0xff]
      %v2058 = vld [vmem:[#allocation3 + $0x18] sm:$0xff]
      %v2059 = vld [vmem:[#allocation3 + $0x20] sm:$0xff]
      %v2060 = vld [vmem:[#allocation3 + $0x28] sm:$0xff]
      %v2061 = vld [vmem:[#allocation3 + $0x30] sm:$0xff]
      %v2062 = vld [vmem:[#allocation3 + $0x38] sm:$0xff]
      %v2063 = vld [vmem:[#allocation3 + $0x40] sm:$0xff]
      %v2064 = vld [vmem:[#allocation3 + $0x48] sm:$0xff]
      %v2065 = vld [vmem:[#allocation3 + $0x50] sm:$0xff]
      %v2066 = vld [vmem:[#allocation3 + $0x58] sm:$0xff]
      %v2067 = vld [vmem:[#allocation3 + $0x60] sm:$0xff]
      %v2068 = vld [vmem:[#allocation3 + $0x68] sm:$0xff]
      %v2069 = vld [vmem:[%s16] sm:$0xff]
      %2071 = vset.pattern.permute.xlu0 0
      %2072 = vperm.xlu0 %2071, %v2069
      %v2073 = vpop.permute.xlu0 %2072
      %vm2075 = vcmask 457728
      %v2077 = vsel %vm2075, %v2054, 0
      %2079 = vmatpush.msra.mxu0 0.0
      %2080 = vmatpush.msra.mxu0 0.0
      %2081 = vmatpush.msra.mxu0 0.0
      %2082 = vmatpush.msra.mxu0 0.0
      %2083 = vmatpush.msra.mxu0 0.0
      %2084 = vmatpush.msra.mxu0 0.0
      %2085 = vmatpush.msra.mxu0 0.0
      %2086 = vmatpush.msra.mxu0 0.0
      %2087 = vmatpush.msra.mxu0 0.0
      %2088 = vmatpush.msra.mxu0 %v2067
      %2089 = vmatpush.msra.mxu0 %v2065
      %2090 = vmatpush.msra.mxu0 %v2063
      %2091 = vmatpush.msra.mxu0 %v2061
      %2092 = vmatpush.msra.mxu0 %v2059
      %2093 = vmatpush.msra.mxu0 %v2057
      %2094 = vmatpush.msra.mxu0 %v2055
      %2095 = vmatmul.f32.gmra.mxu0 %v2077
      %v2096 = vpop.f32.mrf.mxu0
      %v2097 = vadd.f32 %v2073, %v2096
      %2098 = vdwg.mxu0
      %2099 = vmatpush.msra.mxu0 0.0
      %2100 = vmatpush.msra.mxu0 0.0
      %2101 = vmatpush.msra.mxu0 0.0
      %2102 = vmatpush.msra.mxu0 0.0
      %2103 = vmatpush.msra.mxu0 0.0
      %2104 = vmatpush.msra.mxu0 0.0
      %2105 = vmatpush.msra.mxu0 0.0
      %2106 = vmatpush.msra.mxu0 0.0
      %2107 = vmatpush.msra.mxu0 0.0
      %2108 = vmatpush.msra.mxu0 %v2068
      %2109 = vmatpush.msra.mxu0 %v2066
      %2110 = vmatpush.msra.mxu0 %v2064
      %2111 = vmatpush.msra.mxu0 %v2062
      %2112 = vmatpush.msra.mxu0 %v2060
      %2113 = vmatpush.msra.mxu0 %v2058
      %2114 = vmatpush.msra.mxu0 %v2056
      %2115 = vmatmul.f32.gmra.mxu0 %v2077
      %v2116 = vpop.f32.mrf.mxu0
      %v2117 = vadd.f32 %v2073, %v2116
      %2118 = vdwg.mxu0
      %2119 = vst [vmem:[#allocation2 + $0x8] sm:$0xff] %v2097
      %2120 = vst [vmem:[#allocation2 + $0x10] sm:$0xff] %v2117
      %v2121 = vld [vmem:[#allocation2] sm:$0xff]
      %v2122 = vld [vmem:[#allocation2 + $0x8] sm:$0xff]
      %v2123 = vld [vmem:[#allocation2 + $0x10] sm:$0xff]
      %2127 = vrot.lane.b32.xlu0 %v2121, 48
      %v2128 = vpop.permute.xlu0 %2127
      %2129 = vrot.lane.b32.xlu0 %v2122, 48
      %v2130 = vpop.permute.xlu0 %2129
      %2131 = vrot.lane.b32.xlu0 %v2123, 48
      %v2132 = vpop.permute.xlu0 %2131
      %v2133 = vsel %vm1145, %v2128, %v2130
      %v2134 = vsel %vm1145, %v2130, %v2132
      %2137 = vst [vmem:[#allocation3] sm:$0xff] %v2133
      %2138 = vst [vmem:[#allocation3 + $0x8] sm:$0xff] %v2134
      %v2139 = vld [vmem:[#allocation2] sm:$0xff]
      %v2140 = vld [vmem:[#allocation2 + $0x8] sm:$0xff]
      %v2141 = vld [vmem:[#allocation2 + $0x10] sm:$0xff]
      %2145 = vrot.lane.b32.xlu0 %v2139, 32
      %v2146 = vpop.permute.xlu0 %2145
      %2147 = vrot.lane.b32.xlu0 %v2140, 32
      %v2148 = vpop.permute.xlu0 %2147
      %2149 = vrot.lane.b32.xlu0 %v2141, 32
      %v2150 = vpop.permute.xlu0 %2149
      %v2151 = vsel %vm1546, %v2146, %v2148
      %v2152 = vsel %vm1546, %v2148, %v2150
      %2155 = vst [vmem:[#allocation3 + $0x10] sm:$0xff] %v2151
      %2156 = vst [vmem:[#allocation3 + $0x18] sm:$0xff] %v2152
      %v2157 = vld [vmem:[#allocation2] sm:$0xff]
      %v2158 = vld [vmem:[#allocation2 + $0x8] sm:$0xff]
      %v2159 = vld [vmem:[#allocation2 + $0x10] sm:$0xff]
      %2163 = vrot.lane.b32.xlu0 %v2157, 16
      %v2164 = vpop.permute.xlu0 %2163
      %2165 = vrot.lane.b32.xlu0 %v2158, 16
      %v2166 = vpop.permute.xlu0 %2165
      %2167 = vrot.lane.b32.xlu0 %v2159, 16
      %v2168 = vpop.permute.xlu0 %2167
      %v2169 = vsel %vm1014, %v2164, %v2166
      %v2170 = vsel %vm1014, %v2166, %v2168
      %2173 = vst [vmem:[#allocation3 + $0x20] sm:$0xff] %v2169
      %2174 = vst [vmem:[#allocation3 + $0x28] sm:$0xff] %v2170
      %2175 = vst [vmem:[#allocation3 + $0x30] sm:$0xff] %v2097
      %2176 = vst [vmem:[#allocation3 + $0x38] sm:$0xff] %v2117
      %v2177 = vld [vmem:[#allocation2 + $0x8] sm:$0xff]
      %v2178 = vld [vmem:[#allocation2 + $0x10] sm:$0xff]
      %v2179 = vld [vmem:[#allocation2 + $0x18] sm:$0xff]
      %2183 = vrot.lane.b32.xlu0 %v2177, 112
      %v2184 = vpop.permute.xlu0 %2183
      %2185 = vrot.lane.b32.xlu0 %v2178, 112
      %v2186 = vpop.permute.xlu0 %2185
      %2187 = vrot.lane.b32.xlu0 %v2179, 112
      %v2188 = vpop.permute.xlu0 %2187
      %v2189 = vsel %vm1035, %v2184, %v2186
      %v2190 = vsel %vm1035, %v2186, %v2188
      %2193 = vst [vmem:[#allocation3 + $0x40] sm:$0xff] %v2189
      %2194 = vst [vmem:[#allocation3 + $0x48] sm:$0xff] %v2190
      %v2195 = vld [vmem:[#allocation2 + $0x8] sm:$0xff]
      %v2196 = vld [vmem:[#allocation2 + $0x10] sm:$0xff]
      %v2197 = vld [vmem:[#allocation2 + $0x18] sm:$0xff]
      %2201 = vrot.lane.b32.xlu0 %v2195, 96
      %v2202 = vpop.permute.xlu0 %2201
      %2203 = vrot.lane.b32.xlu0 %v2196, 96
      %v2204 = vpop.permute.xlu0 %2203
      %2205 = vrot.lane.b32.xlu0 %v2197, 96
      %v2206 = vpop.permute.xlu0 %2205
      %v2207 = vsel %vm1603, %v2202, %v2204
      %v2208 = vsel %vm1603, %v2204, %v2206
      %2211 = vst [vmem:[#allocation3 + $0x50] sm:$0xff] %v2207
      %2212 = vst [vmem:[#allocation3 + $0x58] sm:$0xff] %v2208
      %v2213 = vld [vmem:[#allocation2 + $0x8] sm:$0xff]
      %v2214 = vld [vmem:[#allocation2 + $0x10] sm:$0xff]
      %v2215 = vld [vmem:[#allocation2 + $0x18] sm:$0xff]
      %2219 = vrot.lane.b32.xlu0 %v2213, 80
      %v2220 = vpop.permute.xlu0 %2219
      %2221 = vrot.lane.b32.xlu0 %v2214, 80
      %v2222 = vpop.permute.xlu0 %2221
      %2223 = vrot.lane.b32.xlu0 %v2215, 80
      %v2224 = vpop.permute.xlu0 %2223
      %v2225 = vsel %vm1262, %v2220, %v2222
      %v2226 = vsel %vm1262, %v2222, %v2224
      %2229 = vst [vmem:[#allocation3 + $0x60] sm:$0xff] %v2225
      %2230 = vst [vmem:[#allocation3 + $0x68] sm:$0xff] %v2226
      %v2231 = vld [vmem:[%s17] sm:$0xff]
      %v2232 = vld [vmem:[#allocation3] sm:$0xff]
      %v2233 = vld [vmem:[#allocation3 + $0x8] sm:$0xff]
      %v2234 = vld [vmem:[#allocation3 + $0x10] sm:$0xff]
      %v2235 = vld [vmem:[#allocation3 + $0x18] sm:$0xff]
      %v2236 = vld [vmem:[#allocation3 + $0x20] sm:$0xff]
      %v2237 = vld [vmem:[#allocation3 + $0x28] sm:$0xff]
      %v2238 = vld [vmem:[#allocation3 + $0x30] sm:$0xff]
      %v2239 = vld [vmem:[#allocation3 + $0x38] sm:$0xff]
      %v2240 = vld [vmem:[#allocation3 + $0x40] sm:$0xff]
      %v2241 = vld [vmem:[#allocation3 + $0x48] sm:$0xff]
      %v2242 = vld [vmem:[#allocation3 + $0x50] sm:$0xff]
      %v2243 = vld [vmem:[#allocation3 + $0x58] sm:$0xff]
      %v2244 = vld [vmem:[#allocation3 + $0x60] sm:$0xff]
      %v2245 = vld [vmem:[#allocation3 + $0x68] sm:$0xff]
      %v2246 = vld [vmem:[%s18] sm:$0xff]
      %2248 = vset.pattern.permute.xlu0 0
      %2249 = vperm.xlu0 %2248, %v2246
      %v2250 = vpop.permute.xlu0 %2249
      %v2253 = vsel %vm2075, %v2231, 0
      %2255 = vmatpush.msra.mxu0 0.0
      %2256 = vmatpush.msra.mxu0 0.0
      %2257 = vmatpush.msra.mxu0 0.0
      %2258 = vmatpush.msra.mxu0 0.0
      %2259 = vmatpush.msra.mxu0 0.0
      %2260 = vmatpush.msra.mxu0 0.0
      %2261 = vmatpush.msra.mxu0 0.0
      %2262 = vmatpush.msra.mxu0 0.0
      %2263 = vmatpush.msra.mxu0 0.0
      %2264 = vmatpush.msra.mxu0 %v2244
      %2265 = vmatpush.msra.mxu0 %v2242
      %2266 = vmatpush.msra.mxu0 %v2240
      %2267 = vmatpush.msra.mxu0 %v2238
      %2268 = vmatpush.msra.mxu0 %v2236
      %2269 = vmatpush.msra.mxu0 %v2234
      %2270 = vmatpush.msra.mxu0 %v2232
      %2271 = vmatmul.f32.gmra.mxu0 %v2253
      %v2272 = vpop.f32.mrf.mxu0
      %v2273 = vadd.f32 %v2250, %v2272
      %2274 = vdwg.mxu0
      %2275 = vmatpush.msra.mxu0 0.0
      %2276 = vmatpush.msra.mxu0 0.0
      %2277 = vmatpush.msra.mxu0 0.0
      %2278 = vmatpush.msra.mxu0 0.0
      %2279 = vmatpush.msra.mxu0 0.0
      %2280 = vmatpush.msra.mxu0 0.0
      %2281 = vmatpush.msra.mxu0 0.0
      %2282 = vmatpush.msra.mxu0 0.0
      %2283 = vmatpush.msra.mxu0 0.0
      %2284 = vmatpush.msra.mxu0 %v2245
      %2285 = vmatpush.msra.mxu0 %v2243
      %2286 = vmatpush.msra.mxu0 %v2241
      %2287 = vmatpush.msra.mxu0 %v2239
      %2288 = vmatpush.msra.mxu0 %v2237
      %2289 = vmatpush.msra.mxu0 %v2235
      %2290 = vmatpush.msra.mxu0 %v2233
      %2291 = vmatmul.f32.gmra.mxu0 %v2253
      %v2292 = vpop.f32.mrf.mxu0
      %v2293 = vadd.f32 %v2250, %v2292
      %2294 = vdwg.mxu0
      %2295 = vst [vmem:[#allocation2 + $0x8] sm:$0xff] %v2273
      %2296 = vst [vmem:[#allocation2 + $0x10] sm:$0xff] %v2293
      %v2297 = vld [vmem:[#allocation2] sm:$0xff]
      %v2298 = vld [vmem:[#allocation2 + $0x8] sm:$0xff]
      %v2299 = vld [vmem:[#allocation2 + $0x10] sm:$0xff]
      %v2300 = vadd.s32 %v736, 4294967289
      %v2301 = vadd.s32 %v737, 4294967289
      %vm2302 = vcmp.ge.s32.totalorder %v2300, 0
      %vm2303 = vcmp.ge.s32.totalorder %v2301, 0
      %vm2304 = vcmp.lt.s32.totalorder %v2300, 16
      %vm2305 = vcmp.lt.s32.totalorder %v2301, 16
      %vm2306 = vmand %vm2302, %vm2304
      %vm2307 = vmand %vm2303, %vm2305
      %v2308 = vsel %vm2306, 1, 0
      %v2309 = vsel %vm2307, 1, 0
      %vm2310 = vcmp.eq.s32.totalorder %v2308, 1
      %vm2311 = vcmp.eq.s32.totalorder %v2309, 1
      %2315 = vrot.lane.b32.xlu0 %v2297, 119
      %v2316 = vpop.permute.xlu0 %2315
      %2317 = vrot.lane.b32.xlu0 %v2298, 119
      %v2318 = vpop.permute.xlu0 %2317
      %2319 = vrot.lane.b32.xlu0 %v2299, 119
      %v2320 = vpop.permute.xlu0 %2319
      %vm2321 = vcmask 973824
      %v2322 = vsel %vm2321, %v2316, %v2318
      %v2323 = vsel %vm2321, %v2318, %v2320
      %v2326 = vsel %vm2310, %v2322, 0.0
      %v2327 = vsel %vm2311, %v2323, 0.0
      %2328 = vst [vmem:[#allocation3] sm:$0xff] %v2326
      %2329 = vst [vmem:[#allocation3 + $0x8] sm:$0xff] %v2327
      %v2330 = vld [vmem:[#allocation2] sm:$0xff]
      %v2331 = vld [vmem:[#allocation2 + $0x8] sm:$0xff]
      %v2332 = vld [vmem:[#allocation2 + $0x10] sm:$0xff]
      %2336 = vrot.lane.b32.xlu0 %v2330, 112
      %v2337 = vpop.permute.xlu0 %2336
      %2338 = vrot.lane.b32.xlu0 %v2331, 112
      %v2339 = vpop.permute.xlu0 %2338
      %2340 = vrot.lane.b32.xlu0 %v2332, 112
      %v2341 = vpop.permute.xlu0 %2340
      %v2342 = vsel %vm1035, %v2337, %v2339
      %v2343 = vsel %vm1035, %v2339, %v2341
      %2346 = vst [vmem:[#allocation3 + $0x10] sm:$0xff] %v2342
      %2347 = vst [vmem:[#allocation3 + $0x18] sm:$0xff] %v2343
      %v2348 = vld [vmem:[#allocation2] sm:$0xff]
      %v2349 = vld [vmem:[#allocation2 + $0x8] sm:$0xff]
      %v2350 = vld [vmem:[#allocation2 + $0x10] sm:$0xff]
      %v2351 = vadd.s32 %v736, 7
      %v2352 = vadd.s32 %v737, 7
      %vm2353 = vcmp.ge.s32.totalorder %v2351, 0
      %vm2354 = vcmp.ge.s32.totalorder %v2352, 0
      %vm2355 = vcmp.lt.s32.totalorder %v2351, 16
      %vm2356 = vcmp.lt.s32.totalorder %v2352, 16
      %vm2357 = vmand %vm2353, %vm2355
      %vm2358 = vmand %vm2354, %vm2356
      %v2359 = vsel %vm2357, 1, 0
      %v2360 = vsel %vm2358, 1, 0
      %vm2361 = vcmp.eq.s32.totalorder %v2359, 1
      %vm2362 = vcmp.eq.s32.totalorder %v2360, 1
      %2366 = vrot.lane.b32.xlu0 %v2348, 105
      %v2367 = vpop.permute.xlu0 %2366
      %2368 = vrot.lane.b32.xlu0 %v2349, 105
      %v2369 = vpop.permute.xlu0 %2368
      %2370 = vrot.lane.b32.xlu0 %v2350, 105
      %v2371 = vpop.permute.xlu0 %2370
      %vm2372 = vcmask 859136
      %v2373 = vsel %vm2372, %v2367, %v2369
      %v2374 = vsel %vm2372, %v2369, %v2371
      %v2377 = vsel %vm2361, %v2373, 0.0
      %v2378 = vsel %vm2362, %v2374, 0.0
      %2379 = vst [vmem:[#allocation3 + $0x20] sm:$0xff] %v2377
      %2380 = vst [vmem:[#allocation3 + $0x28] sm:$0xff] %v2378
      %v2381 = vld [vmem:[#allocation2] sm:$0xff]
      %v2382 = vld [vmem:[#allocation2 + $0x8] sm:$0xff]
      %v2383 = vld [vmem:[#allocation2 + $0x10] sm:$0xff]
      %2387 = vrot.lane.b32.xlu0 %v2381, 7
      %v2388 = vpop.permute.xlu0 %2387
      %2389 = vrot.lane.b32.xlu0 %v2382, 7
      %v2390 = vpop.permute.xlu0 %2389
      %2391 = vrot.lane.b32.xlu0 %v2383, 7
      %v2392 = vpop.permute.xlu0 %2391
      %vm2393 = vcmask 56320
      %v2394 = vsel %vm2393, %v2388, %v2390
      %v2395 = vsel %vm2393, %v2390, %v2392
      %v2398 = vsel %vm2310, %v2394, 0.0
      %v2399 = vsel %vm2311, %v2395, 0.0
      %2400 = vst [vmem:[#allocation3 + $0x30] sm:$0xff] %v2398
      %2401 = vst [vmem:[#allocation3 + $0x38] sm:$0xff] %v2399
      %2402 = vst [vmem:[#allocation3 + $0x40] sm:$0xff] %v2273
      %2403 = vst [vmem:[#allocation3 + $0x48] sm:$0xff] %v2293
      %v2404 = vld [vmem:[#allocation2 + $0x8] sm:$0xff]
      %v2405 = vld [vmem:[#allocation2 + $0x10] sm:$0xff]
      %v2406 = vld [vmem:[#allocation2 + $0x18] sm:$0xff]
      %2410 = vrot.lane.b32.xlu0 %v2404, 121
      %v2411 = vpop.permute.xlu0 %2410
      %2412 = vrot.lane.b32.xlu0 %v2405, 121
      %v2413 = vpop.permute.xlu0 %2412
      %2414 = vrot.lane.b32.xlu0 %v2406, 121
      %v2415 = vpop.permute.xlu0 %2414
      %vm2416 = vcmask 990208
      %v2417 = vsel %vm2416, %v2411, %v2413
      %v2418 = vsel %vm2416, %v2413, %v2415
      %v2421 = vsel %vm2361, %v2417, 0.0
      %v2422 = vsel %vm2362, %v2418, 0.0
      %2423 = vst [vmem:[#allocation3 + $0x50] sm:$0xff] %v2421
      %2424 = vst [vmem:[#allocation3 + $0x58] sm:$0xff] %v2422
      %v2425 = vld [vmem:[#allocation2 + $0x8] sm:$0xff]
      %v2426 = vld [vmem:[#allocation2 + $0x10] sm:$0xff]
      %v2427 = vld [vmem:[#allocation2 + $0x18] sm:$0xff]
      %2431 = vrot.lane.b32.xlu0 %v2425, 23
      %v2432 = vpop.permute.xlu0 %2431
      %2433 = vrot.lane.b32.xlu0 %v2426, 23
      %v2434 = vpop.permute.xlu0 %2433
      %2435 = vrot.lane.b32.xlu0 %v2427, 23
      %v2436 = vpop.permute.xlu0 %2435
      %vm2437 = vcmask 187392
      %v2438 = vsel %vm2437, %v2432, %v2434
      %v2439 = vsel %vm2437, %v2434, %v2436
      %v2442 = vsel %vm2310, %v2438, 0.0
      %v2443 = vsel %vm2311, %v2439, 0.0
      %2444 = vst [vmem:[#allocation3 + $0x60] sm:$0xff] %v2442
      %2445 = vst [vmem:[#allocation3 + $0x68] sm:$0xff] %v2443
      %v2446 = vld [vmem:[#allocation2 + $0x8] sm:$0xff]
      %v2447 = vld [vmem:[#allocation2 + $0x10] sm:$0xff]
      %v2448 = vld [vmem:[#allocation2 + $0x18] sm:$0xff]
      %2452 = vrot.lane.b32.xlu0 %v2446, 16
      %v2453 = vpop.permute.xlu0 %2452
      %2454 = vrot.lane.b32.xlu0 %v2447, 16
      %v2455 = vpop.permute.xlu0 %2454
      %2456 = vrot.lane.b32.xlu0 %v2448, 16
      %v2457 = vpop.permute.xlu0 %2456
      %v2458 = vsel %vm1014, %v2453, %v2455
      %v2459 = vsel %vm1014, %v2455, %v2457
      %2462 = vst [vmem:[#allocation3 + $0x70] sm:$0xff] %v2458
      %2463 = vst [vmem:[#allocation3 + $0x78] sm:$0xff] %v2459
      %v2464 = vld [vmem:[#allocation2 + $0x8] sm:$0xff]
      %v2465 = vld [vmem:[#allocation2 + $0x10] sm:$0xff]
      %v2466 = vld [vmem:[#allocation2 + $0x18] sm:$0xff]
      %2470 = vrot.lane.b32.xlu0 %v2464, 9
      %v2471 = vpop.permute.xlu0 %2470
      %2472 = vrot.lane.b32.xlu0 %v2465, 9
      %v2473 = vpop.permute.xlu0 %2472
      %2474 = vrot.lane.b32.xlu0 %v2466, 9
      %v2475 = vpop.permute.xlu0 %2474
      %vm2476 = vcmask 72704
      %v2477 = vsel %vm2476, %v2471, %v2473
      %v2478 = vsel %vm2476, %v2473, %v2475
      %v2481 = vsel %vm2361, %v2477, 0.0
      %v2482 = vsel %vm2362, %v2478, 0.0
      %2483 = vst [vmem:[#allocation3 + $0x80] sm:$0xff] %v2481
      %2484 = vst [vmem:[#allocation3 + $0x88] sm:$0xff] %v2482
      %v2485 = vld [vmem:[%s19] sm:$0xff]
      %v2486 = vld [vmem:[#allocation3] sm:$0xff]
      %v2487 = vld [vmem:[#allocation3 + $0x8] sm:$0xff]
      %v2488 = vld [vmem:[#allocation3 + $0x10] sm:$0xff]
      %v2489 = vld [vmem:[#allocation3 + $0x18] sm:$0xff]
      %v2490 = vld [vmem:[#allocation3 + $0x20] sm:$0xff]
      %v2491 = vld [vmem:[#allocation3 + $0x28] sm:$0xff]
      %v2492 = vld [vmem:[#allocation3 + $0x30] sm:$0xff]
      %v2493 = vld [vmem:[#allocation3 + $0x38] sm:$0xff]
      %v2494 = vld [vmem:[#allocation3 + $0x40] sm:$0xff]
      %v2495 = vld [vmem:[#allocation3 + $0x48] sm:$0xff]
      %v2496 = vld [vmem:[#allocation3 + $0x50] sm:$0xff]
      %v2497 = vld [vmem:[#allocation3 + $0x58] sm:$0xff]
      %v2498 = vld [vmem:[#allocation3 + $0x60] sm:$0xff]
      %v2499 = vld [vmem:[#allocation3 + $0x68] sm:$0xff]
      %v2500 = vld [vmem:[#allocation3 + $0x70] sm:$0xff]
      %v2501 = vld [vmem:[#allocation3 + $0x78] sm:$0xff]
      %v2502 = vld [vmem:[#allocation3 + $0x80] sm:$0xff]
      %v2503 = vld [vmem:[#allocation3 + $0x88] sm:$0xff]
      %v2504 = vld [vmem:[%s20] sm:$0xff]
      %2506 = vset.pattern.permute.xlu0 0
      %2507 = vperm.xlu0 %2506, %v2504
      %v2508 = vpop.permute.xlu0 %2507
      %v2511 = vsel %vm1315, %v2485, 0
      %2513 = vmatpush.msra.mxu0 0.0
      %2514 = vmatpush.msra.mxu0 0.0
      %2515 = vmatpush.msra.mxu0 0.0
      %2516 = vmatpush.msra.mxu0 0.0
      %2517 = vmatpush.msra.mxu0 0.0
      %2518 = vmatpush.msra.mxu0 0.0
      %2519 = vmatpush.msra.mxu0 0.0
      %2520 = vmatpush.msra.mxu0 %v2502
      %2521 = vmatpush.msra.mxu0 %v2500
      %2522 = vmatpush.msra.mxu0 %v2498
      %2523 = vmatpush.msra.mxu0 %v2496
      %2524 = vmatpush.msra.mxu0 %v2494
      %2525 = vmatpush.msra.mxu0 %v2492
      %2526 = vmatpush.msra.mxu0 %v2490
      %2527 = vmatpush.msra.mxu0 %v2488
      %2528 = vmatpush.msra.mxu0 %v2486
      %2529 = vmatmul.f32.gmra.mxu0 %v2511
      %v2530 = vpop.f32.mrf.mxu0
      %v2531 = vadd.f32 %v2508, %v2530
      %2532 = vdwg.mxu0
      %2533 = vmatpush.msra.mxu0 0.0
      %2534 = vmatpush.msra.mxu0 0.0
      %2535 = vmatpush.msra.mxu0 0.0
      %2536 = vmatpush.msra.mxu0 0.0
      %2537 = vmatpush.msra.mxu0 0.0
      %2538 = vmatpush.msra.mxu0 0.0
      %2539 = vmatpush.msra.mxu0 0.0
      %2540 = vmatpush.msra.mxu0 %v2503
      %2541 = vmatpush.msra.mxu0 %v2501
      %2542 = vmatpush.msra.mxu0 %v2499
      %2543 = vmatpush.msra.mxu0 %v2497
      %2544 = vmatpush.msra.mxu0 %v2495
      %2545 = vmatpush.msra.mxu0 %v2493
      %2546 = vmatpush.msra.mxu0 %v2491
      %2547 = vmatpush.msra.mxu0 %v2489
      %2548 = vmatpush.msra.mxu0 %v2487
      %2549 = vmatmul.f32.gmra.mxu0 %v2511
      %v2550 = vpop.f32.mrf.mxu0
      %v2551 = vadd.f32 %v2508, %v2550
      %2552 = vdwg.mxu0
      %2553 = vst [vmem:[#allocation4 + $0x30] sm:$0xff] %v2531
      %2554 = vst [vmem:[#allocation4 + $0x38] sm:$0xff] %v2551
      %v2555 = vld [vmem:[#allocation4] sm:$0xff]
      %v2556 = vld [vmem:[#allocation4 + $0x8] sm:$0xff]
      %v2557 = vld [vmem:[#allocation4 + $0x10] sm:$0xff]
      %v2558 = vld [vmem:[#allocation4 + $0x18] sm:$0xff]
      %v2559 = vld [vmem:[#allocation4 + $0x20] sm:$0xff]
      %v2560 = vld [vmem:[#allocation4 + $0x28] sm:$0xff]
      %v2561 = vld [vmem:[#allocation4 + $0x30] sm:$0xff]
      %v2562 = vld [vmem:[#allocation4 + $0x38] sm:$0xff]
      %2563 = vst [vmem:[#allocation2 + $0x8] sm:$0xff] %v2555
      %2564 = vst [vmem:[#allocation2 + $0x10] sm:$0xff] %v2556
      %2565 = vst [vmem:[#allocation2 + $0x28] sm:$0xff] %v2557
      %2566 = vst [vmem:[#allocation2 + $0x30] sm:$0xff] %v2558
      %2567 = vst [vmem:[#allocation2 + $0x48] sm:$0xff] %v2559
      %2568 = vst [vmem:[#allocation2 + $0x50] sm:$0xff] %v2560
      %2569 = vst [vmem:[#allocation2 + $0x68] sm:$0xff] %v2561
      %2570 = vst [vmem:[#allocation2 + $0x70] sm:$0xff] %v2562
      %v2571 = vld [vmem:[#allocation2] sm:$0xff]
      %v2572 = vld [vmem:[#allocation2 + $0x8] sm:$0xff]
      %v2573 = vld [vmem:[#allocation2 + $0x10] sm:$0xff]
      %v2574 = vld [vmem:[#allocation2 + $0x20] sm:$0xff]
      %v2575 = vld [vmem:[#allocation2 + $0x28] sm:$0xff]
      %v2576 = vld [vmem:[#allocation2 + $0x30] sm:$0xff]
      %v2577 = vld [vmem:[#allocation2 + $0x40] sm:$0xff]
      %v2578 = vld [vmem:[#allocation2 + $0x48] sm:$0xff]
      %v2579 = vld [vmem:[#allocation2 + $0x50] sm:$0xff]
      %v2580 = vld [vmem:[#allocation2 + $0x60] sm:$0xff]
      %v2581 = vld [vmem:[#allocation2 + $0x68] sm:$0xff]
      %v2582 = vld [vmem:[#allocation2 + $0x70] sm:$0xff]
      %2595 = vrot.lane.b32.xlu0 %v2571, 17
      %v2596 = vpop.permute.xlu0 %2595
      %2597 = vrot.lane.b32.xlu0 %v2572, 17
      %v2598 = vpop.permute.xlu0 %2597
      %2599 = vrot.lane.b32.xlu0 %v2573, 17
      %v2600 = vpop.permute.xlu0 %2599
      %2601 = vrot.lane.b32.xlu0 %v2574, 17
      %v2602 = vpop.permute.xlu0 %2601
      %2603 = vrot.lane.b32.xlu0 %v2575, 17
      %v2604 = vpop.permute.xlu0 %2603
      %2605 = vrot.lane.b32.xlu0 %v2576, 17
      %v2606 = vpop.permute.xlu0 %2605
      %2607 = vrot.lane.b32.xlu0 %v2577, 17
      %v2608 = vpop.permute.xlu0 %2607
      %2609 = vrot.lane.b32.xlu0 %v2578, 17
      %v2610 = vpop.permute.xlu0 %2609
      %2611 = vrot.lane.b32.xlu0 %v2579, 17
      %v2612 = vpop.permute.xlu0 %2611
      %2613 = vrot.lane.b32.xlu0 %v2580, 17
      %v2614 = vpop.permute.xlu0 %2613
      %2615 = vrot.lane.b32.xlu0 %v2581, 17
      %v2616 = vpop.permute.xlu0 %2615
      %2617 = vrot.lane.b32.xlu0 %v2582, 17
      %v2618 = vpop.permute.xlu0 %2617
      %vm2619 = vcmask 138240
      %v2620 = vsel %vm2619, %v2596, %v2598
      %v2621 = vsel %vm2619, %v2598, %v2600
      %v2622 = vsel %vm2619, %v2602, %v2604
      %v2623 = vsel %vm2619, %v2604, %v2606
      %v2624 = vsel %vm2619, %v2608, %v2610
      %v2625 = vsel %vm2619, %v2610, %v2612
      %v2626 = vsel %vm2619, %v2614, %v2616
      %v2627 = vsel %vm2619, %v2616, %v2618
      %v2636 = vsel %vm888, %v2620, 0.0
      %v2637 = vsel %vm889, %v2621, 0.0
      %v2638 = vsel %vm888, %v2622, 0.0
      %v2639 = vsel %vm889, %v2623, 0.0
      %v2640 = vsel %vm888, %v2624, 0.0
      %v2641 = vsel %vm889, %v2625, 0.0
      %v2642 = vsel %vm888, %v2626, 0.0
      %v2643 = vsel %vm889, %v2627, 0.0
      %2644 = vst [vmem:[#allocation3] sm:$0xff] %v2636
      %2645 = vst [vmem:[#allocation3 + $0x8] sm:$0xff] %v2637
      %2646 = vst [vmem:[#allocation3 + $0x10] sm:$0xff] %v2638
      %2647 = vst [vmem:[#allocation3 + $0x18] sm:$0xff] %v2639
      %2648 = vst [vmem:[#allocation3 + $0x20] sm:$0xff] %v2640
      %2649 = vst [vmem:[#allocation3 + $0x28] sm:$0xff] %v2641
      %2650 = vst [vmem:[#allocation3 + $0x30] sm:$0xff] %v2642
      %2651 = vst [vmem:[#allocation3 + $0x38] sm:$0xff] %v2643
      %v2652 = vld [vmem:[#allocation2] sm:$0xff]
      %v2653 = vld [vmem:[#allocation2 + $0x8] sm:$0xff]
      %v2654 = vld [vmem:[#allocation2 + $0x10] sm:$0xff]
      %v2655 = vld [vmem:[#allocation2 + $0x20] sm:$0xff]
      %v2656 = vld [vmem:[#allocation2 + $0x28] sm:$0xff]
      %v2657 = vld [vmem:[#allocation2 + $0x30] sm:$0xff]
      %v2658 = vld [vmem:[#allocation2 + $0x40] sm:$0xff]
      %v2659 = vld [vmem:[#allocation2 + $0x48] sm:$0xff]
      %v2660 = vld [vmem:[#allocation2 + $0x50] sm:$0xff]
      %v2661 = vld [vmem:[#allocation2 + $0x60] sm:$0xff]
      %v2662 = vld [vmem:[#allocation2 + $0x68] sm:$0xff]
      %v2663 = vld [vmem:[#allocation2 + $0x70] sm:$0xff]
      %2676 = vrot.lane.b32.xlu0 %v2652, 16
      %v2677 = vpop.permute.xlu0 %2676
      %2678 = vrot.lane.b32.xlu0 %v2653, 16
      %v2679 = vpop.permute.xlu0 %2678
      %2680 = vrot.lane.b32.xlu0 %v2654, 16
      %v2681 = vpop.permute.xlu0 %2680
      %2682 = vrot.lane.b32.xlu0 %v2655, 16
      %v2683 = vpop.permute.xlu0 %2682
      %2684 = vrot.lane.b32.xlu0 %v2656, 16
      %v2685 = vpop.permute.xlu0 %2684
      %2686 = vrot.lane.b32.xlu0 %v2657, 16
      %v2687 = vpop.permute.xlu0 %2686
      %2688 = vrot.lane.b32.xlu0 %v2658, 16
      %v2689 = vpop.permute.xlu0 %2688
      %2690 = vrot.lane.b32.xlu0 %v2659, 16
      %v2691 = vpop.permute.xlu0 %2690
      %2692 = vrot.lane.b32.xlu0 %v2660, 16
      %v2693 = vpop.permute.xlu0 %2692
      %2694 = vrot.lane.b32.xlu0 %v2661, 16
      %v2695 = vpop.permute.xlu0 %2694
      %2696 = vrot.lane.b32.xlu0 %v2662, 16
      %v2697 = vpop.permute.xlu0 %2696
      %2698 = vrot.lane.b32.xlu0 %v2663, 16
      %v2699 = vpop.permute.xlu0 %2698
      %v2700 = vsel %vm1014, %v2677, %v2679
      %v2701 = vsel %vm1014, %v2679, %v2681
      %v2702 = vsel %vm1014, %v2683, %v2685
      %v2703 = vsel %vm1014, %v2685, %v2687
      %v2704 = vsel %vm1014, %v2689, %v2691
      %v2705 = vsel %vm1014, %v2691, %v2693
      %v2706 = vsel %vm1014, %v2695, %v2697
      %v2707 = vsel %vm1014, %v2697, %v2699
      %2716 = vst [vmem:[#allocation3 + $0x40] sm:$0xff] %v2700
      %2717 = vst [vmem:[#allocation3 + $0x48] sm:$0xff] %v2701
      %2718 = vst [vmem:[#allocation3 + $0x50] sm:$0xff] %v2702
      %2719 = vst [vmem:[#allocation3 + $0x58] sm:$0xff] %v2703
      %2720 = vst [vmem:[#allocation3 + $0x60] sm:$0xff] %v2704
      %2721 = vst [vmem:[#allocation3 + $0x68] sm:$0xff] %v2705
      %2722 = vst [vmem:[#allocation3 + $0x70] sm:$0xff] %v2706
      %2723 = vst [vmem:[#allocation3 + $0x78] sm:$0xff] %v2707
      %v2724 = vld [vmem:[#allocation2] sm:$0xff]
      %v2725 = vld [vmem:[#allocation2 + $0x8] sm:$0xff]
      %v2726 = vld [vmem:[#allocation2 + $0x10] sm:$0xff]
      %v2727 = vld [vmem:[#allocation2 + $0x20] sm:$0xff]
      %v2728 = vld [vmem:[#allocation2 + $0x28] sm:$0xff]
      %v2729 = vld [vmem:[#allocation2 + $0x30] sm:$0xff]
      %v2730 = vld [vmem:[#allocation2 + $0x40] sm:$0xff]
      %v2731 = vld [vmem:[#allocation2 + $0x48] sm:$0xff]
      %v2732 = vld [vmem:[#allocation2 + $0x50] sm:$0xff]
      %v2733 = vld [vmem:[#allocation2 + $0x60] sm:$0xff]
      %v2734 = vld [vmem:[#allocation2 + $0x68] sm:$0xff]
      %v2735 = vld [vmem:[#allocation2 + $0x70] sm:$0xff]
      %2748 = vrot.lane.b32.xlu0 %v2724, 15
      %v2749 = vpop.permute.xlu0 %2748
      %2750 = vrot.lane.b32.xlu0 %v2725, 15
      %v2751 = vpop.permute.xlu0 %2750
      %2752 = vrot.lane.b32.xlu0 %v2726, 15
      %v2753 = vpop.permute.xlu0 %2752
      %2754 = vrot.lane.b32.xlu0 %v2727, 15
      %v2755 = vpop.permute.xlu0 %2754
      %2756 = vrot.lane.b32.xlu0 %v2728, 15
      %v2757 = vpop.permute.xlu0 %2756
      %2758 = vrot.lane.b32.xlu0 %v2729, 15
      %v2759 = vpop.permute.xlu0 %2758
      %2760 = vrot.lane.b32.xlu0 %v2730, 15
      %v2761 = vpop.permute.xlu0 %2760
      %2762 = vrot.lane.b32.xlu0 %v2731, 15
      %v2763 = vpop.permute.xlu0 %2762
      %2764 = vrot.lane.b32.xlu0 %v2732, 15
      %v2765 = vpop.permute.xlu0 %2764
      %2766 = vrot.lane.b32.xlu0 %v2733, 15
      %v2767 = vpop.permute.xlu0 %2766
      %2768 = vrot.lane.b32.xlu0 %v2734, 15
      %v2769 = vpop.permute.xlu0 %2768
      %2770 = vrot.lane.b32.xlu0 %v2735, 15
      %v2771 = vpop.permute.xlu0 %2770
      %vm2772 = vcmask 121856
      %v2773 = vsel %vm2772, %v2749, %v2751
      %v2774 = vsel %vm2772, %v2751, %v2753
      %v2775 = vsel %vm2772, %v2755, %v2757
      %v2776 = vsel %vm2772, %v2757, %v2759
      %v2777 = vsel %vm2772, %v2761, %v2763
      %v2778 = vsel %vm2772, %v2763, %v2765
      %v2779 = vsel %vm2772, %v2767, %v2769
      %v2780 = vsel %vm2772, %v2769, %v2771
      %v2789 = vsel %vm923, %v2773, 0.0
      %v2790 = vsel %vm924, %v2774, 0.0
      %v2791 = vsel %vm923, %v2775, 0.0
      %v2792 = vsel %vm924, %v2776, 0.0
      %v2793 = vsel %vm923, %v2777, 0.0
      %v2794 = vsel %vm924, %v2778, 0.0
      %v2795 = vsel %vm923, %v2779, 0.0
      %v2796 = vsel %vm924, %v2780, 0.0
      %2797 = vst [vmem:[#allocation3 + $0x80] sm:$0xff] %v2789
      %2798 = vst [vmem:[#allocation3 + $0x88] sm:$0xff] %v2790
      %2799 = vst [vmem:[#allocation3 + $0x90] sm:$0xff] %v2791
      %2800 = vst [vmem:[#allocation3 + $0x98] sm:$0xff] %v2792
      %2801 = vst [vmem:[#allocation3 + $0xa0] sm:$0xff] %v2793
      %2802 = vst [vmem:[#allocation3 + $0xa8] sm:$0xff] %v2794
      %2803 = vst [vmem:[#allocation3 + $0xb0] sm:$0xff] %v2795
      %2804 = vst [vmem:[#allocation3 + $0xb8] sm:$0xff] %v2796
      %v2805 = vld [vmem:[#allocation2] sm:$0xff]
      %v2806 = vld [vmem:[#allocation2 + $0x8] sm:$0xff]
      %v2807 = vld [vmem:[#allocation2 + $0x10] sm:$0xff]
      %v2808 = vld [vmem:[#allocation2 + $0x20] sm:$0xff]
      %v2809 = vld [vmem:[#allocation2 + $0x28] sm:$0xff]
      %v2810 = vld [vmem:[#allocation2 + $0x30] sm:$0xff]
      %v2811 = vld [vmem:[#allocation2 + $0x40] sm:$0xff]
      %v2812 = vld [vmem:[#allocation2 + $0x48] sm:$0xff]
      %v2813 = vld [vmem:[#allocation2 + $0x50] sm:$0xff]
      %v2814 = vld [vmem:[#allocation2 + $0x60] sm:$0xff]
      %v2815 = vld [vmem:[#allocation2 + $0x68] sm:$0xff]
      %v2816 = vld [vmem:[#allocation2 + $0x70] sm:$0xff]
      %2829 = vrot.lane.b32.xlu0 %v2805, 1
      %v2830 = vpop.permute.xlu0 %2829
      %2831 = vrot.lane.b32.xlu0 %v2806, 1
      %v2832 = vpop.permute.xlu0 %2831
      %2833 = vrot.lane.b32.xlu0 %v2807, 1
      %v2834 = vpop.permute.xlu0 %2833
      %2835 = vrot.lane.b32.xlu0 %v2808, 1
      %v2836 = vpop.permute.xlu0 %2835
      %2837 = vrot.lane.b32.xlu0 %v2809, 1
      %v2838 = vpop.permute.xlu0 %2837
      %2839 = vrot.lane.b32.xlu0 %v2810, 1
      %v2840 = vpop.permute.xlu0 %2839
      %2841 = vrot.lane.b32.xlu0 %v2811, 1
      %v2842 = vpop.permute.xlu0 %2841
      %2843 = vrot.lane.b32.xlu0 %v2812, 1
      %v2844 = vpop.permute.xlu0 %2843
      %2845 = vrot.lane.b32.xlu0 %v2813, 1
      %v2846 = vpop.permute.xlu0 %2845
      %2847 = vrot.lane.b32.xlu0 %v2814, 1
      %v2848 = vpop.permute.xlu0 %2847
      %2849 = vrot.lane.b32.xlu0 %v2815, 1
      %v2850 = vpop.permute.xlu0 %2849
      %2851 = vrot.lane.b32.xlu0 %v2816, 1
      %v2852 = vpop.permute.xlu0 %2851
      %v2853 = vsel %vm899, %v2830, %v2832
      %v2854 = vsel %vm899, %v2832, %v2834
      %v2855 = vsel %vm899, %v2836, %v2838
      %v2856 = vsel %vm899, %v2838, %v2840
      %v2857 = vsel %vm899, %v2842, %v2844
      %v2858 = vsel %vm899, %v2844, %v2846
      %v2859 = vsel %vm899, %v2848, %v2850
      %v2860 = vsel %vm899, %v2850, %v2852
      %v2869 = vsel %vm888, %v2853, 0.0
      %v2870 = vsel %vm889, %v2854, 0.0
      %v2871 = vsel %vm888, %v2855, 0.0
      %v2872 = vsel %vm889, %v2856, 0.0
      %v2873 = vsel %vm888, %v2857, 0.0
      %v2874 = vsel %vm889, %v2858, 0.0
      %v2875 = vsel %vm888, %v2859, 0.0
      %v2876 = vsel %vm889, %v2860, 0.0
      %2877 = vst [vmem:[#allocation3 + $0xc0] sm:$0xff] %v2869
      %2878 = vst [vmem:[#allocation3 + $0xc8] sm:$0xff] %v2870
      %2879 = vst [vmem:[#allocation3 + $0xd0] sm:$0xff] %v2871
      %2880 = vst [vmem:[#allocation3 + $0xd8] sm:$0xff] %v2872
      %2881 = vst [vmem:[#allocation3 + $0xe0] sm:$0xff] %v2873
      %2882 = vst [vmem:[#allocation3 + $0xe8] sm:$0xff] %v2874
      %2883 = vst [vmem:[#allocation3 + $0xf0] sm:$0xff] %v2875
      %2884 = vst [vmem:[#allocation3 + $0xf8] sm:$0xff] %v2876
      %2885 = vst [vmem:[#allocation3 + $0x100] sm:$0xff] %v2555
      %2886 = vst [vmem:[#allocation3 + $0x108] sm:$0xff] %v2556
      %2887 = vst [vmem:[#allocation3 + $0x110] sm:$0xff] %v2557
      %2888 = vst [vmem:[#allocation3 + $0x118] sm:$0xff] %v2558
      %2889 = vst [vmem:[#allocation3 + $0x120] sm:$0xff] %v2559
      %2890 = vst [vmem:[#allocation3 + $0x128] sm:$0xff] %v2560
      %2891 = vst [vmem:[#allocation3 + $0x130] sm:$0xff] %v2561
      %2892 = vst [vmem:[#allocation3 + $0x138] sm:$0xff] %v2562
      %v2893 = vld [vmem:[#allocation2 + $0x8] sm:$0xff]
      %v2894 = vld [vmem:[#allocation2 + $0x10] sm:$0xff]
      %v2895 = vld [vmem:[#allocation2 + $0x18] sm:$0xff]
      %v2896 = vld [vmem:[#allocation2 + $0x28] sm:$0xff]
      %v2897 = vld [vmem:[#allocation2 + $0x30] sm:$0xff]
      %v2898 = vld [vmem:[#allocation2 + $0x38] sm:$0xff]
      %v2899 = vld [vmem:[#allocation2 + $0x48] sm:$0xff]
      %v2900 = vld [vmem:[#allocation2 + $0x50] sm:$0xff]
      %v2901 = vld [vmem:[#allocation2 + $0x58] sm:$0xff]
      %v2902 = vld [vmem:[#allocation2 + $0x68] sm:$0xff]
      %v2903 = vld [vmem:[#allocation2 + $0x70] sm:$0xff]
      %v2904 = vld [vmem:[#allocation2 + $0x78] sm:$0xff]
      %2917 = vrot.lane.b32.xlu0 %v2893, 127
      %v2918 = vpop.permute.xlu0 %2917
      %2919 = vrot.lane.b32.xlu0 %v2894, 127
      %v2920 = vpop.permute.xlu0 %2919
      %2921 = vrot.lane.b32.xlu0 %v2895, 127
      %v2922 = vpop.permute.xlu0 %2921
      %2923 = vrot.lane.b32.xlu0 %v2896, 127
      %v2924 = vpop.permute.xlu0 %2923
      %2925 = vrot.lane.b32.xlu0 %v2897, 127
      %v2926 = vpop.permute.xlu0 %2925
      %2927 = vrot.lane.b32.xlu0 %v2898, 127
      %v2928 = vpop.permute.xlu0 %2927
      %2929 = vrot.lane.b32.xlu0 %v2899, 127
      %v2930 = vpop.permute.xlu0 %2929
      %2931 = vrot.lane.b32.xlu0 %v2900, 127
      %v2932 = vpop.permute.xlu0 %2931
      %2933 = vrot.lane.b32.xlu0 %v2901, 127
      %v2934 = vpop.permute.xlu0 %2933
      %2935 = vrot.lane.b32.xlu0 %v2902, 127
      %v2936 = vpop.permute.xlu0 %2935
      %2937 = vrot.lane.b32.xlu0 %v2903, 127
      %v2938 = vpop.permute.xlu0 %2937
      %2939 = vrot.lane.b32.xlu0 %v2904, 127
      %v2940 = vpop.permute.xlu0 %2939
      %v2941 = vsel %vm934, %v2918, %v2920
      %v2942 = vsel %vm934, %v2920, %v2922
      %v2943 = vsel %vm934, %v2924, %v2926
      %v2944 = vsel %vm934, %v2926, %v2928
      %v2945 = vsel %vm934, %v2930, %v2932
      %v2946 = vsel %vm934, %v2932, %v2934
      %v2947 = vsel %vm934, %v2936, %v2938
      %v2948 = vsel %vm934, %v2938, %v2940
      %v2957 = vsel %vm923, %v2941, 0.0
      %v2958 = vsel %vm924, %v2942, 0.0
      %v2959 = vsel %vm923, %v2943, 0.0
      %v2960 = vsel %vm924, %v2944, 0.0
      %v2961 = vsel %vm923, %v2945, 0.0
      %v2962 = vsel %vm924, %v2946, 0.0
      %v2963 = vsel %vm923, %v2947, 0.0
      %v2964 = vsel %vm924, %v2948, 0.0
      %2965 = vst [vmem:[#allocation3 + $0x140] sm:$0xff] %v2957
      %2966 = vst [vmem:[#allocation3 + $0x148] sm:$0xff] %v2958
      %2967 = vst [vmem:[#allocation3 + $0x150] sm:$0xff] %v2959
      %2968 = vst [vmem:[#allocation3 + $0x158] sm:$0xff] %v2960
      %2969 = vst [vmem:[#allocation3 + $0x160] sm:$0xff] %v2961
      %2970 = vst [vmem:[#allocation3 + $0x168] sm:$0xff] %v2962
      %2971 = vst [vmem:[#allocation3 + $0x170] sm:$0xff] %v2963
      %2972 = vst [vmem:[#allocation3 + $0x178] sm:$0xff] %v2964
      %v2973 = vld [vmem:[#allocation2 + $0x8] sm:$0xff]
      %v2974 = vld [vmem:[#allocation2 + $0x10] sm:$0xff]
      %v2975 = vld [vmem:[#allocation2 + $0x18] sm:$0xff]
      %v2976 = vld [vmem:[#allocation2 + $0x28] sm:$0xff]
      %v2977 = vld [vmem:[#allocation2 + $0x30] sm:$0xff]
      %v2978 = vld [vmem:[#allocation2 + $0x38] sm:$0xff]
      %v2979 = vld [vmem:[#allocation2 + $0x48] sm:$0xff]
      %v2980 = vld [vmem:[#allocation2 + $0x50] sm:$0xff]
      %v2981 = vld [vmem:[#allocation2 + $0x58] sm:$0xff]
      %v2982 = vld [vmem:[#allocation2 + $0x68] sm:$0xff]
      %v2983 = vld [vmem:[#allocation2 + $0x70] sm:$0xff]
      %v2984 = vld [vmem:[#allocation2 + $0x78] sm:$0xff]
      %2997 = vrot.lane.b32.xlu0 %v2973, 113
      %v2998 = vpop.permute.xlu0 %2997
      %2999 = vrot.lane.b32.xlu0 %v2974, 113
      %v3000 = vpop.permute.xlu0 %2999
      %3001 = vrot.lane.b32.xlu0 %v2975, 113
      %v3002 = vpop.permute.xlu0 %3001
      %3003 = vrot.lane.b32.xlu0 %v2976, 113
      %v3004 = vpop.permute.xlu0 %3003
      %3005 = vrot.lane.b32.xlu0 %v2977, 113
      %v3006 = vpop.permute.xlu0 %3005
      %3007 = vrot.lane.b32.xlu0 %v2978, 113
      %v3008 = vpop.permute.xlu0 %3007
      %3009 = vrot.lane.b32.xlu0 %v2979, 113
      %v3010 = vpop.permute.xlu0 %3009
      %3011 = vrot.lane.b32.xlu0 %v2980, 113
      %v3012 = vpop.permute.xlu0 %3011
      %3013 = vrot.lane.b32.xlu0 %v2981, 113
      %v3014 = vpop.permute.xlu0 %3013
      %3015 = vrot.lane.b32.xlu0 %v2982, 113
      %v3016 = vpop.permute.xlu0 %3015
      %3017 = vrot.lane.b32.xlu0 %v2983, 113
      %v3018 = vpop.permute.xlu0 %3017
      %3019 = vrot.lane.b32.xlu0 %v2984, 113
      %v3020 = vpop.permute.xlu0 %3019
      %vm3021 = vcmask 924672
      %v3022 = vsel %vm3021, %v2998, %v3000
      %v3023 = vsel %vm3021, %v3000, %v3002
      %v3024 = vsel %vm3021, %v3004, %v3006
      %v3025 = vsel %vm3021, %v3006, %v3008
      %v3026 = vsel %vm3021, %v3010, %v3012
      %v3027 = vsel %vm3021, %v3012, %v3014
      %v3028 = vsel %vm3021, %v3016, %v3018
      %v3029 = vsel %vm3021, %v3018, %v3020
      %v3038 = vsel %vm888, %v3022, 0.0
      %v3039 = vsel %vm889, %v3023, 0.0
      %v3040 = vsel %vm888, %v3024, 0.0
      %v3041 = vsel %vm889, %v3025, 0.0
      %v3042 = vsel %vm888, %v3026, 0.0
      %v3043 = vsel %vm889, %v3027, 0.0
      %v3044 = vsel %vm888, %v3028, 0.0
      %v3045 = vsel %vm889, %v3029, 0.0
      %3046 = vst [vmem:[#allocation3 + $0x180] sm:$0xff] %v3038
      %3047 = vst [vmem:[#allocation3 + $0x188] sm:$0xff] %v3039
      %3048 = vst [vmem:[#allocation3 + $0x190] sm:$0xff] %v3040
      %3049 = vst [vmem:[#allocation3 + $0x198] sm:$0xff] %v3041
      %3050 = vst [vmem:[#allocation3 + $0x1a0] sm:$0xff] %v3042
      %3051 = vst [vmem:[#allocation3 + $0x1a8] sm:$0xff] %v3043
      %3052 = vst [vmem:[#allocation3 + $0x1b0] sm:$0xff] %v3044
      %3053 = vst [vmem:[#allocation3 + $0x1b8] sm:$0xff] %v3045
      %v3054 = vld [vmem:[#allocation2 + $0x8] sm:$0xff]
      %v3055 = vld [vmem:[#allocation2 + $0x10] sm:$0xff]
      %v3056 = vld [vmem:[#allocation2 + $0x18] sm:$0xff]
      %v3057 = vld [vmem:[#allocation2 + $0x28] sm:$0xff]
      %v3058 = vld [vmem:[#allocation2 + $0x30] sm:$0xff]
      %v3059 = vld [vmem:[#allocation2 + $0x38] sm:$0xff]
      %v3060 = vld [vmem:[#allocation2 + $0x48] sm:$0xff]
      %v3061 = vld [vmem:[#allocation2 + $0x50] sm:$0xff]
      %v3062 = vld [vmem:[#allocation2 + $0x58] sm:$0xff]
      %v3063 = vld [vmem:[#allocation2 + $0x68] sm:$0xff]
      %v3064 = vld [vmem:[#allocation2 + $0x70] sm:$0xff]
      %v3065 = vld [vmem:[#allocation2 + $0x78] sm:$0xff]
      %3078 = vrot.lane.b32.xlu0 %v3054, 112
      %v3079 = vpop.permute.xlu0 %3078
      %3080 = vrot.lane.b32.xlu0 %v3055, 112
      %v3081 = vpop.permute.xlu0 %3080
      %3082 = vrot.lane.b32.xlu0 %v3056, 112
      %v3083 = vpop.permute.xlu0 %3082
      %3084 = vrot.lane.b32.xlu0 %v3057, 112
      %v3085 = vpop.permute.xlu0 %3084
      %3086 = vrot.lane.b32.xlu0 %v3058, 112
      %v3087 = vpop.permute.xlu0 %3086
      %3088 = vrot.lane.b32.xlu0 %v3059, 112
      %v3089 = vpop.permute.xlu0 %3088
      %3090 = vrot.lane.b32.xlu0 %v3060, 112
      %v3091 = vpop.permute.xlu0 %3090
      %3092 = vrot.lane.b32.xlu0 %v3061, 112
      %v3093 = vpop.permute.xlu0 %3092
      %3094 = vrot.lane.b32.xlu0 %v3062, 112
      %v3095 = vpop.permute.xlu0 %3094
      %3096 = vrot.lane.b32.xlu0 %v3063, 112
      %v3097 = vpop.permute.xlu0 %3096
      %3098 = vrot.lane.b32.xlu0 %v3064, 112
      %v3099 = vpop.permute.xlu0 %3098
      %3100 = vrot.lane.b32.xlu0 %v3065, 112
      %v3101 = vpop.permute.xlu0 %3100
      %v3102 = vsel %vm1035, %v3079, %v3081
      %v3103 = vsel %vm1035, %v3081, %v3083
      %v3104 = vsel %vm1035, %v3085, %v3087
      %v3105 = vsel %vm1035, %v3087, %v3089
      %v3106 = vsel %vm1035, %v3091, %v3093
      %v3107 = vsel %vm1035, %v3093, %v3095
      %v3108 = vsel %vm1035, %v3097, %v3099
      %v3109 = vsel %vm1035, %v3099, %v3101
      %3118 = vst [vmem:[#allocation3 + $0x1c0] sm:$0xff] %v3102
      %3119 = vst [vmem:[#allocation3 + $0x1c8] sm:$0xff] %v3103
      %3120 = vst [vmem:[#allocation3 + $0x1d0] sm:$0xff] %v3104
      %3121 = vst [vmem:[#allocation3 + $0x1d8] sm:$0xff] %v3105
      %3122 = vst [vmem:[#allocation3 + $0x1e0] sm:$0xff] %v3106
      %3123 = vst [vmem:[#allocation3 + $0x1e8] sm:$0xff] %v3107
      %3124 = vst [vmem:[#allocation3 + $0x1f0] sm:$0xff] %v3108
      %3125 = vst [vmem:[#allocation3 + $0x1f8] sm:$0xff] %v3109
      %v3126 = vld [vmem:[#allocation2 + $0x8] sm:$0xff]
      %v3127 = vld [vmem:[#allocation2 + $0x10] sm:$0xff]
      %v3128 = vld [vmem:[#allocation2 + $0x18] sm:$0xff]
      %v3129 = vld [vmem:[#allocation2 + $0x28] sm:$0xff]
      %v3130 = vld [vmem:[#allocation2 + $0x30] sm:$0xff]
      %v3131 = vld [vmem:[#allocation2 + $0x38] sm:$0xff]
      %v3132 = vld [vmem:[#allocation2 + $0x48] sm:$0xff]
      %v3133 = vld [vmem:[#allocation2 + $0x50] sm:$0xff]
      %v3134 = vld [vmem:[#allocation2 + $0x58] sm:$0xff]
      %v3135 = vld [vmem:[#allocation2 + $0x68] sm:$0xff]
      %v3136 = vld [vmem:[#allocation2 + $0x70] sm:$0xff]
      %v3137 = vld [vmem:[#allocation2 + $0x78] sm:$0xff]
      %3150 = vrot.lane.b32.xlu0 %v3126, 111
      %v3151 = vpop.permute.xlu0 %3150
      %3152 = vrot.lane.b32.xlu0 %v3127, 111
      %v3153 = vpop.permute.xlu0 %3152
      %3154 = vrot.lane.b32.xlu0 %v3128, 111
      %v3155 = vpop.permute.xlu0 %3154
      %3156 = vrot.lane.b32.xlu0 %v3129, 111
      %v3157 = vpop.permute.xlu0 %3156
      %3158 = vrot.lane.b32.xlu0 %v3130, 111
      %v3159 = vpop.permute.xlu0 %3158
      %3160 = vrot.lane.b32.xlu0 %v3131, 111
      %v3161 = vpop.permute.xlu0 %3160
      %3162 = vrot.lane.b32.xlu0 %v3132, 111
      %v3163 = vpop.permute.xlu0 %3162
      %3164 = vrot.lane.b32.xlu0 %v3133, 111
      %v3165 = vpop.permute.xlu0 %3164
      %3166 = vrot.lane.b32.xlu0 %v3134, 111
      %v3167 = vpop.permute.xlu0 %3166
      %3168 = vrot.lane.b32.xlu0 %v3135, 111
      %v3169 = vpop.permute.xlu0 %3168
      %3170 = vrot.lane.b32.xlu0 %v3136, 111
      %v3171 = vpop.permute.xlu0 %3170
      %3172 = vrot.lane.b32.xlu0 %v3137, 111
      %v3173 = vpop.permute.xlu0 %3172
      %vm3174 = vcmask 908288
      %v3175 = vsel %vm3174, %v3151, %v3153
      %v3176 = vsel %vm3174, %v3153, %v3155
      %v3177 = vsel %vm3174, %v3157, %v3159
      %v3178 = vsel %vm3174, %v3159, %v3161
      %v3179 = vsel %vm3174, %v3163, %v3165
      %v3180 = vsel %vm3174, %v3165, %v3167
      %v3181 = vsel %vm3174, %v3169, %v3171
      %v3182 = vsel %vm3174, %v3171, %v3173
      %v3191 = vsel %vm923, %v3175, 0.0
      %v3192 = vsel %vm924, %v3176, 0.0
      %v3193 = vsel %vm923, %v3177, 0.0
      %v3194 = vsel %vm924, %v3178, 0.0
      %v3195 = vsel %vm923, %v3179, 0.0
      %v3196 = vsel %vm924, %v3180, 0.0
      %v3197 = vsel %vm923, %v3181, 0.0
      %v3198 = vsel %vm924, %v3182, 0.0
      %3199 = vst [vmem:[#allocation3 + $0x200] sm:$0xff] %v3191
      %3200 = vst [vmem:[#allocation3 + $0x208] sm:$0xff] %v3192
      %3201 = vst [vmem:[#allocation3 + $0x210] sm:$0xff] %v3193
      %3202 = vst [vmem:[#allocation3 + $0x218] sm:$0xff] %v3194
      %3203 = vst [vmem:[#allocation3 + $0x220] sm:$0xff] %v3195
      %3204 = vst [vmem:[#allocation3 + $0x228] sm:$0xff] %v3196
      %3205 = vst [vmem:[#allocation3 + $0x230] sm:$0xff] %v3197
      %3206 = vst [vmem:[#allocation3 + $0x238] sm:$0xff] %v3198
      %v3207 = vld [vmem:[%s21] sm:$0xff]
      %v3208 = vld [vmem:[%s21 + $0x8] sm:$0xff]
      %v3209 = vld [vmem:[%s21 + $0x10] sm:$0xff]
      %v3210 = vld [vmem:[#allocation3] sm:$0xff]
      %v3211 = vld [vmem:[#allocation3 + $0x8] sm:$0xff]
      %v3212 = vld [vmem:[#allocation3 + $0x10] sm:$0xff]
      %v3213 = vld [vmem:[#allocation3 + $0x18] sm:$0xff]
      %v3214 = vld [vmem:[#allocation3 + $0x20] sm:$0xff]
      %v3215 = vld [vmem:[#allocation3 + $0x28] sm:$0xff]
      %v3216 = vld [vmem:[#allocation3 + $0x30] sm:$0xff]
      %v3217 = vld [vmem:[#allocation3 + $0x38] sm:$0xff]
      %v3218 = vld [vmem:[#allocation3 + $0x40] sm:$0xff]
      %v3219 = vld [vmem:[#allocation3 + $0x48] sm:$0xff]
      %v3220 = vld [vmem:[#allocation3 + $0x50] sm:$0xff]
      %v3221 = vld [vmem:[#allocation3 + $0x58] sm:$0xff]
      %v3222 = vld [vmem:[#allocation3 + $0x60] sm:$0xff]
      %v3223 = vld [vmem:[#allocation3 + $0x68] sm:$0xff]
      %v3224 = vld [vmem:[#allocation3 + $0x70] sm:$0xff]
      %v3225 = vld [vmem:[#allocation3 + $0x78] sm:$0xff]
      %v3226 = vld [vmem:[#allocation3 + $0x80] sm:$0xff]
      %v3227 = vld [vmem:[#allocation3 + $0x88] sm:$0xff]
      %v3228 = vld [vmem:[#allocation3 + $0x90] sm:$0xff]
      %v3229 = vld [vmem:[#allocation3 + $0x98] sm:$0xff]
      %v3230 = vld [vmem:[#allocation3 + $0xa0] sm:$0xff]
      %v3231 = vld [vmem:[#allocation3 + $0xa8] sm:$0xff]
      %v3232 = vld [vmem:[#allocation3 + $0xb0] sm:$0xff]
      %v3233 = vld [vmem:[#allocation3 + $0xb8] sm:$0xff]
      %v3234 = vld [vmem:[#allocation3 + $0xc0] sm:$0xff]
      %v3235 = vld [vmem:[#allocation3 + $0xc8] sm:$0xff]
      %v3236 = vld [vmem:[#allocation3 + $0xd0] sm:$0xff]
      %v3237 = vld [vmem:[#allocation3 + $0xd8] sm:$0xff]
      %v3238 = vld [vmem:[#allocation3 + $0xe0] sm:$0xff]
      %v3239 = vld [vmem:[#allocation3 + $0xe8] sm:$0xff]
      %v3240 = vld [vmem:[#allocation3 + $0xf0] sm:$0xff]
      %v3241 = vld [vmem:[#allocation3 + $0xf8] sm:$0xff]
      %v3242 = vld [vmem:[#allocation3 + $0x100] sm:$0xff]
      %v3243 = vld [vmem:[#allocation3 + $0x108] sm:$0xff]
      %v3244 = vld [vmem:[#allocation3 + $0x110] sm:$0xff]
      %v3245 = vld [vmem:[#allocation3 + $0x118] sm:$0xff]
      %v3246 = vld [vmem:[#allocation3 + $0x120] sm:$0xff]
      %v3247 = vld [vmem:[#allocation3 + $0x128] sm:$0xff]
      %v3248 = vld [vmem:[#allocation3 + $0x130] sm:$0xff]
      %v3249 = vld [vmem:[#allocation3 + $0x138] sm:$0xff]
      %v3250 = vld [vmem:[#allocation3 + $0x140] sm:$0xff]
      %v3251 = vld [vmem:[#allocation3 + $0x148] sm:$0xff]
      %v3252 = vld [vmem:[#allocation3 + $0x150] sm:$0xff]
      %v3253 = vld [vmem:[#allocation3 + $0x158] sm:$0xff]
      %v3254 = vld [vmem:[#allocation3 + $0x160] sm:$0xff]
      %v3255 = vld [vmem:[#allocation3 + $0x168] sm:$0xff]
      %v3256 = vld [vmem:[#allocation3 + $0x170] sm:$0xff]
      %v3257 = vld [vmem:[#allocation3 + $0x178] sm:$0xff]
      %v3258 = vld [vmem:[#allocation3 + $0x180] sm:$0xff]
      %v3259 = vld [vmem:[#allocation3 + $0x188] sm:$0xff]
      %v3260 = vld [vmem:[#allocation3 + $0x190] sm:$0xff]
      %v3261 = vld [vmem:[#allocation3 + $0x198] sm:$0xff]
      %v3262 = vld [vmem:[#allocation3 + $0x1a0] sm:$0xff]
      %v3263 = vld [vmem:[#allocation3 + $0x1a8] sm:$0xff]
      %v3264 = vld [vmem:[#allocation3 + $0x1b0] sm:$0xff]
      %v3265 = vld [vmem:[#allocation3 + $0x1b8] sm:$0xff]
      %v3266 = vld [vmem:[#allocation3 + $0x1c0] sm:$0xff]
      %v3267 = vld [vmem:[#allocation3 + $0x1c8] sm:$0xff]
      %v3268 = vld [vmem:[#allocation3 + $0x1d0] sm:$0xff]
      %v3269 = vld [vmem:[#allocation3 + $0x1d8] sm:$0xff]
      %v3270 = vld [vmem:[#allocation3 + $0x1e0] sm:$0xff]
      %v3271 = vld [vmem:[#allocation3 + $0x1e8] sm:$0xff]
      %v3272 = vld [vmem:[#allocation3 + $0x1f0] sm:$0xff]
      %v3273 = vld [vmem:[#allocation3 + $0x1f8] sm:$0xff]
      %v3274 = vld [vmem:[#allocation3 + $0x200] sm:$0xff]
      %v3275 = vld [vmem:[#allocation3 + $0x208] sm:$0xff]
      %v3276 = vld [vmem:[#allocation3 + $0x210] sm:$0xff]
      %v3277 = vld [vmem:[#allocation3 + $0x218] sm:$0xff]
      %v3278 = vld [vmem:[#allocation3 + $0x220] sm:$0xff]
      %v3279 = vld [vmem:[#allocation3 + $0x228] sm:$0xff]
      %v3280 = vld [vmem:[#allocation3 + $0x230] sm:$0xff]
      %v3281 = vld [vmem:[#allocation3 + $0x238] sm:$0xff]
      %v3282 = vld [vmem:[%s22] sm:$0xff]
      %3284 = vset.pattern.permute.xlu0 0
      %3285 = vperm.xlu0 %3284, %v3282
      %v3286 = vpop.permute.xlu0 %3285
      %v3289 = vsel %vm1546, %v3209, 0
      %3291 = vmatpush.msra.mxu0 %v3240
      %3292 = vmatpush.msra.mxu0 %v3238
      %3293 = vmatpush.msra.mxu0 %v3236
      %3294 = vmatpush.msra.mxu0 %v3234
      %3295 = vmatpush.msra.mxu0 %v3232
      %3296 = vmatpush.msra.mxu0 %v3230
      %3297 = vmatpush.msra.mxu0 %v3228
      %3298 = vmatpush.msra.mxu0 %v3226
      %3299 = vmatpush.msra.mxu0 %v3224
      %3300 = vmatpush.msra.mxu0 %v3222
      %3301 = vmatpush.msra.mxu0 %v3220
      %3302 = vmatpush.msra.mxu0 %v3218
      %3303 = vmatpush.msra.mxu0 %v3216
      %3304 = vmatpush.msra.mxu0 %v3214
      %3305 = vmatpush.msra.mxu0 %v3212
      %3306 = vmatpush.msra.mxu0 %v3210
      %3307 = vmatmul.f32.gmra.mxu0 %v3207
      %v3308 = vpop.f32.mrf.mxu0
      %v3309 = vadd.f32 %v3286, %v3308
      %3310 = vdwg.mxu0
      %3311 = vmatpush.msra.mxu0 %v3272
      %3312 = vmatpush.msra.mxu0 %v3270
      %3313 = vmatpush.msra.mxu0 %v3268
      %3314 = vmatpush.msra.mxu0 %v3266
      %3315 = vmatpush.msra.mxu0 %v3264
      %3316 = vmatpush.msra.mxu0 %v3262
      %3317 = vmatpush.msra.mxu0 %v3260
      %3318 = vmatpush.msra.mxu0 %v3258
      %3319 = vmatpush.msra.mxu0 %v3256
      %3320 = vmatpush.msra.mxu0 %v3254
      %3321 = vmatpush.msra.mxu0 %v3252
      %3322 = vmatpush.msra.mxu0 %v3250
      %3323 = vmatpush.msra.mxu0 %v3248
      %3324 = vmatpush.msra.mxu0 %v3246
      %3325 = vmatpush.msra.mxu0 %v3244
      %3326 = vmatpush.msra.mxu0 %v3242
      %3327 = vmatmul.f32.gmra.mxu0 %v3208
      %v3328 = vpop.f32.mrf.mxu0
      %v3329 = vadd.f32 %v3309, %v3328
      %3330 = vdwg.mxu0
      %3331 = vmatpush.msra.mxu0 0.0
      %3332 = vmatpush.msra.mxu0 0.0
      %3333 = vmatpush.msra.mxu0 0.0
      %3334 = vmatpush.msra.mxu0 0.0
      %3335 = vmatpush.msra.mxu0 0.0
      %3336 = vmatpush.msra.mxu0 0.0
      %3337 = vmatpush.msra.mxu0 0.0
      %3338 = vmatpush.msra.mxu0 0.0
      %3339 = vmatpush.msra.mxu0 0.0
      %3340 = vmatpush.msra.mxu0 0.0
      %3341 = vmatpush.msra.mxu0 0.0
      %3342 = vmatpush.msra.mxu0 0.0
      %3343 = vmatpush.msra.mxu0 %v3280
      %3344 = vmatpush.msra.mxu0 %v3278
      %3345 = vmatpush.msra.mxu0 %v3276
      %3346 = vmatpush.msra.mxu0 %v3274
      %3347 = vmatmul.f32.gmra.mxu0 %v3289
      %v3348 = vpop.f32.mrf.mxu0
      %v3349 = vadd.f32 %v3329, %v3348
      %3350 = vdwg.mxu0
      %3351 = vmatpush.msra.mxu0 %v3241
      %3352 = vmatpush.msra.mxu0 %v3239
      %3353 = vmatpush.msra.mxu0 %v3237
      %3354 = vmatpush.msra.mxu0 %v3235
      %3355 = vmatpush.msra.mxu0 %v3233
      %3356 = vmatpush.msra.mxu0 %v3231
      %3357 = vmatpush.msra.mxu0 %v3229
      %3358 = vmatpush.msra.mxu0 %v3227
      %3359 = vmatpush.msra.mxu0 %v3225
      %3360 = vmatpush.msra.mxu0 %v3223
      %3361 = vmatpush.msra.mxu0 %v3221
      %3362 = vmatpush.msra.mxu0 %v3219
      %3363 = vmatpush.msra.mxu0 %v3217
      %3364 = vmatpush.msra.mxu0 %v3215
      %3365 = vmatpush.msra.mxu0 %v3213
      %3366 = vmatpush.msra.mxu0 %v3211
      %3367 = vmatmul.f32.gmra.mxu0 %v3207
      %v3368 = vpop.f32.mrf.mxu0
      %v3369 = vadd.f32 %v3286, %v3368
      %3370 = vdwg.mxu0
      %3371 = vmatpush.msra.mxu0 %v3273
      %3372 = vmatpush.msra.mxu0 %v3271
      %3373 = vmatpush.msra.mxu0 %v3269
      %3374 = vmatpush.msra.mxu0 %v3267
      %3375 = vmatpush.msra.mxu0 %v3265
      %3376 = vmatpush.msra.mxu0 %v3263
      %3377 = vmatpush.msra.mxu0 %v3261
      %3378 = vmatpush.msra.mxu0 %v3259
      %3379 = vmatpush.msra.mxu0 %v3257
      %3380 = vmatpush.msra.mxu0 %v3255
      %3381 = vmatpush.msra.mxu0 %v3253
      %3382 = vmatpush.msra.mxu0 %v3251
      %3383 = vmatpush.msra.mxu0 %v3249
      %3384 = vmatpush.msra.mxu0 %v3247
      %3385 = vmatpush.msra.mxu0 %v3245
      %3386 = vmatpush.msra.mxu0 %v3243
      %3387 = vmatmul.f32.gmra.mxu0 %v3208
      %v3388 = vpop.f32.mrf.mxu0
      %v3389 = vadd.f32 %v3369, %v3388
      %3390 = vdwg.mxu0
      %3391 = vmatpush.msra.mxu0 0.0
      %3392 = vmatpush.msra.mxu0 0.0
      %3393 = vmatpush.msra.mxu0 0.0
      %3394 = vmatpush.msra.mxu0 0.0
      %3395 = vmatpush.msra.mxu0 0.0
      %3396 = vmatpush.msra.mxu0 0.0
      %3397 = vmatpush.msra.mxu0 0.0
      %3398 = vmatpush.msra.mxu0 0.0
      %3399 = vmatpush.msra.mxu0 0.0
      %3400 = vmatpush.msra.mxu0 0.0
      %3401 = vmatpush.msra.mxu0 0.0
      %3402 = vmatpush.msra.mxu0 0.0
      %3403 = vmatpush.msra.mxu0 %v3281
      %3404 = vmatpush.msra.mxu0 %v3279
      %3405 = vmatpush.msra.mxu0 %v3277
      %3406 = vmatpush.msra.mxu0 %v3275
      %3407 = vmatmul.f32.gmra.mxu0 %v3289
      %v3408 = vpop.f32.mrf.mxu0
      %v3409 = vadd.f32 %v3389, %v3408
      %3410 = vdwg.mxu0
      %v3411 = vadd.f32 %v3349, %v837
      %v3412 = vadd.f32 %v3409, %v869
      %v3413 = vmax.f32 %v3411, 0.0
      %v3414 = vmax.f32 %v3412, 0.0
      %3415 = vst [vmem:[%s710] sm:$0xff] %v3413
      %3416 = vst [vmem:[%s710 + $0x8] sm:$0xff] %v3414
      %p3417 = scmp.lt.s32.totalorder %s34, 1
      %s3418 = scalar_select %p3417, %s34, 1
      %s3419 = smul.addr %s3418, 2
      %s3420 = smul.addr %s3419, 8
      %s3421 = scalar_lea.vmem %s23, %s3420
      // Predicated region
      $region113: #{rfb_forward.1} parent=111 // pred_check
        %p3422 = pneg %p540
      $region114: #{rfb_forward.1} parent=111 // pred_check_branch
        %3424 = sbr.rel (%p3422) target = $region116
      $region115: #{rfb_forward.1} parent=111 // pred_region
        _
      $region116: #{rfb_forward.1} parent=111 // pred_fallthru
        _
    $region112: #{rfb_forward.1} parent=5 // pred_fallthru
      _
    %p3425 = scmp.le.s32.totalorder 2, %s29
    // Predicated region
    $region117: #{rfb_forward.1} parent=5 // pred_check
      %p3426 = pneg %p3425
    $region118: #{rfb_forward.1} parent=5 // pred_check_branch
      %3428 = sbr.rel (%p3426) target = $region120
    $region119: #{rfb_forward.1} parent=5 // pred_region
      %s3429 = ssub.s32 %s29, 2
      // Predicated region
      $region121: #{rfb_forward.1} parent=119 // pred_check
        %p3430 = pneg %p546
      $region122: #{rfb_forward.1} parent=119 // pred_check_branch
        %3432 = sbr.rel (%p3430) target = $region124
      $region123: #{rfb_forward.1} parent=119 // pred_region
        %p3433 = scmp.lt.s32.totalorder %s35, 1
        %s3434 = scalar_select %p3433, %s35, 1
        %s3435 = smul.addr %s3434, 2
        %s3436 = smul.addr %s3435, 8
        %s3437 = scalar_lea.vmem %s23, %s3436
      $region124: #{rfb_forward.1} parent=119 // pred_fallthru
        _
    $region120: #{rfb_forward.1} parent=5 // pred_fallthru
      _
  $region6: #{rfb_forward.1} parent=0 // loop_footer
    %s33 = sadd.s32 1, %s29
  $region7: #{rfb_forward.1} parent=0 // loop_footer_branch
    %28 = sbr.rel target = $region3
  $region8: #{rfb_forward.1} parent=0 // loop_exit
    _

</llo_original>
